<compile_context>
chip_gen: v5e
topology: v5e:2x2
jax: 0.10.0
libtpu: 0.0.40
codegen_flags: <defaults>
</compile_context>

<pallas_src>
import functools

import numpy as np
import jax
import jax.numpy as jnp
from jax.experimental import pallas as pl
from jax.experimental.pallas import tpu as pltpu

_EPS = 1e-5
_LANES = 128


def _round_up(v, m):
    return (v + m - 1) // m * m


# ----------------------------------------------------------------------------
# Kernel 1: 3x3 conv (pad=1, stride s) as one big-K (or register-chained)
# matmul over shifted windows of a space-to-depth copy of the padded input,
# optional fused 1x1 projection-shortcut conv, and per-image per-channel
# sum / sum-of-squares outputs for the two-pass BatchNorm.
# ----------------------------------------------------------------------------
def _conv3x3_kernel(*refs, Ho, Wo, Wop, Hs, Cin, stride, has_sc, merge_k):
    if has_sc:
        (x_ref, w_ref, wsc_ref,
         out_ref, sum_ref, ssq_ref, sco_ref, scs_ref, scq_ref) = refs
    else:
        x_ref, w_ref, out_ref, sum_ref, ssq_ref = refs

    s = stride
    Mo = Ho * Wop
    windows = []
    for dh in range(3):
        for dw in range(3):
            p = (dh % s) * s + (dw % s)        # parity plane (space-to-depth)
            oh, ow = dh // s, dw // s          # offset inside that plane
            r0 = p * Hs + oh
            # (Ho, Wop, Cin) bf16 shifted window; Wop is a multiple of 8, so
            # the flattening reshape below is layout-free.
            a = x_ref[0, r0:r0 + Ho, ow:ow + Wop, :]
            windows.append(a.reshape(Mo, Cin))

    if merge_k:
        # In-VMEM im2col: one K = 9*Cin matmul, accumulation stays in the MXU.
        im2col = jnp.concatenate(windows, axis=-1)          # (Mo, 9*Cin)
        w_full = w_ref[...].reshape(9 * Cin, w_ref.shape[-1])
        acc = jnp.dot(im2col, w_full, preferred_element_type=jnp.float32)
    else:
        # Small-Cin fallback (lane-concat of tiny chunks is not worth it):
        # chain the tap matmuls through a value accumulator, single store.
        acc = None
        for t in range(9):
            c = jnp.dot(windows[t], w_ref[t],
                        preferred_element_type=jnp.float32)
            acc = c if acc is None else acc + c

    mask = None
    if Wop != Wo:
        # Zero the width-padding columns so BN statistics stay exact.
        col = jax.lax.broadcasted_iota(jnp.int32, (Ho, Wop, 1), 1)
        mask = (col < Wo).reshape(Mo, 1)
        acc = jnp.where(mask, acc, 0.0)

    out_ref[0] = acc.astype(out_ref.dtype)
    # BN partial stats from the in-register result (no VMEM reload).
    sum_ref[0] = jnp.sum(acc, axis=0, keepdims=True)
    ssq_ref[0] = jnp.sum(acc * acc, axis=0, keepdims=True)

    if has_sc:
        # 1x1 stride-s conv == centre tap of the padded 3x3 window.
        sc = jnp.dot(windows[4], wsc_ref[...],
                     preferred_element_type=jnp.float32)
        if mask is not None:
            sc = jnp.where(mask, sc, 0.0)
        sco_ref[0] = sc.astype(sco_ref.dtype)
        scs_ref[0] = jnp.sum(sc, axis=0, keepdims=True)
        scq_ref[0] = jnp.sum(sc * sc, axis=0, keepdims=True)


def conv3x3_pallas(x_nhwc, w_oihw, stride, w_sc=None, out_dtype=jnp.bfloat16):
    """3x3 conv (padding=1, no bias) + optional fused 1x1 shortcut conv.

    Returns (out, sums, sumsq[, sc_out, sc_sums, sc_sumsq]) with
      out   : (N, Ho*Wop, Cp) out_dtype, Cp = Cout rounded up to 128 lanes,
              Wop = Wo rounded up to 8 (pad columns are exactly zero)
      sums  : (N, 1, Cp) f32 per-image per-channel sums of out (f32 acc)
      sumsq : (N, 1, Cp) f32 per-image per-channel sums of squares of out
    """
    N, H, W, Cx = x_nhwc.shape
    Cout, Cw = w_oihw.shape[0], w_oihw.shape[1]
    assert Cx >= Cw, (Cx, Cw)
    s = int(stride)
    Ho = (H - 1) // s + 1
    Wo = (W - 1) // s + 1
    Wop = _round_up(Wo, 8)            # keep the in-kernel reshape layout-free
    off = 2 // s                      # max tap offset inside a parity plane
    Hs, Ws = Ho + off, Wop + off
    P = s * s
    Cp = _round_up(Cout, _LANES)
    tn = _LANES
    Mo = Ho * Wop
    merge_k = (Cx % _LANES == 0)      # big-K im2col path when lane-aligned

    # pad=1 conv padding, extended so the space-to-depth reshape is exact.
    xp = jnp.pad(x_nhwc, ((0, 0), (1, s * Hs - H - 1),
                          (1, s * Ws - W - 1), (0, 0)))
    # Space-to-depth: plane p = ph*s + pw holds xp[:, ph::s, pw::s, :], so
    # every tap of the (possibly strided) conv is a contiguous window.
    xs = xp.reshape(N, Hs, s, Ws, s, Cx).transpose(0, 2, 4, 1, 3, 5)
    xs = xs.reshape(N, P * Hs, Ws, Cx).astype(jnp.bfloat16)

    # (Cout, Cw, 3, 3) -> (9, Cx, Cp): tap-major, zero-padded, lane-dense.
    wm = jnp.transpose(w_oihw, (2, 3, 1, 0))                 # (3,3,Cw,Cout)
    wm = jnp.pad(wm, ((0, 0), (0, 0), (0, Cx - Cw), (0, Cp - Cout)))
    wm = wm.reshape(9, Cx, Cp).astype(jnp.bfloat16)

    has_sc = w_sc is not None
    # Grid: Cout tile OUTER, image INNER -> weight block index is constant
    # along the inner axis, so weights stay VMEM-resident while activations
    # stream (one weight DMA per Cout tile instead of per image).
    in_specs = [
        pl.BlockSpec((1, P * Hs, Ws, Cx), lambda j, n: (n, 0, 0, 0)),
        pl.BlockSpec((9, Cx, tn), lambda j, n: (0, 0, j)),
    ]
    args = [xs, wm]
    out_shape = [
        jax.ShapeDtypeStruct((N, Mo, Cp), out_dtype),
        jax.ShapeDtypeStruct((N, 1, Cp), jnp.float32),
        jax.ShapeDtypeStruct((N, 1, Cp), jnp.float32),
    ]
    out_specs = [
        pl.BlockSpec((1, Mo, tn), lambda j, n: (n, 0, j)),
        pl.BlockSpec((1, 1, tn), lambda j, n: (n, 0, j)),
        pl.BlockSpec((1, 1, tn), lambda j, n: (n, 0, j)),
    ]
    flops = 2 * N * Mo * (9 * Cx) * Cp
    if has_sc:
        Cout_sc, Cw_sc = w_sc.shape[0], w_sc.shape[1]
        wsc = jnp.transpose(w_sc.reshape(Cout_sc, Cw_sc), (1, 0))
        wsc = jnp.pad(wsc, ((0, Cx - Cw_sc), (0, Cp - Cout_sc)))
        wsc = wsc.astype(jnp.bfloat16)
        in_specs.append(pl.BlockSpec((Cx, tn), lambda j, n: (0, j)))
        args.append(wsc)
        out_shape += [
            jax.ShapeDtypeStruct((N, Mo, Cp), out_dtype),
            jax.ShapeDtypeStruct((N, 1, Cp), jnp.float32),
            jax.ShapeDtypeStruct((N, 1, Cp), jnp.float32),
        ]
        out_specs += [
            pl.BlockSpec((1, Mo, tn), lambda j, n: (n, 0, j)),
            pl.BlockSpec((1, 1, tn), lambda j, n: (n, 0, j)),
            pl.BlockSpec((1, 1, tn), lambda j, n: (n, 0, j)),
        ]
        flops += 2 * N * Mo * Cx * Cp

    n_j = Cp // tn
    bytes_accessed = int(xs.size) * 2 * n_j + int(wm.size) * 2 + sum(
        int(np.prod(o.shape)) * o.dtype.itemsize for o in out_shape)

    kernel = functools.partial(_conv3x3_kernel, Ho=Ho, Wo=Wo, Wop=Wop, Hs=Hs,
                               Cin=Cx, stride=s, has_sc=has_sc,
                               merge_k=merge_k)
    return pl.pallas_call(
        kernel,
        grid=(n_j, N),
        in_specs=in_specs,
        out_specs=tuple(out_specs),
        out_shape=tuple(out_shape),
        compiler_params=pltpu.CompilerParams(
            dimension_semantics=("parallel", "parallel"),
            vmem_limit_bytes=64 * 1024 * 1024),
        cost_estimate=pl.CostEstimate(flops=int(flops), transcendentals=0,
                                      bytes_accessed=int(bytes_accessed)),
    )(*args)


# ----------------------------------------------------------------------------
# Kernel 2: fused BatchNorm apply (scale/shift) + optional residual (raw
# identity, or projection shortcut with its own BN folded in) + ReLU.
# ----------------------------------------------------------------------------
def _bn_act_kernel(*refs, res_mode, apply_relu):
    if res_mode == "affine":
        x_ref, sc_ref, sh_ref, r_ref, rsc_ref, rsh_ref, o_ref = refs
    elif res_mode == "raw":
        x_ref, sc_ref, sh_ref, r_ref, o_ref = refs
    else:
        x_ref, sc_ref, sh_ref, o_ref = refs
    y = x_ref[...].astype(jnp.float32) * sc_ref[...] + sh_ref[...]
    if res_mode == "affine":
        y = y + (r_ref[...].astype(jnp.float32) * rsc_ref[...] + rsh_ref[...])
    elif res_mode == "raw":
        y = y + r_ref[...].astype(jnp.float32)
    if apply_relu:
        y = jnp.maximum(y, 0.0)
    o_ref[...] = y.astype(o_ref.dtype)


def bn_act_pallas(x, scale, shift, res=None, res_scale=None, res_shift=None,
                  apply_relu=True, out_dtype=jnp.float32):
    N, Mo, Cp = x.shape
    tn = _LANES
    n_j = Cp // tn
    tm = Mo if Mo <= 2048 else 2048        # spatial tile (Mo is 8-aligned)
    n_m = pl.cdiv(Mo, tm)

    in_specs = [
        pl.BlockSpec((1, tm, tn), lambda n, j, m: (n, m, j)),
        pl.BlockSpec((1, tn), lambda n, j, m: (0, j)),
        pl.BlockSpec((1, tn), lambda n, j, m: (0, j)),
    ]
    args = [x, scale, shift]
    res_mode = "none"
    if res is not None:
        in_specs.append(pl.BlockSpec((1, tm, tn), lambda n, j, m: (n, m, j)))
        args.append(res)
        if res_scale is not None:
            res_mode = "affine"
            in_specs += [pl.BlockSpec((1, tn), lambda n, j, m: (0, j)),
                         pl.BlockSpec((1, tn), lambda n, j, m: (0, j))]
            args += [res_scale, res_shift]
        else:
            res_mode = "raw"

    kernel = functools.partial(_bn_act_kernel, res_mode=res_mode,
                               apply_relu=apply_relu)
    bytes_accessed = sum(int(a.size) * a.dtype.itemsize for a in args)
    bytes_accessed += N * Mo * Cp * np.dtype(out_dtype).itemsize
    return pl.pallas_call(
        kernel,
        grid=(N, n_j, n_m),
        in_specs=in_specs,
        out_specs=pl.BlockSpec((1, tm, tn), lambda n, j, m: (n, m, j)),
        out_shape=jax.ShapeDtypeStruct((N, Mo, Cp), out_dtype),
        compiler_params=pltpu.CompilerParams(
            dimension_semantics=("parallel", "parallel", "parallel")),
        cost_estimate=pl.CostEstimate(flops=8 * N * Mo * Cp, transcendentals=0,
                                      bytes_accessed=int(bytes_accessed)),
    )(*args)


def bn_scale_shift(sums, sumsqs, count, gamma, beta, eps=_EPS):
    """Fold batch statistics (biased variance) + affine params into per-channel
    scale/shift.  Tiny (Cp,)-sized math, done in plain XLA (f32)."""
    ssum = jnp.sum(sums, axis=(0, 1))
    ssq = jnp.sum(sumsqs, axis=(0, 1))
    Cp = ssum.shape[0]
    C = gamma.shape[0]
    mean = ssum / count
    var = jnp.maximum(ssq / count - mean * mean, 0.0)
    # NOTE: padded lanes keep gamma=1, beta=0 => scale finite, shift exactly 0,
    # so zero-valued padded channels stay exactly zero through BN+ReLU.
    g = jnp.pad(gamma.astype(jnp.float32), (0, Cp - C), constant_values=1.0)
    b = jnp.pad(beta.astype(jnp.float32), (0, Cp - C))
    scale = g * jax.lax.rsqrt(var + eps)
    shift = b - mean * scale
    return scale.reshape(1, Cp), shift.reshape(1, Cp)


# ----------------------------------------------------------------------------
# BasicBlock forward (NCHW in / NCHW out, matching the PyTorch module).
# ----------------------------------------------------------------------------
def basic_block_forward(x_nchw, params, stride):
    x = jnp.transpose(x_nchw, (0, 2, 3, 1)).astype(jnp.float32)   # NHWC
    N, H, W, Cin = x.shape
    planes = params["conv1_w"].shape[0]
    s = int(stride)
    has_sc = (s != 1) or (Cin != planes)
    Ho = (H - 1) // s + 1
    Wo = (W - 1) // s + 1
    Wop = _round_up(Wo, 8)
    count = N * Ho * Wo                      # real (unpadded) positions only

    # conv1 (+ fused 1x1 projection shortcut), also emitting BN statistics.
    if has_sc:
        out1, s1, q1, sc_raw, s_sc, q_sc = conv3x3_pallas(
            x, params["conv1_w"], s, w_sc=params["sc_w"])
    else:
        out1, s1, q1 = conv3x3_pallas(x, params["conv1_w"], s)
    Cp = out1.shape[-1]

    # bn1 + ReLU; output bf16 so conv2's MXU feed needs no extra cast/copy.
    scale1, shift1 = bn_scale_shift(s1, q1, count,
                                    params["bn1_gamma"], params["bn1_beta"])
    h1 = bn_act_pallas(out1, scale1, shift1, apply_relu=True,
                       out_dtype=jnp.bfloat16)
    h1_nhwc = h1.reshape(N, Ho, Wop, Cp)[:, :, :Wo, :]

    # conv2 (stride 1).  Weight rows for h1's padded channels are zero, so the
    # result is exact while staying lane-dense.
    out2, s2, q2 = conv3x3_pallas(h1_nhwc, params["conv2_w"], 1)
    scale2, shift2 = bn_scale_shift(s2, q2, count,
                                    params["bn2_gamma"], params["bn2_beta"])

    # bn2 + shortcut (with its own BN folded in) + ReLU, fused in one pass.
    if has_sc:
        scale_sc, shift_sc = bn_scale_shift(s_sc, q_sc, count,
                                            params["sc_gamma"],
                                            params["sc_beta"])
        y = bn_act_pallas(out2, scale2, shift2, res=sc_raw,
                          res_scale=scale_sc, res_shift=shift_sc,
                          apply_relu=True)
    else:
        # Identity residual streamed in bf16 (half the bytes of f32 pad).
        res = x.astype(jnp.bfloat16)
        if Wop != Wo:
            res = jnp.pad(res, ((0, 0), (0, 0), (0, Wop - Wo), (0, 0)))
        res = res.reshape(N, Ho * Wop, Cin)
        if Cp != Cin:
            res = jnp.pad(res, ((0, 0), (0, 0), (0, Cp - Cin)))
        y = bn_act_pallas(out2, scale2, shift2, res=res, apply_relu=True)

    y = y.reshape(N, Ho, Wop, Cp)[:, :, :Wo, :planes]
    return jnp.transpose(y, (0, 3, 1, 2))                         # NCHW


# ----------------------------------------------------------------------------
# Pure-JAX reference.  Conv inputs are rounded through bf16 and conv outputs /
# the identity shortcut are rounded through bf16 storage, mirroring the
# kernels' bf16 MXU feed and bf16 intermediate activations (accumulation and
# BN math stay f32).
# ----------------------------------------------------------------------------
def _ref_forward(x, params, stride, eps=_EPS):
    def conv(v, w, s, pad):
        vb = v.astype(jnp.bfloat16).astype(jnp.float32)
        wb = w.astype(jnp.bfloat16).astype(jnp.float32)
        out = jax.lax.conv_general_dilated(
            vb, wb, (s, s), [(pad, pad), (pad, pad)],
            dimension_numbers=("NCHW", "OIHW", "NCHW"),
            precision=jax.lax.Precision.HIGHEST)
        return out.astype(jnp.bfloat16).astype(jnp.float32)

    def bn(v, g, b):
        mean = jnp.mean(v, axis=(0, 2, 3), keepdims=True)
        var = jnp.mean((v - mean) ** 2, axis=(0, 2, 3), keepdims=True)
        return ((v - mean) * jax.lax.rsqrt(var + eps) * g.reshape(1, -1, 1, 1)
                + b.reshape(1, -1, 1, 1))

    planes = params["conv1_w"].shape[0]
    out = jax.nn.relu(bn(conv(x, params["conv1_w"], stride, 1),
                         params["bn1_gamma"], params["bn1_beta"]))
    out = bn(conv(out, params["conv2_w"], 1, 1),
             params["bn2_gamma"], params["bn2_beta"])
    if stride != 1 or x.shape[1] != planes:
        sc = bn(conv(x, params["sc_w"], stride, 0),
                params["sc_gamma"], params["sc_beta"])
    else:
        sc = x.astype(jnp.bfloat16).astype(jnp.float32)
    return jax.nn.relu(out + sc)


def _make_params(key, in_planes, planes):
    ks = jax.random.split(key, 8)
    return {
        "conv1_w": 0.1 * jax.random.normal(ks[0], (planes, in_planes, 3, 3),
                                           jnp.float32),
        "conv2_w": 0.1 * jax.random.normal(ks[1], (planes, planes, 3, 3),
                                           jnp.float32),
        "bn1_gamma": 1.0 + 0.1 * jax.random.normal(ks[2], (planes,),
                                                   jnp.float32),
        "bn1_beta": 0.1 * jax.random.normal(ks[3], (planes,), jnp.float32),
        "bn2_gamma": 1.0 + 0.1 * jax.random.normal(ks[4], (planes,),
                                                   jnp.float32),
        "bn2_beta": 0.1 * jax.random.normal(ks[5], (planes,), jnp.float32),
        "sc_w": 0.1 * jax.random.normal(ks[6], (planes, in_planes, 1, 1),
                                        jnp.float32),
        "sc_gamma": 1.0 + 0.1 * jax.random.normal(ks[7], (planes,),
                                                  jnp.float32),
        "sc_beta": jnp.zeros((planes,), jnp.float32),
    }


if __name__ == "__main__":
    key = jax.random.PRNGKey(0)
    k1, k2, k3, k4 = jax.random.split(key, 4)
    fwd = jax.jit(basic_block_forward, static_argnames=("stride",))

    # Case 1: projection shortcut (stride 2, channel change): x (2,4,16,16).
    params_a = _make_params(k1, 4, 8)
    x_a = jax.random.normal(k2, (2, 4, 16, 16), jnp.float32)
    out_a = jax.block_until_ready(fwd(x_a, params_a, stride=2))
    ref_a = jax.block_until_ready(_ref_forward(x_a, params_a, 2))
    assert out_a.shape == ref_a.shape, (out_a.shape, ref_a.shape)
    err_a = float(jnp.max(jnp.abs(out_a - ref_a)))
    assert jnp.allclose(out_a, ref_a, rtol=2e-2, atol=2e-2), err_a

    # Case 2: identity shortcut (stride 1, same channels): x (2,8,16,16).
    params_b = _make_params(k3, 8, 8)
    x_b = jax.random.normal(k4, (2, 8, 16, 16), jnp.float32)
    out_b = jax.block_until_ready(fwd(x_b, params_b, stride=1))
    ref_b = jax.block_until_ready(_ref_forward(x_b, params_b, 1))
    assert out_b.shape == ref_b.shape, (out_b.shape, ref_b.shape)
    err_b = float(jnp.max(jnp.abs(out_b - ref_b)))
    assert jnp.allclose(out_b, ref_b, rtol=2e-2, atol=2e-2), err_b

    print("KERNEL_OK")
</pallas_src>

<mosaic_0001>
module attributes {stable_mosaic.version = 11 : i64} {
  func.func @_conv3x3_kernel(%arg0: i32, %arg1: i32, %arg2: memref<1x36x9x4xbf16, #tpu.memory_space<vmem>>, %arg3: memref<9x4x128xbf16, #tpu.memory_space<vmem>>, %arg4: memref<4x128xbf16, #tpu.memory_space<vmem>>, %arg5: memref<1x64x128xbf16, #tpu.memory_space<vmem>>, %arg6: memref<1x1x128xf32, #tpu.memory_space<vmem>>, %arg7: memref<1x1x128xf32, #tpu.memory_space<vmem>>, %arg8: memref<1x64x128xbf16, #tpu.memory_space<vmem>>, %arg9: memref<1x1x128xf32, #tpu.memory_space<vmem>>, %arg10: memref<1x1x128xf32, #tpu.memory_space<vmem>>) attributes {dimension_semantics = [#tpu.dimension_semantics<parallel>, #tpu.dimension_semantics<parallel>], iteration_bounds = array<i64: 1, 2>, scalar_prefetch = 0 : i64, scratch_operands = 0 : i64, tpu.core_type = #tpu.core_type<tc>, window_params = [{transform_indices = @transform_0, window_bounds = array<i64: 1, 36, 9, 4>}, {transform_indices = @transform_1, window_bounds = array<i64: 9, 4, 128>}, {transform_indices = @transform_2, window_bounds = array<i64: 4, 128>}, {transform_indices = @transform_3, window_bounds = array<i64: 1, 64, 128>}, {transform_indices = @transform_4, window_bounds = array<i64: 1, 1, 128>}, {transform_indices = @transform_5, window_bounds = array<i64: 1, 1, 128>}, {transform_indices = @transform_6, window_bounds = array<i64: 1, 64, 128>}, {transform_indices = @transform_7, window_bounds = array<i64: 1, 1, 128>}, {transform_indices = @transform_8, window_bounds = array<i64: 1, 1, 128>}]} {
    %c0 = arith.constant 0 : index
    %c0_0 = arith.constant 0 : index
    %c0_1 = arith.constant 0 : index
    %c0_2 = arith.constant 0 : index
    %0 = vector.load %arg2[%c0, %c0_0, %c0_1, %c0_2] : memref<1x36x9x4xbf16, #tpu.memory_space<vmem>>, vector<1x8x8x4xbf16>
    %1 = vector.shape_cast %0 : vector<1x8x8x4xbf16> to vector<8x8x4xbf16>
    %2 = vector.shape_cast %1 : vector<8x8x4xbf16> to vector<64x4xbf16>
    %c0_3 = arith.constant 0 : index
    %c9 = arith.constant 9 : index
    %c0_4 = arith.constant 0 : index
    %c0_5 = arith.constant 0 : index
    %3 = vector.load %arg2[%c0_3, %c9, %c0_4, %c0_5] : memref<1x36x9x4xbf16, #tpu.memory_space<vmem>>, vector<1x8x8x4xbf16>
    %4 = vector.shape_cast %3 : vector<1x8x8x4xbf16> to vector<8x8x4xbf16>
    %5 = vector.shape_cast %4 : vector<8x8x4xbf16> to vector<64x4xbf16>
    %c0_6 = arith.constant 0 : index
    %c0_7 = arith.constant 0 : index
    %c1 = arith.constant 1 : index
    %c0_8 = arith.constant 0 : index
    %6 = vector.load %arg2[%c0_6, %c0_7, %c1, %c0_8] : memref<1x36x9x4xbf16, #tpu.memory_space<vmem>>, vector<1x8x8x4xbf16>
    %7 = vector.shape_cast %6 : vector<1x8x8x4xbf16> to vector<8x8x4xbf16>
    %8 = vector.shape_cast %7 : vector<8x8x4xbf16> to vector<64x4xbf16>
    %c0_9 = arith.constant 0 : index
    %c18 = arith.constant 18 : index
    %c0_10 = arith.constant 0 : index
    %c0_11 = arith.constant 0 : index
    %9 = vector.load %arg2[%c0_9, %c18, %c0_10, %c0_11] : memref<1x36x9x4xbf16, #tpu.memory_space<vmem>>, vector<1x8x8x4xbf16>
    %10 = vector.shape_cast %9 : vector<1x8x8x4xbf16> to vector<8x8x4xbf16>
    %11 = vector.shape_cast %10 : vector<8x8x4xbf16> to vector<64x4xbf16>
    %c0_12 = arith.constant 0 : index
    %c27 = arith.constant 27 : index
    %c0_13 = arith.constant 0 : index
    %c0_14 = arith.constant 0 : index
    %12 = vector.load %arg2[%c0_12, %c27, %c0_13, %c0_14] : memref<1x36x9x4xbf16, #tpu.memory_space<vmem>>, vector<1x8x8x4xbf16>
    %13 = vector.shape_cast %12 : vector<1x8x8x4xbf16> to vector<8x8x4xbf16>
    %14 = vector.shape_cast %13 : vector<8x8x4xbf16> to vector<64x4xbf16>
    %c0_15 = arith.constant 0 : index
    %c18_16 = arith.constant 18 : index
    %c1_17 = arith.constant 1 : index
    %c0_18 = arith.constant 0 : index
    %15 = vector.load %arg2[%c0_15, %c18_16, %c1_17, %c0_18] : memref<1x36x9x4xbf16, #tpu.memory_space<vmem>>, vector<1x8x8x4xbf16>
    %16 = vector.shape_cast %15 : vector<1x8x8x4xbf16> to vector<8x8x4xbf16>
    %17 = vector.shape_cast %16 : vector<8x8x4xbf16> to vector<64x4xbf16>
    %c0_19 = arith.constant 0 : index
    %c1_20 = arith.constant 1 : index
    %c0_21 = arith.constant 0 : index
    %c0_22 = arith.constant 0 : index
    %18 = vector.load %arg2[%c0_19, %c1_20, %c0_21, %c0_22] : memref<1x36x9x4xbf16, #tpu.memory_space<vmem>>, vector<1x8x8x4xbf16>
    %19 = vector.shape_cast %18 : vector<1x8x8x4xbf16> to vector<8x8x4xbf16>
    %20 = vector.shape_cast %19 : vector<8x8x4xbf16> to vector<64x4xbf16>
    %c0_23 = arith.constant 0 : index
    %c10 = arith.constant 10 : index
    %c0_24 = arith.constant 0 : index
    %c0_25 = arith.constant 0 : index
    %21 = vector.load %arg2[%c0_23, %c10, %c0_24, %c0_25] : memref<1x36x9x4xbf16, #tpu.memory_space<vmem>>, vector<1x8x8x4xbf16>
    %22 = vector.shape_cast %21 : vector<1x8x8x4xbf16> to vector<8x8x4xbf16>
    %23 = vector.shape_cast %22 : vector<8x8x4xbf16> to vector<64x4xbf16>
    %c0_26 = arith.constant 0 : index
    %c1_27 = arith.constant 1 : index
    %c1_28 = arith.constant 1 : index
    %c0_29 = arith.constant 0 : index
    %24 = vector.load %arg2[%c0_26, %c1_27, %c1_28, %c0_29] : memref<1x36x9x4xbf16, #tpu.memory_space<vmem>>, vector<1x8x8x4xbf16>
    %25 = vector.shape_cast %24 : vector<1x8x8x4xbf16> to vector<8x8x4xbf16>
    %26 = vector.shape_cast %25 : vector<8x8x4xbf16> to vector<64x4xbf16>
    %c0_30 = arith.constant 0 : index
    %c0_31 = arith.constant 0 : index
    %c0_32 = arith.constant 0 : index
    %27 = vector.load %arg3[%c0_30, %c0_31, %c0_32] : memref<9x4x128xbf16, #tpu.memory_space<vmem>>, vector<1x4x128xbf16>
    %28 = vector.shape_cast %27 : vector<1x4x128xbf16> to vector<4x128xbf16>
    %cst = arith.constant dense<0.000000e+00> : vector<64x128xf32>
    %29 = tpu.matmul %2, %28, %cst {dimension_numbers = #tpu.dot_dimension_numbers<[1], [0], [0], [1], [0, 0, 1, 1], [], []>} : vector<64x4xbf16>, vector<4x128xbf16>, vector<64x128xf32> -> vector<64x128xf32>
    %c1_33 = arith.constant 1 : index
    %c0_34 = arith.constant 0 : index
    %c0_35 = arith.constant 0 : index
    %30 = vector.load %arg3[%c1_33, %c0_34, %c0_35] : memref<9x4x128xbf16, #tpu.memory_space<vmem>>, vector<1x4x128xbf16>
    %31 = vector.shape_cast %30 : vector<1x4x128xbf16> to vector<4x128xbf16>
    %cst_36 = arith.constant dense<0.000000e+00> : vector<64x128xf32>
    %32 = tpu.matmul %5, %31, %cst_36 {dimension_numbers = #tpu.dot_dimension_numbers<[1], [0], [0], [1], [0, 0, 1, 1], [], []>} : vector<64x4xbf16>, vector<4x128xbf16>, vector<64x128xf32> -> vector<64x128xf32>
    %33 = arith.addf %29, %32 : vector<64x128xf32>
    %c2 = arith.constant 2 : index
    %c0_37 = arith.constant 0 : index
    %c0_38 = arith.constant 0 : index
    %34 = vector.load %arg3[%c2, %c0_37, %c0_38] : memref<9x4x128xbf16, #tpu.memory_space<vmem>>, vector<1x4x128xbf16>
    %35 = vector.shape_cast %34 : vector<1x4x128xbf16> to vector<4x128xbf16>
    %cst_39 = arith.constant dense<0.000000e+00> : vector<64x128xf32>
    %36 = tpu.matmul %8, %35, %cst_39 {dimension_numbers = #tpu.dot_dimension_numbers<[1], [0], [0], [1], [0, 0, 1, 1], [], []>} : vector<64x4xbf16>, vector<4x128xbf16>, vector<64x128xf32> -> vector<64x128xf32>
    %37 = arith.addf %33, %36 : vector<64x128xf32>
    %c3 = arith.constant 3 : index
    %c0_40 = arith.constant 0 : index
    %c0_41 = arith.constant 0 : index
    %38 = vector.load %arg3[%c3, %c0_40, %c0_41] : memref<9x4x128xbf16, #tpu.memory_space<vmem>>, vector<1x4x128xbf16>
    %39 = vector.shape_cast %38 : vector<1x4x128xbf16> to vector<4x128xbf16>
    %cst_42 = arith.constant dense<0.000000e+00> : vector<64x128xf32>
    %40 = tpu.matmul %11, %39, %cst_42 {dimension_numbers = #tpu.dot_dimension_numbers<[1], [0], [0], [1], [0, 0, 1, 1], [], []>} : vector<64x4xbf16>, vector<4x128xbf16>, vector<64x128xf32> -> vector<64x128xf32>
    %41 = arith.addf %37, %40 : vector<64x128xf32>
    %c4 = arith.constant 4 : index
    %c0_43 = arith.constant 0 : index
    %c0_44 = arith.constant 0 : index
    %42 = vector.load %arg3[%c4, %c0_43, %c0_44] : memref<9x4x128xbf16, #tpu.memory_space<vmem>>, vector<1x4x128xbf16>
    %43 = vector.shape_cast %42 : vector<1x4x128xbf16> to vector<4x128xbf16>
    %cst_45 = arith.constant dense<0.000000e+00> : vector<64x128xf32>
    %44 = tpu.matmul %14, %43, %cst_45 {dimension_numbers = #tpu.dot_dimension_numbers<[1], [0], [0], [1], [0, 0, 1, 1], [], []>} : vector<64x4xbf16>, vector<4x128xbf16>, vector<64x128xf32> -> vector<64x128xf32>
    %45 = arith.addf %41, %44 : vector<64x128xf32>
    %c5 = arith.constant 5 : index
    %c0_46 = arith.constant 0 : index
    %c0_47 = arith.constant 0 : index
    %46 = vector.load %arg3[%c5, %c0_46, %c0_47] : memref<9x4x128xbf16, #tpu.memory_space<vmem>>, vector<1x4x128xbf16>
    %47 = vector.shape_cast %46 : vector<1x4x128xbf16> to vector<4x128xbf16>
    %cst_48 = arith.constant dense<0.000000e+00> : vector<64x128xf32>
    %48 = tpu.matmul %17, %47, %cst_48 {dimension_numbers = #tpu.dot_dimension_numbers<[1], [0], [0], [1], [0, 0, 1, 1], [], []>} : vector<64x4xbf16>, vector<4x128xbf16>, vector<64x128xf32> -> vector<64x128xf32>
    %49 = arith.addf %45, %48 : vector<64x128xf32>
    %c6 = arith.constant 6 : index
    %c0_49 = arith.constant 0 : index
    %c0_50 = arith.constant 0 : index
    %50 = vector.load %arg3[%c6, %c0_49, %c0_50] : memref<9x4x128xbf16, #tpu.memory_space<vmem>>, vector<1x4x128xbf16>
    %51 = vector.shape_cast %50 : vector<1x4x128xbf16> to vector<4x128xbf16>
    %cst_51 = arith.constant dense<0.000000e+00> : vector<64x128xf32>
    %52 = tpu.matmul %20, %51, %cst_51 {dimension_numbers = #tpu.dot_dimension_numbers<[1], [0], [0], [1], [0, 0, 1, 1], [], []>} : vector<64x4xbf16>, vector<4x128xbf16>, vector<64x128xf32> -> vector<64x128xf32>
    %53 = arith.addf %49, %52 : vector<64x128xf32>
    %c7 = arith.constant 7 : index
    %c0_52 = arith.constant 0 : index
    %c0_53 = arith.constant 0 : index
    %54 = vector.load %arg3[%c7, %c0_52, %c0_53] : memref<9x4x128xbf16, #tpu.memory_space<vmem>>, vector<1x4x128xbf16>
    %55 = vector.shape_cast %54 : vector<1x4x128xbf16> to vector<4x128xbf16>
    %cst_54 = arith.constant dense<0.000000e+00> : vector<64x128xf32>
    %56 = tpu.matmul %23, %55, %cst_54 {dimension_numbers = #tpu.dot_dimension_numbers<[1], [0], [0], [1], [0, 0, 1, 1], [], []>} : vector<64x4xbf16>, vector<4x128xbf16>, vector<64x128xf32> -> vector<64x128xf32>
    %57 = arith.addf %53, %56 : vector<64x128xf32>
    %c8 = arith.constant 8 : index
    %c0_55 = arith.constant 0 : index
    %c0_56 = arith.constant 0 : index
    %58 = vector.load %arg3[%c8, %c0_55, %c0_56] : memref<9x4x128xbf16, #tpu.memory_space<vmem>>, vector<1x4x128xbf16>
    %59 = vector.shape_cast %58 : vector<1x4x128xbf16> to vector<4x128xbf16>
    %cst_57 = arith.constant dense<0.000000e+00> : vector<64x128xf32>
    %60 = tpu.matmul %26, %59, %cst_57 {dimension_numbers = #tpu.dot_dimension_numbers<[1], [0], [0], [1], [0, 0, 1, 1], [], []>} : vector<64x4xbf16>, vector<4x128xbf16>, vector<64x128xf32> -> vector<64x128xf32>
    %61 = arith.addf %57, %60 : vector<64x128xf32>
    %62 = arith.truncf %61 : vector<64x128xf32> to vector<64x128xbf16>
    %c0_58 = arith.constant 0 : index
    %c0_59 = arith.constant 0 : index
    %c0_60 = arith.constant 0 : index
    %63 = vector.load %arg5[%c0_58, %c0_59, %c0_60] : memref<1x64x128xbf16, #tpu.memory_space<vmem>>, vector<1x64x128xbf16>
    %64 = vector.shape_cast %63 : vector<1x64x128xbf16> to vector<64x128xbf16>
    %65 = vector.shape_cast %62 : vector<64x128xbf16> to vector<1x64x128xbf16>
    tpu.vector_store %arg5[%c0_58, %c0_59, %c0_60], %65 {strides = array<i32>} : memref<1x64x128xbf16, #tpu.memory_space<vmem>>, vector<1x64x128xbf16>,
    %cst_61 = arith.constant dense<0.000000e+00> : vector<128xf32>
    %66 = vector.multi_reduction <add>, %61, %cst_61 [0] : vector<64x128xf32> to vector<128xf32>
    %67 = vector.shape_cast %66 : vector<128xf32> to vector<1x128xf32>
    %c0_62 = arith.constant 0 : index
    %c0_63 = arith.constant 0 : index
    %c0_64 = arith.constant 0 : index
    %68 = vector.load %arg6[%c0_62, %c0_63, %c0_64] : memref<1x1x128xf32, #tpu.memory_space<vmem>>, vector<1x1x128xf32>
    %69 = vector.shape_cast %68 : vector<1x1x128xf32> to vector<1x128xf32>
    %70 = vector.shape_cast %67 : vector<1x128xf32> to vector<1x1x128xf32>
    tpu.vector_store %arg6[%c0_62, %c0_63, %c0_64], %70 {strides = array<i32>} : memref<1x1x128xf32, #tpu.memory_space<vmem>>, vector<1x1x128xf32>,
    %71 = arith.mulf %61, %61 : vector<64x128xf32>
    %cst_65 = arith.constant dense<0.000000e+00> : vector<128xf32>
    %72 = vector.multi_reduction <add>, %71, %cst_65 [0] : vector<64x128xf32> to vector<128xf32>
    %73 = vector.shape_cast %72 : vector<128xf32> to vector<1x128xf32>
    %c0_66 = arith.constant 0 : index
    %c0_67 = arith.constant 0 : index
    %c0_68 = arith.constant 0 : index
    %74 = vector.load %arg7[%c0_66, %c0_67, %c0_68] : memref<1x1x128xf32, #tpu.memory_space<vmem>>, vector<1x1x128xf32>
    %75 = vector.shape_cast %74 : vector<1x1x128xf32> to vector<1x128xf32>
    %76 = vector.shape_cast %73 : vector<1x128xf32> to vector<1x1x128xf32>
    tpu.vector_store %arg7[%c0_66, %c0_67, %c0_68], %76 {strides = array<i32>} : memref<1x1x128xf32, #tpu.memory_space<vmem>>, vector<1x1x128xf32>,
    %c0_69 = arith.constant 0 : index
    %c0_70 = arith.constant 0 : index
    %77 = vector.load %arg4[%c0_69, %c0_70] : memref<4x128xbf16, #tpu.memory_space<vmem>>, vector<4x128xbf16>
    %cst_71 = arith.constant dense<0.000000e+00> : vector<64x128xf32>
    %78 = tpu.matmul %14, %77, %cst_71 {dimension_numbers = #tpu.dot_dimension_numbers<[1], [0], [0], [1], [0, 0, 1, 1], [], []>} : vector<64x4xbf16>, vector<4x128xbf16>, vector<64x128xf32> -> vector<64x128xf32>
    %79 = arith.truncf %78 : vector<64x128xf32> to vector<64x128xbf16>
    %c0_72 = arith.constant 0 : index
    %c0_73 = arith.constant 0 : index
    %c0_74 = arith.constant 0 : index
    %80 = vector.load %arg8[%c0_72, %c0_73, %c0_74] : memref<1x64x128xbf16, #tpu.memory_space<vmem>>, vector<1x64x128xbf16>
    %81 = vector.shape_cast %80 : vector<1x64x128xbf16> to vector<64x128xbf16>
    %82 = vector.shape_cast %79 : vector<64x128xbf16> to vector<1x64x128xbf16>
    tpu.vector_store %arg8[%c0_72, %c0_73, %c0_74], %82 {strides = array<i32>} : memref<1x64x128xbf16, #tpu.memory_space<vmem>>, vector<1x64x128xbf16>,
    %cst_75 = arith.constant dense<0.000000e+00> : vector<128xf32>
    %83 = vector.multi_reduction <add>, %78, %cst_75 [0] : vector<64x128xf32> to vector<128xf32>
    %84 = vector.shape_cast %83 : vector<128xf32> to vector<1x128xf32>
    %c0_76 = arith.constant 0 : index
    %c0_77 = arith.constant 0 : index
    %c0_78 = arith.constant 0 : index
    %85 = vector.load %arg9[%c0_76, %c0_77, %c0_78] : memref<1x1x128xf32, #tpu.memory_space<vmem>>, vector<1x1x128xf32>
    %86 = vector.shape_cast %85 : vector<1x1x128xf32> to vector<1x128xf32>
    %87 = vector.shape_cast %84 : vector<1x128xf32> to vector<1x1x128xf32>
    tpu.vector_store %arg9[%c0_76, %c0_77, %c0_78], %87 {strides = array<i32>} : memref<1x1x128xf32, #tpu.memory_space<vmem>>, vector<1x1x128xf32>,
    %88 = arith.mulf %78, %78 : vector<64x128xf32>
    %cst_79 = arith.constant dense<0.000000e+00> : vector<128xf32>
    %89 = vector.multi_reduction <add>, %88, %cst_79 [0] : vector<64x128xf32> to vector<128xf32>
    %90 = vector.shape_cast %89 : vector<128xf32> to vector<1x128xf32>
    %c0_80 = arith.constant 0 : index
    %c0_81 = arith.constant 0 : index
    %c0_82 = arith.constant 0 : index
    %91 = vector.load %arg10[%c0_80, %c0_81, %c0_82] : memref<1x1x128xf32, #tpu.memory_space<vmem>>, vector<1x1x128xf32>
    %92 = vector.shape_cast %91 : vector<1x1x128xf32> to vector<1x128xf32>
    %93 = vector.shape_cast %90 : vector<1x128xf32> to vector<1x1x128xf32>
    tpu.vector_store %arg10[%c0_80, %c0_81, %c0_82], %93 {strides = array<i32>} : memref<1x1x128xf32, #tpu.memory_space<vmem>>, vector<1x1x128xf32>,
    return
  }
  func.func @transform_0(%arg0: i32, %arg1: i32) -> (i32, i32, i32, i32) {
    %c0_i32 = arith.constant 0 : i32
    %c0_i32_0 = arith.constant 0 : i32
    %c0_i32_1 = arith.constant 0 : i32
    %c0_i32_2 = arith.constant 0 : i32
    return %arg1, %c0_i32, %c0_i32_0, %c0_i32_1 : i32, i32, i32, i32
  }
  func.func @transform_1(%arg0: i32, %arg1: i32) -> (i32, i32, i32) {
    %c0_i32 = arith.constant 0 : i32
    %c0_i32_0 = arith.constant 0 : i32
    %c0_i32_1 = arith.constant 0 : i32
    return %c0_i32, %c0_i32_0, %arg0 : i32, i32, i32
  }
  func.func @transform_2(%arg0: i32, %arg1: i32) -> (i32, i32) {
    %c0_i32 = arith.constant 0 : i32
    %c0_i32_0 = arith.constant 0 : i32
    return %c0_i32, %arg0 : i32, i32
  }
  func.func @transform_3(%arg0: i32, %arg1: i32) -> (i32, i32, i32) {
    %c0_i32 = arith.constant 0 : i32
    %c0_i32_0 = arith.constant 0 : i32
    return %arg1, %c0_i32, %arg0 : i32, i32, i32
  }
  func.func @transform_4(%arg0: i32, %arg1: i32) -> (i32, i32, i32) {
    %c0_i32 = arith.constant 0 : i32
    %c0_i32_0 = arith.constant 0 : i32
    return %arg1, %c0_i32, %arg0 : i32, i32, i32
  }
  func.func @transform_5(%arg0: i32, %arg1: i32) -> (i32, i32, i32) {
    %c0_i32 = arith.constant 0 : i32
    %c0_i32_0 = arith.constant 0 : i32
    return %arg1, %c0_i32, %arg0 : i32, i32, i32
  }
  func.func @transform_6(%arg0: i32, %arg1: i32) -> (i32, i32, i32) {
    %c0_i32 = arith.constant 0 : i32
    %c0_i32_0 = arith.constant 0 : i32
    return %arg1, %c0_i32, %arg0 : i32, i32, i32
  }
  func.func @transform_7(%arg0: i32, %arg1: i32) -> (i32, i32, i32) {
    %c0_i32 = arith.constant 0 : i32
    %c0_i32_0 = arith.constant 0 : i32
    return %arg1, %c0_i32, %arg0 : i32, i32, i32
  }
  func.func @transform_8(%arg0: i32, %arg1: i32) -> (i32, i32, i32) {
    %c0_i32 = arith.constant 0 : i32
    %c0_i32_0 = arith.constant 0 : i32
    return %arg1, %c0_i32, %arg0 : i32, i32, i32
  }
}

module attributes {stable_mosaic.version = 11 : i64} {
  func.func @_bn_act_kernel(%arg0: i32, %arg1: i32, %arg2: i32, %arg3: memref<1x64x128xbf16, #tpu.memory_space<vmem>>, %arg4: memref<1x128xf32, #tpu.memory_space<vmem>>, %arg5: memref<1x128xf32, #tpu.memory_space<vmem>>, %arg6: memref<1x64x128xbf16, #tpu.memory_space<vmem>>) attributes {dimension_semantics = [#tpu.dimension_semantics<parallel>, #tpu.dimension_semantics<parallel>, #tpu.dimension_semantics<parallel>], iteration_bounds = array<i64: 2, 1, 1>, scalar_prefetch = 0 : i64, scratch_operands = 0 : i64, tpu.core_type = #tpu.core_type<tc>, window_params = [{transform_indices = @transform_0, window_bounds = array<i64: 1, 64, 128>}, {transform_indices = @transform_1, window_bounds = array<i64: 1, 128>}, {transform_indices = @transform_2, window_bounds = array<i64: 1, 128>}, {transform_indices = @transform_3, window_bounds = array<i64: 1, 64, 128>}]} {
    %c0 = arith.constant 0 : index
    %c0_0 = arith.constant 0 : index
    %c0_1 = arith.constant 0 : index
    %0 = vector.load %arg3[%c0, %c0_0, %c0_1] : memref<1x64x128xbf16, #tpu.memory_space<vmem>>, vector<1x64x128xbf16>
    %1 = arith.extf %0 : vector<1x64x128xbf16> to vector<1x64x128xf32>
    %c0_2 = arith.constant 0 : index
    %c0_3 = arith.constant 0 : index
    %2 = vector.load %arg4[%c0_2, %c0_3] : memref<1x128xf32, #tpu.memory_space<vmem>>, vector<1x128xf32>
    %3 = vector.shape_cast %2 : vector<1x128xf32> to vector<1x1x128xf32>
    %4 = vector.broadcast %3 : vector<1x1x128xf32> to vector<1x64x128xf32>
    %5 = arith.mulf %1, %4 : vector<1x64x128xf32>
    %c0_4 = arith.constant 0 : index
    %c0_5 = arith.constant 0 : index
    %6 = vector.load %arg5[%c0_4, %c0_5] : memref<1x128xf32, #tpu.memory_space<vmem>>, vector<1x128xf32>
    %7 = vector.shape_cast %6 : vector<1x128xf32> to vector<1x1x128xf32>
    %8 = vector.broadcast %7 : vector<1x1x128xf32> to vector<1x64x128xf32>
    %9 = arith.addf %5, %8 : vector<1x64x128xf32>
    %cst = arith.constant 0.000000e+00 : f32
    %10 = vector.broadcast %cst : f32 to vector<1x64x128xf32>
    %11 = arith.maximumf %9, %10 : vector<1x64x128xf32>
    %12 = arith.truncf %11 : vector<1x64x128xf32> to vector<1x64x128xbf16>
    %c0_6 = arith.constant 0 : index
    %c0_7 = arith.constant 0 : index
    %c0_8 = arith.constant 0 : index
    %13 = vector.load %arg6[%c0_6, %c0_7, %c0_8] : memref<1x64x128xbf16, #tpu.memory_space<vmem>>, vector<1x64x128xbf16>
    tpu.vector_store %arg6[%c0_6, %c0_7, %c0_8], %12 {strides = array<i32>} : memref<1x64x128xbf16, #tpu.memory_space<vmem>>, vector<1x64x128xbf16>,
    return
  }
  func.func @transform_0(%arg0: i32, %arg1: i32, %arg2: i32) -> (i32, i32, i32) {
    %c0_i32 = arith.constant 0 : i32
    return %arg0, %arg2, %arg1 : i32, i32, i32
  }
  func.func @transform_1(%arg0: i32, %arg1: i32, %arg2: i32) -> (i32, i32) {
    %c0_i32 = arith.constant 0 : i32
    %c0_i32_0 = arith.constant 0 : i32
    return %c0_i32, %arg1 : i32, i32
  }
  func.func @transform_2(%arg0: i32, %arg1: i32, %arg2: i32) -> (i32, i32) {
    %c0_i32 = arith.constant 0 : i32
    %c0_i32_0 = arith.constant 0 : i32
    return %c0_i32, %arg1 : i32, i32
  }
  func.func @transform_3(%arg0: i32, %arg1: i32, %arg2: i32) -> (i32, i32, i32) {
    %c0_i32 = arith.constant 0 : i32
    return %arg0, %arg2, %arg1 : i32, i32, i32
  }
}

module attributes {stable_mosaic.version = 11 : i64} {
  func.func @_bn_act_kernel(%arg0: i32, %arg1: i32, %arg2: i32, %arg3: memref<1x64x128xbf16, #tpu.memory_space<vmem>>, %arg4: memref<1x128xf32, #tpu.memory_space<vmem>>, %arg5: memref<1x128xf32, #tpu.memory_space<vmem>>, %arg6: memref<1x64x128xbf16, #tpu.memory_space<vmem>>, %arg7: memref<1x128xf32, #tpu.memory_space<vmem>>, %arg8: memref<1x128xf32, #tpu.memory_space<vmem>>, %arg9: memref<1x64x128xf32, #tpu.memory_space<vmem>>) attributes {dimension_semantics = [#tpu.dimension_semantics<parallel>, #tpu.dimension_semantics<parallel>, #tpu.dimension_semantics<parallel>], iteration_bounds = array<i64: 2, 1, 1>, scalar_prefetch = 0 : i64, scratch_operands = 0 : i64, tpu.core_type = #tpu.core_type<tc>, window_params = [{transform_indices = @transform_0, window_bounds = array<i64: 1, 64, 128>}, {transform_indices = @transform_1, window_bounds = array<i64: 1, 128>}, {transform_indices = @transform_2, window_bounds = array<i64: 1, 128>}, {transform_indices = @transform_3, window_bounds = array<i64: 1, 64, 128>}, {transform_indices = @transform_4, window_bounds = array<i64: 1, 128>}, {transform_indices = @transform_5, window_bounds = array<i64: 1, 128>}, {transform_indices = @transform_6, window_bounds = array<i64: 1, 64, 128>}]} {
    %c0 = arith.constant 0 : index
    %c0_0 = arith.constant 0 : index
    %c0_1 = arith.constant 0 : index
    %0 = vector.load %arg3[%c0, %c0_0, %c0_1] : memref<1x64x128xbf16, #tpu.memory_space<vmem>>, vector<1x64x128xbf16>
    %1 = arith.extf %0 : vector<1x64x128xbf16> to vector<1x64x128xf32>
    %c0_2 = arith.constant 0 : index
    %c0_3 = arith.constant 0 : index
    %2 = vector.load %arg4[%c0_2, %c0_3] : memref<1x128xf32, #tpu.memory_space<vmem>>, vector<1x128xf32>
    %3 = vector.shape_cast %2 : vector<1x128xf32> to vector<1x1x128xf32>
    %4 = vector.broadcast %3 : vector<1x1x128xf32> to vector<1x64x128xf32>
    %5 = arith.mulf %1, %4 : vector<1x64x128xf32>
    %c0_4 = arith.constant 0 : index
    %c0_5 = arith.constant 0 : index
    %6 = vector.load %arg5[%c0_4, %c0_5] : memref<1x128xf32, #tpu.memory_space<vmem>>, vector<1x128xf32>
    %7 = vector.shape_cast %6 : vector<1x128xf32> to vector<1x1x128xf32>
    %8 = vector.broadcast %7 : vector<1x1x128xf32> to vector<1x64x128xf32>
    %9 = arith.addf %5, %8 : vector<1x64x128xf32>
    %c0_6 = arith.constant 0 : index
    %c0_7 = arith.constant 0 : index
    %c0_8 = arith.constant 0 : index
    %10 = vector.load %arg6[%c0_6, %c0_7, %c0_8] : memref<1x64x128xbf16, #tpu.memory_space<vmem>>, vector<1x64x128xbf16>
    %11 = arith.extf %10 : vector<1x64x128xbf16> to vector<1x64x128xf32>
    %c0_9 = arith.constant 0 : index
    %c0_10 = arith.constant 0 : index
    %12 = vector.load %arg7[%c0_9, %c0_10] : memref<1x128xf32, #tpu.memory_space<vmem>>, vector<1x128xf32>
    %13 = vector.shape_cast %12 : vector<1x128xf32> to vector<1x1x128xf32>
    %14 = vector.broadcast %13 : vector<1x1x128xf32> to vector<1x64x128xf32>
    %15 = arith.mulf %11, %14 : vector<1x64x128xf32>
    %c0_11 = arith.constant 0 : index
    %c0_12 = arith.constant 0 : index
    %16 = vector.load %arg8[%c0_11, %c0_12] : memref<1x128xf32, #tpu.memory_space<vmem>>, vector<1x128xf32>
    %17 = vector.shape_cast %16 : vector<1x128xf32> to vector<1x1x128xf32>
    %18 = vector.broadcast %17 : vector<1x1x128xf32> to vector<1x64x128xf32>
    %19 = arith.addf %15, %18 : vector<1x64x128xf32>
    %20 = arith.addf %9, %19 : vector<1x64x128xf32>
    %cst = arith.constant 0.000000e+00 : f32
    %21 = vector.broadcast %cst : f32 to vector<1x64x128xf32>
    %22 = arith.maximumf %20, %21 : vector<1x64x128xf32>
    %c0_13 = arith.constant 0 : index
    %c0_14 = arith.constant 0 : index
    %c0_15 = arith.constant 0 : index
    %23 = vector.load %arg9[%c0_13, %c0_14, %c0_15] : memref<1x64x128xf32, #tpu.memory_space<vmem>>, vector<1x64x128xf32>
    tpu.vector_store %arg9[%c0_13, %c0_14, %c0_15], %22 {strides = array<i32>} : memref<1x64x128xf32, #tpu.memory_space<vmem>>, vector<1x64x128xf32>,
    return
  }
  func.func @transform_0(%arg0: i32, %arg1: i32, %arg2: i32) -> (i32, i32, i32) {
    %c0_i32 = arith.constant 0 : i32
    return %arg0, %arg2, %arg1 : i32, i32, i32
  }
  func.func @transform_1(%arg0: i32, %arg1: i32, %arg2: i32) -> (i32, i32) {
    %c0_i32 = arith.constant 0 : i32
    %c0_i32_0 = arith.constant 0 : i32
    return %c0_i32, %arg1 : i32, i32
  }
  func.func @transform_2(%arg0: i32, %arg1: i32, %arg2: i32) -> (i32, i32) {
    %c0_i32 = arith.constant 0 : i32
    %c0_i32_0 = arith.constant 0 : i32
    return %c0_i32, %arg1 : i32, i32
  }
  func.func @transform_3(%arg0: i32, %arg1: i32, %arg2: i32) -> (i32, i32, i32) {
    %c0_i32 = arith.constant 0 : i32
    return %arg0, %arg2, %arg1 : i32, i32, i32
  }
  func.func @transform_4(%arg0: i32, %arg1: i32, %arg2: i32) -> (i32, i32) {
    %c0_i32 = arith.constant 0 : i32
    %c0_i32_0 = arith.constant 0 : i32
    return %c0_i32, %arg1 : i32, i32
  }
  func.func @transform_5(%arg0: i32, %arg1: i32, %arg2: i32) -> (i32, i32) {
    %c0_i32 = arith.constant 0 : i32
    %c0_i32_0 = arith.constant 0 : i32
    return %c0_i32, %arg1 : i32, i32
  }
  func.func @transform_6(%arg0: i32, %arg1: i32, %arg2: i32) -> (i32, i32, i32) {
    %c0_i32 = arith.constant 0 : i32
    return %arg0, %arg2, %arg1 : i32, i32, i32
  }
}

module attributes {stable_mosaic.version = 11 : i64} {
  func.func @_conv3x3_kernel(%arg0: i32, %arg1: i32, %arg2: memref<1x10x10x128xbf16, #tpu.memory_space<vmem>>, %arg3: memref<9x128x128xbf16, #tpu.memory_space<vmem>>, %arg4: memref<1x64x128xbf16, #tpu.memory_space<vmem>>, %arg5: memref<1x1x128xf32, #tpu.memory_space<vmem>>, %arg6: memref<1x1x128xf32, #tpu.memory_space<vmem>>) attributes {dimension_semantics = [#tpu.dimension_semantics<parallel>, #tpu.dimension_semantics<parallel>], iteration_bounds = array<i64: 1, 2>, scalar_prefetch = 0 : i64, scratch_operands = 0 : i64, tpu.core_type = #tpu.core_type<tc>, window_params = [{transform_indices = @transform_0, window_bounds = array<i64: 1, 10, 10, 128>}, {transform_indices = @transform_1, window_bounds = array<i64: 9, 128, 128>}, {transform_indices = @transform_2, window_bounds = array<i64: 1, 64, 128>}, {transform_indices = @transform_3, window_bounds = array<i64: 1, 1, 128>}, {transform_indices = @transform_4, window_bounds = array<i64: 1, 1, 128>}]} {
    %c0 = arith.constant 0 : index
    %c0_0 = arith.constant 0 : index
    %c0_1 = arith.constant 0 : index
    %c0_2 = arith.constant 0 : index
    %0 = vector.load %arg2[%c0, %c0_0, %c0_1, %c0_2] : memref<1x10x10x128xbf16, #tpu.memory_space<vmem>>, vector<1x8x8x128xbf16>
    %1 = vector.shape_cast %0 : vector<1x8x8x128xbf16> to vector<8x8x128xbf16>
    %2 = vector.shape_cast %1 : vector<8x8x128xbf16> to vector<64x128xbf16>
    %c0_3 = arith.constant 0 : index
    %c0_4 = arith.constant 0 : index
    %c1 = arith.constant 1 : index
    %c0_5 = arith.constant 0 : index
    %3 = vector.load %arg2[%c0_3, %c0_4, %c1, %c0_5] : memref<1x10x10x128xbf16, #tpu.memory_space<vmem>>, vector<1x8x8x128xbf16>
    %4 = vector.shape_cast %3 : vector<1x8x8x128xbf16> to vector<8x8x128xbf16>
    %5 = vector.shape_cast %4 : vector<8x8x128xbf16> to vector<64x128xbf16>
    %c0_6 = arith.constant 0 : index
    %c0_7 = arith.constant 0 : index
    %c2 = arith.constant 2 : index
    %c0_8 = arith.constant 0 : index
    %6 = vector.load %arg2[%c0_6, %c0_7, %c2, %c0_8] : memref<1x10x10x128xbf16, #tpu.memory_space<vmem>>, vector<1x8x8x128xbf16>
    %7 = vector.shape_cast %6 : vector<1x8x8x128xbf16> to vector<8x8x128xbf16>
    %8 = vector.shape_cast %7 : vector<8x8x128xbf16> to vector<64x128xbf16>
    %c0_9 = arith.constant 0 : index
    %c1_10 = arith.constant 1 : index
    %c0_11 = arith.constant 0 : index
    %c0_12 = arith.constant 0 : index
    %9 = vector.load %arg2[%c0_9, %c1_10, %c0_11, %c0_12] : memref<1x10x10x128xbf16, #tpu.memory_space<vmem>>, vector<1x8x8x128xbf16>
    %10 = vector.shape_cast %9 : vector<1x8x8x128xbf16> to vector<8x8x128xbf16>
    %11 = vector.shape_cast %10 : vector<8x8x128xbf16> to vector<64x128xbf16>
    %c0_13 = arith.constant 0 : index
    %c1_14 = arith.constant 1 : index
    %c1_15 = arith.constant 1 : index
    %c0_16 = arith.constant 0 : index
    %12 = vector.load %arg2[%c0_13, %c1_14, %c1_15, %c0_16] : memref<1x10x10x128xbf16, #tpu.memory_space<vmem>>, vector<1x8x8x128xbf16>
    %13 = vector.shape_cast %12 : vector<1x8x8x128xbf16> to vector<8x8x128xbf16>
    %14 = vector.shape_cast %13 : vector<8x8x128xbf16> to vector<64x128xbf16>
    %c0_17 = arith.constant 0 : index
    %c1_18 = arith.constant 1 : index
    %c2_19 = arith.constant 2 : index
    %c0_20 = arith.constant 0 : index
    %15 = vector.load %arg2[%c0_17, %c1_18, %c2_19, %c0_20] : memref<1x10x10x128xbf16, #tpu.memory_space<vmem>>, vector<1x8x8x128xbf16>
    %16 = vector.shape_cast %15 : vector<1x8x8x128xbf16> to vector<8x8x128xbf16>
    %17 = vector.shape_cast %16 : vector<8x8x128xbf16> to vector<64x128xbf16>
    %c0_21 = arith.constant 0 : index
    %c2_22 = arith.constant 2 : index
    %c0_23 = arith.constant 0 : index
    %c0_24 = arith.constant 0 : index
    %18 = vector.load %arg2[%c0_21, %c2_22, %c0_23, %c0_24] : memref<1x10x10x128xbf16, #tpu.memory_space<vmem>>, vector<1x8x8x128xbf16>
    %19 = vector.shape_cast %18 : vector<1x8x8x128xbf16> to vector<8x8x128xbf16>
    %20 = vector.shape_cast %19 : vector<8x8x128xbf16> to vector<64x128xbf16>
    %c0_25 = arith.constant 0 : index
    %c2_26 = arith.constant 2 : index
    %c1_27 = arith.constant 1 : index
    %c0_28 = arith.constant 0 : index
    %21 = vector.load %arg2[%c0_25, %c2_26, %c1_27, %c0_28] : memref<1x10x10x128xbf16, #tpu.memory_space<vmem>>, vector<1x8x8x128xbf16>
    %22 = vector.shape_cast %21 : vector<1x8x8x128xbf16> to vector<8x8x128xbf16>
    %23 = vector.shape_cast %22 : vector<8x8x128xbf16> to vector<64x128xbf16>
    %c0_29 = arith.constant 0 : index
    %c2_30 = arith.constant 2 : index
    %c2_31 = arith.constant 2 : index
    %c0_32 = arith.constant 0 : index
    %24 = vector.load %arg2[%c0_29, %c2_30, %c2_31, %c0_32] : memref<1x10x10x128xbf16, #tpu.memory_space<vmem>>, vector<1x8x8x128xbf16>
    %25 = vector.shape_cast %24 : vector<1x8x8x128xbf16> to vector<8x8x128xbf16>
    %26 = vector.shape_cast %25 : vector<8x8x128xbf16> to vector<64x128xbf16>
    %27 = tpu.concatenate %2, %5, %8, %11, %14, %17, %20, %23, %26 in 1 : vector<64x128xbf16>, vector<64x128xbf16>, vector<64x128xbf16>, vector<64x128xbf16>, vector<64x128xbf16>, vector<64x128xbf16>, vector<64x128xbf16>, vector<64x128xbf16>, vector<64x128xbf16> -> vector<64x1152xbf16>
    %c0_33 = arith.constant 0 : index
    %c0_34 = arith.constant 0 : index
    %c0_35 = arith.constant 0 : index
    %28 = vector.load %arg3[%c0_33, %c0_34, %c0_35] : memref<9x128x128xbf16, #tpu.memory_space<vmem>>, vector<9x128x128xbf16>
    %29 = vector.shape_cast %28 : vector<9x128x128xbf16> to vector<1152x128xbf16>
    %cst = arith.constant dense<0.000000e+00> : vector<64x128xf32>
    %30 = tpu.matmul %27, %29, %cst {dimension_numbers = #tpu.dot_dimension_numbers<[1], [0], [0], [1], [0, 0, 1, 1], [], []>} : vector<64x1152xbf16>, vector<1152x128xbf16>, vector<64x128xf32> -> vector<64x128xf32>
    %31 = arith.truncf %30 : vector<64x128xf32> to vector<64x128xbf16>
    %c0_36 = arith.constant 0 : index
    %c0_37 = arith.constant 0 : index
    %c0_38 = arith.constant 0 : index
    %32 = vector.load %arg4[%c0_36, %c0_37, %c0_38] : memref<1x64x128xbf16, #tpu.memory_space<vmem>>, vector<1x64x128xbf16>
    %33 = vector.shape_cast %32 : vector<1x64x128xbf16> to vector<64x128xbf16>
    %34 = vector.shape_cast %31 : vector<64x128xbf16> to vector<1x64x128xbf16>
    tpu.vector_store %arg4[%c0_36, %c0_37, %c0_38], %34 {strides = array<i32>} : memref<1x64x128xbf16, #tpu.memory_space<vmem>>, vector<1x64x128xbf16>,
    %cst_39 = arith.constant dense<0.000000e+00> : vector<128xf32>
    %35 = vector.multi_reduction <add>, %30, %cst_39 [0] : vector<64x128xf32> to vector<128xf32>
    %36 = vector.shape_cast %35 : vector<128xf32> to vector<1x128xf32>
    %c0_40 = arith.constant 0 : index
    %c0_41 = arith.constant 0 : index
    %c0_42 = arith.constant 0 : index
    %37 = vector.load %arg5[%c0_40, %c0_41, %c0_42] : memref<1x1x128xf32, #tpu.memory_space<vmem>>, vector<1x1x128xf32>
    %38 = vector.shape_cast %37 : vector<1x1x128xf32> to vector<1x128xf32>
    %39 = vector.shape_cast %36 : vector<1x128xf32> to vector<1x1x128xf32>
    tpu.vector_store %arg5[%c0_40, %c0_41, %c0_42], %39 {strides = array<i32>} : memref<1x1x128xf32, #tpu.memory_space<vmem>>, vector<1x1x128xf32>,
    %40 = arith.mulf %30, %30 : vector<64x128xf32>
    %cst_43 = arith.constant dense<0.000000e+00> : vector<128xf32>
    %41 = vector.multi_reduction <add>, %40, %cst_43 [0] : vector<64x128xf32> to vector<128xf32>
    %42 = vector.shape_cast %41 : vector<128xf32> to vector<1x128xf32>
    %c0_44 = arith.constant 0 : index
    %c0_45 = arith.constant 0 : index
    %c0_46 = arith.constant 0 : index
    %43 = vector.load %arg6[%c0_44, %c0_45, %c0_46] : memref<1x1x128xf32, #tpu.memory_space<vmem>>, vector<1x1x128xf32>
    %44 = vector.shape_cast %43 : vector<1x1x128xf32> to vector<1x128xf32>
    %45 = vector.shape_cast %42 : vector<1x128xf32> to vector<1x1x128xf32>
    tpu.vector_store %arg6[%c0_44, %c0_45, %c0_46], %45 {strides = array<i32>} : memref<1x1x128xf32, #tpu.memory_space<vmem>>, vector<1x1x128xf32>,
    return
  }
  func.func @transform_0(%arg0: i32, %arg1: i32) -> (i32, i32, i32, i32) {
    %c0_i32 = arith.constant 0 : i32
    %c0_i32_0 = arith.constant 0 : i32
    %c0_i32_1 = arith.constant 0 : i32
    %c0_i32_2 = arith.constant 0 : i32
    return %arg1, %c0_i32, %c0_i32_0, %c0_i32_1 : i32, i32, i32, i32
  }
  func.func @transform_1(%arg0: i32, %arg1: i32) -> (i32, i32, i32) {
    %c0_i32 = arith.constant 0 : i32
    %c0_i32_0 = arith.constant 0 : i32
    %c0_i32_1 = arith.constant 0 : i32
    return %c0_i32, %c0_i32_0, %arg0 : i32, i32, i32
  }
  func.func @transform_2(%arg0: i32, %arg1: i32) -> (i32, i32, i32) {
    %c0_i32 = arith.constant 0 : i32
    %c0_i32_0 = arith.constant 0 : i32
    return %arg1, %c0_i32, %arg0 : i32, i32, i32
  }
  func.func @transform_3(%arg0: i32, %arg1: i32) -> (i32, i32, i32) {
    %c0_i32 = arith.constant 0 : i32
    %c0_i32_0 = arith.constant 0 : i32
    return %arg1, %c0_i32, %arg0 : i32, i32, i32
  }
  func.func @transform_4(%arg0: i32, %arg1: i32) -> (i32, i32, i32) {
    %c0_i32 = arith.constant 0 : i32
    %c0_i32_0 = arith.constant 0 : i32
    return %arg1, %c0_i32, %arg0 : i32, i32, i32
  }
}

</mosaic_0001>

<llo_original>
// kernel: basic_block_forward.5
$region0: #{basic_block_forward.5}
  #allocation0 [shape = 'u32[]', space=smem, size = 0x4, offset = 0x4, fixed_abs, tag = 'smem constant byte address 0x4 - core index']
  #allocation1 [shape = 'u32[72,128]{1,0:T(1,128)}', space=vmem, size = 0x9000, scoped, tag = 'internal scratch']
  %s0 = inlined_call_operand.vmem [shape: bf16[2,64,128], index: 0, kind: input, shape index: {}]
  %s1 = inlined_call_operand.vmem [shape: f32[1,128], index: 1, kind: input, shape index: {}]
  %s2 = inlined_call_operand.vmem [shape: f32[1,128], index: 2, kind: input, shape index: {}]
  %s3 = inlined_call_operand.vmem [shape: bf16[2,64,128], index: 3, kind: output, shape index: {}]
  %s4 = sld [smem:[#allocation0]]
  $region45: #{basic_block_forward.5} parent=0
    _
  %s6 = ssub.s32 1, %s4
  %s7 = scalar_select 0, %s6, %s4
  loop: start=0, step=1, limit=4
  $region2: #{basic_block_forward.5} parent=0 // loop_pre_header
    _
  $region3: #{basic_block_forward.5} parent=0 // loop_header
    %s9 = sphi 0, %s13
    %p10 = scmp.ge.s32.totalorder %s9, 4
    %s16 = sphi 0, %s35
    %s17 = sphi 0, %s31
    %s18 = sphi 0, %s27
    %s19 = sphi 0, %s16
    %s20 = sphi 0, %s17
    %s21 = sphi 0, %s18
    %s22 = sphi 0, %s19
    %s23 = sphi 0, %s20
    %s24 = sphi 0, %s21
    %s42 = sphi 0, %s44
    %s45 = sphi 0, %s42
    %s46 = sphi 0, %s45
    %s62 = sphi 0, %s46
    %s68 = sphi 0, %s70
    %s71 = sphi 0, %s68
    %s72 = sphi 0, %s71
    %s88 = sphi 0, %s72
    %s94 = sphi 0, %s96
    %s97 = sphi 0, %s94
    %s98 = sphi 0, %s97
    %s114 = sphi 0, %s98
    %s124 = sphi 0, %s126
    %s127 = sphi 0, %s124
    %s128 = sphi 0, %s127
    %s144 = sphi 0, %s128
  $region4: #{basic_block_forward.5} parent=0 // loop_header_branch
    %12 = sbr.rel (%p10) target = $region8
  $region5: #{basic_block_forward.5} parent=0 // loop_body
    %s14 = ssub.s32 %s9, 1
    %s15 = ssub.s32 %s9, 2
    %s25 = sadd.s32 1, %s18
    %p26 = scmp.ge.s32.totalorder %s25, 1
    %s27 = scalar_select %p26, 0, %s25
    %s28 = sadd.s32 1, %s17
    %s29 = scalar_select %p26, %s28, %s17
    %p30 = scmp.ge.s32.totalorder %s29, 1
    %s31 = scalar_select %p30, 0, %s29
    %s32 = sadd.s32 1, %s16
    %s33 = scalar_select %p30, %s32, %s16
    %p34 = scmp.ge.s32.totalorder %s33, 2
    %s35 = scalar_select %p34, 0, %s33
    %s36 = ssub.s32 %s16, %s35
    %s37 = ssub.s32 %s18, %s27
    %s38 = sor.u32 %s36, %s37
    %s39 = ssub.s32 %s17, %s31
    %s40 = sor.u32 %s38, %s39
    %p41 = scmp.eq.s32.totalorder %s40, 0
    %s43 = sadd.s32 %s42, 1
    %s44 = scalar_select %p41, %s42, %s43
    %p47 = pneg %p41
    %p48 = scmp.eq.s32.totalorder %s9, 1
    %p49 = por %p47, %p48
    %p50 = scmp.ne.s32.totalorder %s42, %s45
    %p51 = scmp.eq.s32.totalorder %s9, 0
    %p52 = por %p50, %p51
    %p53 = scmp.ne.s32.totalorder %s42, %s45
    %p54 = scmp.eq.s32.totalorder %s14, 1
    %p55 = por %p53, %p54
    %p56 = scmp.ne.s32.totalorder %s45, %s46
    %p57 = scmp.eq.s32.totalorder %s14, 0
    %p58 = por %p56, %p57
    %p59 = scmp.ne.s32.totalorder %s45, %s46
    %p60 = scmp.eq.s32.totalorder %s15, 1
    %p61 = por %p59, %p60
    %p63 = scmp.ne.s32.totalorder %s46, %s62
    %p64 = scmp.eq.s32.totalorder %s15, 0
    %p65 = por %p63, %p64
    %s66 = ssub.s32 %s17, %s31
    %p67 = scmp.eq.s32.totalorder %s66, 0
    %s69 = sadd.s32 %s68, 1
    %s70 = scalar_select %p67, %s68, %s69
    %p73 = pneg %p67
    %p74 = scmp.eq.s32.totalorder %s9, 1
    %p75 = por %p73, %p74
    %p76 = scmp.ne.s32.totalorder %s68, %s71
    %p77 = scmp.eq.s32.totalorder %s9, 0
    %p78 = por %p76, %p77
    %p79 = scmp.ne.s32.totalorder %s68, %s71
    %p80 = scmp.eq.s32.totalorder %s14, 1
    %p81 = por %p79, %p80
    %p82 = scmp.ne.s32.totalorder %s71, %s72
    %p83 = scmp.eq.s32.totalorder %s14, 0
    %p84 = por %p82, %p83
    %p85 = scmp.ne.s32.totalorder %s71, %s72
    %p86 = scmp.eq.s32.totalorder %s15, 1
    %p87 = por %p85, %p86
    %p89 = scmp.ne.s32.totalorder %s72, %s88
    %p90 = scmp.eq.s32.totalorder %s15, 0
    %p91 = por %p89, %p90
    %s92 = ssub.s32 %s17, %s31
    %p93 = scmp.eq.s32.totalorder %s92, 0
    %s95 = sadd.s32 %s94, 1
    %s96 = scalar_select %p93, %s94, %s95
    %p99 = pneg %p93
    %p100 = scmp.eq.s32.totalorder %s9, 1
    %p101 = por %p99, %p100
    %p102 = scmp.ne.s32.totalorder %s94, %s97
    %p103 = scmp.eq.s32.totalorder %s9, 0
    %p104 = por %p102, %p103
    %p105 = scmp.ne.s32.totalorder %s94, %s97
    %p106 = scmp.eq.s32.totalorder %s14, 1
    %p107 = por %p105, %p106
    %p108 = scmp.ne.s32.totalorder %s97, %s98
    %p109 = scmp.eq.s32.totalorder %s14, 0
    %p110 = por %p108, %p109
    %p111 = scmp.ne.s32.totalorder %s97, %s98
    %p112 = scmp.eq.s32.totalorder %s15, 1
    %p113 = por %p111, %p112
    %p115 = scmp.ne.s32.totalorder %s98, %s114
    %p116 = scmp.eq.s32.totalorder %s15, 0
    %p117 = por %p115, %p116
    %s118 = ssub.s32 %s16, %s35
    %s119 = ssub.s32 %s18, %s27
    %s120 = sor.u32 %s118, %s119
    %s121 = ssub.s32 %s17, %s31
    %s122 = sor.u32 %s120, %s121
    %p123 = scmp.eq.s32.totalorder %s122, 0
    %s125 = sadd.s32 %s124, 1
    %s126 = scalar_select %p123, %s124, %s125
    %p129 = pneg %p123
    %p130 = scmp.eq.s32.totalorder %s9, 1
    %p131 = por %p129, %p130
    %p132 = scmp.ne.s32.totalorder %s124, %s127
    %p133 = scmp.eq.s32.totalorder %s9, 0
    %p134 = por %p132, %p133
    %p135 = scmp.ne.s32.totalorder %s124, %s127
    %p136 = scmp.eq.s32.totalorder %s14, 1
    %p137 = por %p135, %p136
    %p138 = scmp.ne.s32.totalorder %s127, %s128
    %p139 = scmp.eq.s32.totalorder %s14, 0
    %p140 = por %p138, %p139
    %p141 = scmp.ne.s32.totalorder %s127, %s128
    %p142 = scmp.eq.s32.totalorder %s15, 1
    %p143 = por %p141, %p142
    %p145 = scmp.ne.s32.totalorder %s128, %s144
    %p146 = scmp.eq.s32.totalorder %s15, 0
    %p147 = por %p145, %p146
    %p148 = scmp.le.s32.totalorder 1, %s9
    %p149 = scmp.lt.s32.totalorder %s9, 3
    %p150 = pnand %p148, %p149
    %p151 = pneg %p150
    // Predicated region
    $region9: #{basic_block_forward.5} parent=5 // pred_check
      _
    $region10: #{basic_block_forward.5} parent=5 // pred_check_branch
      %153 = sbr.rel (%p150) target = $region12
    $region11: #{basic_block_forward.5} parent=5 // pred_region
      %s154 = ssub.s32 %s9, 1
      // Predicated region
      $region13: #{basic_block_forward.5} parent=11 // pred_check
        %p155 = pneg %p84
      $region14: #{basic_block_forward.5} parent=11 // pred_check_branch
        %157 = sbr.rel (%p155) target = $region16
      $region15: #{basic_block_forward.5} parent=11 // pred_region
        %p158 = scmp.lt.s32.totalorder %s20, 0
        %s159 = scalar_select %p158, %s20, 0
        %s160 = scalar_lea.vmem %s1, %s159
      $region16: #{basic_block_forward.5} parent=11 // pred_fallthru
        _
      // Predicated region
      $region17: #{basic_block_forward.5} parent=11 // pred_check
        %p161 = pneg %p110
      $region18: #{basic_block_forward.5} parent=11 // pred_check_branch
        %163 = sbr.rel (%p161) target = $region20
      $region19: #{basic_block_forward.5} parent=11 // pred_region
        %p164 = scmp.lt.s32.totalorder %s20, 0
        %s165 = scalar_select %p164, %s20, 0
        %s166 = scalar_lea.vmem %s2, %s165
      $region20: #{basic_block_forward.5} parent=11 // pred_fallthru
        _
    $region12: #{basic_block_forward.5} parent=5 // pred_fallthru
      _
    %p167 = scmp.lt.s32.totalorder %s9, 2
    // Predicated region
    $region21: #{basic_block_forward.5} parent=5 // pred_check
      %p168 = pneg %p167
    $region22: #{basic_block_forward.5} parent=5 // pred_check_branch
      %170 = sbr.rel (%p168) target = $region24
    $region23: #{basic_block_forward.5} parent=5 // pred_region
      // Predicated region
      $region25: #{basic_block_forward.5} parent=23 // pred_check
        %p171 = pneg %p52
      $region26: #{basic_block_forward.5} parent=23 // pred_check_branch
        %173 = sbr.rel (%p171) target = $region28
      $region27: #{basic_block_forward.5} parent=23 // pred_region
        %s174 = smul.u32 8, %s18
        %p175 = scmp.lt.s32.totalorder %s16, 1
        %s176 = scalar_select %p175, %s16, 1
        %p177 = scmp.lt.s32.totalorder %s174, 7
        %s178 = scalar_select %p177, %s174, 7
        %p179 = scmp.lt.s32.totalorder %s17, 0
        %s180 = scalar_select %p179, %s17, 0
        %s181 = sadd.s32 %s180, %s178
        %s182 = smul.addr %s176, 8
        %s183 = sadd.s32 %s181, %s182
        %s184 = smul.addr %s183, 4
        %s185 = scalar_lea.vmem %s0, %s184
        %s186 = smul.u32 8, %s18
      $region28: #{basic_block_forward.5} parent=23 // pred_fallthru
        _
    $region24: #{basic_block_forward.5} parent=5 // pred_fallthru
      _
    %p187 = scmp.le.s32.totalorder 1, %s9
    %p188 = scmp.lt.s32.totalorder %s9, 3
    %p189 = pnand %p187, %p188
    %p190 = pneg %p189
    // Predicated region
    $region29: #{basic_block_forward.5} parent=5 // pred_check
      _
    $region30: #{basic_block_forward.5} parent=5 // pred_check_branch
      %192 = sbr.rel (%p189) target = $region32
    $region31: #{basic_block_forward.5} parent=5 // pred_region
      %s193 = ssub.s32 %s9, 1
      %s194 = smul.u32 8, %s21
      %p195 = scmp.lt.s32.totalorder %s19, 1
      %s196 = scalar_select %p195, %s19, 1
      %p197 = scmp.lt.s32.totalorder %s194, 7
      %s198 = scalar_select %p197, %s194, 7
      %p199 = scmp.lt.s32.totalorder %s20, 0
      %s200 = scalar_select %p199, %s20, 0
      %s201 = sadd.s32 %s200, %s198
      %s202 = smul.addr %s196, 8
      %s203 = sadd.s32 %s201, %s202
      %s204 = smul.addr %s203, 4
      %s205 = scalar_lea.vmem %s0, %s204
      %p206 = pneg %p58
      %p207 = pneg %p55
      %p208 = scmp.lt.s32.totalorder %s20, 0
      %s209 = scalar_select %p208, %s20, 0
      %s210 = scalar_lea.vmem %s1, %s209
      %p211 = pneg %p84
      %p212 = pneg %p81
      %p213 = scmp.lt.s32.totalorder %s20, 0
      %s214 = scalar_select %p213, %s20, 0
      %s215 = scalar_lea.vmem %s2, %s214
      %p216 = pneg %p110
      %p217 = pneg %p107
      %p218 = pneg %p140
      %p219 = pneg %p137
      %s220 = smul.u32 8, %s21
      %p221 = scmp.lt.s32.totalorder %s19, 1
      %s222 = scalar_select %p221, %s19, 1
      %p223 = scmp.lt.s32.totalorder %s220, 7
      %s224 = scalar_select %p223, %s220, 7
      %p225 = scmp.lt.s32.totalorder %s20, 0
      %s226 = scalar_select %p225, %s20, 0
      %s227 = sadd.s32 %s226, %s224
      %s228 = smul.addr %s222, 8
      %s229 = sadd.s32 %s227, %s228
      %s230 = smul.addr %s229, 4
      %s231 = scalar_lea.vmem %s3, %s230
      %s232 = smul.u32 8, %s21
      %p233 = scmp.lt.s32.totalorder %s19, 1
      %s234 = scalar_select %p233, %s19, 1
      %p235 = scmp.lt.s32.totalorder %s232, 7
      %s236 = scalar_select %p235, %s232, 7
      %p237 = scmp.lt.s32.totalorder %s20, 0
      %s238 = scalar_select %p237, %s20, 0
      %s239 = sadd.s32 %s238, %s236
      %s240 = smul.addr %s234, 8
      %s241 = sadd.s32 %s239, %s240
      %s242 = smul.addr %s241, 4
      %s243 = scalar_lea.vmem %s0, %s242
      %s244 = smul.u32 8, %s21
      %p245 = scmp.lt.s32.totalorder %s20, 0
      %s246 = scalar_select %p245, %s20, 0
      %s247 = scalar_lea.vmem %s1, %s246
      %p248 = scmp.lt.s32.totalorder %s20, 0
      %s249 = scalar_select %p248, %s20, 0
      %s250 = scalar_lea.vmem %s2, %s249
      %s251 = smul.u32 8, %s21
      %p252 = scmp.lt.s32.totalorder %s19, 1
      %s253 = scalar_select %p252, %s19, 1
      %p254 = scmp.lt.s32.totalorder %s251, 7
      %s255 = scalar_select %p254, %s251, 7
      %p256 = scmp.lt.s32.totalorder %s20, 0
      %s257 = scalar_select %p256, %s20, 0
      %s258 = sadd.s32 %s257, %s255
      %s259 = smul.addr %s253, 8
      %s260 = sadd.s32 %s258, %s259
      %s261 = smul.addr %s260, 4
      %s262 = scalar_lea.vmem %s3, %s261
      %s263 = smul.u32 8, %s21
      %v264 = vld [vmem:[%s243] sm:$0xf]
      %v265 = vld [vmem:[%s243 + $0x4] sm:$0xf]
      %v266 = vld [vmem:[%s243 + $0x8] sm:$0xf]
      %v267 = vld [vmem:[%s243 + $0xc] sm:$0xf]
      %v268 = vld [vmem:[%s243 + $0x10] sm:$0xf]
      %v269 = vld [vmem:[%s243 + $0x14] sm:$0xf]
      %v270 = vld [vmem:[%s243 + $0x18] sm:$0xf]
      %v271 = vld [vmem:[%s243 + $0x1c] sm:$0xf]
      %v272 = vunpack.c.l.bf16 %v264
      %v273 = vunpack.c.l.bf16 %v265
      %v274 = vunpack.c.l.bf16 %v266
      %v275 = vunpack.c.l.bf16 %v267
      %v276 = vunpack.c.l.bf16 %v268
      %v277 = vunpack.c.l.bf16 %v269
      %v278 = vunpack.c.l.bf16 %v270
      %v279 = vunpack.c.l.bf16 %v271
      %v280 = vld [vmem:[%s247] sm:$0x1]
      %v282 = vperm.slane %v280, 0
      %v284 = vmul.f32 %v272, %v282
      %v285 = vmul.f32 %v273, %v282
      %v286 = vmul.f32 %v274, %v282
      %v287 = vmul.f32 %v275, %v282
      %v288 = vmul.f32 %v276, %v282
      %v289 = vmul.f32 %v277, %v282
      %v290 = vmul.f32 %v278, %v282
      %v291 = vmul.f32 %v279, %v282
      %v292 = vld [vmem:[%s250] sm:$0x1]
      %v294 = vperm.slane %v292, 0
      %v296 = vadd.f32 %v284, %v294
      %v297 = vadd.f32 %v285, %v294
      %v298 = vadd.f32 %v286, %v294
      %v299 = vadd.f32 %v287, %v294
      %v300 = vadd.f32 %v288, %v294
      %v301 = vadd.f32 %v289, %v294
      %v302 = vadd.f32 %v290, %v294
      %v303 = vadd.f32 %v291, %v294
      %v304 = vmax.f32 %v296, 0.0
      %v305 = vmax.f32 %v297, 0.0
      %v306 = vmax.f32 %v298, 0.0
      %v307 = vmax.f32 %v299, 0.0
      %v308 = vmax.f32 %v300, 0.0
      %v309 = vmax.f32 %v301, 0.0
      %v310 = vmax.f32 %v302, 0.0
      %v311 = vmax.f32 %v303, 0.0
      %v312 = vpack.c.bf16 %v304, %v304
      %v313 = vpack.c.bf16 %v305, %v305
      %v314 = vpack.c.bf16 %v306, %v306
      %v315 = vpack.c.bf16 %v307, %v307
      %v316 = vpack.c.bf16 %v308, %v308
      %v317 = vpack.c.bf16 %v309, %v309
      %v318 = vpack.c.bf16 %v310, %v310
      %v319 = vpack.c.bf16 %v311, %v311
      %320 = vst [vmem:[%s262] sm:$0xf] %v312
      %321 = vst [vmem:[%s262 + $0x4] sm:$0xf] %v313
      %322 = vst [vmem:[%s262 + $0x8] sm:$0xf] %v314
      %323 = vst [vmem:[%s262 + $0xc] sm:$0xf] %v315
      %324 = vst [vmem:[%s262 + $0x10] sm:$0xf] %v316
      %325 = vst [vmem:[%s262 + $0x14] sm:$0xf] %v317
      %326 = vst [vmem:[%s262 + $0x18] sm:$0xf] %v318
      %327 = vst [vmem:[%s262 + $0x1c] sm:$0xf] %v319
      %s328 = smul.u32 8, %s21
      %p329 = scmp.lt.s32.totalorder %s19, 1
      %s330 = scalar_select %p329, %s19, 1
      %p331 = scmp.lt.s32.totalorder %s328, 7
      %s332 = scalar_select %p331, %s328, 7
      %p333 = scmp.lt.s32.totalorder %s20, 0
      %s334 = scalar_select %p333, %s20, 0
      %s335 = sadd.s32 %s334, %s332
      %s336 = smul.addr %s330, 8
      %s337 = sadd.s32 %s335, %s336
      %s338 = smul.addr %s337, 4
      %s339 = scalar_lea.vmem %s3, %s338
      // Predicated region
      $region33: #{basic_block_forward.5} parent=31 // pred_check
        %p340 = pneg %p137
      $region34: #{basic_block_forward.5} parent=31 // pred_check_branch
        %342 = sbr.rel (%p340) target = $region36
      $region35: #{basic_block_forward.5} parent=31 // pred_region
        %s343 = smul.u32 8, %s21
      $region36: #{basic_block_forward.5} parent=31 // pred_fallthru
        _
    $region32: #{basic_block_forward.5} parent=5 // pred_fallthru
      _
    %p344 = scmp.le.s32.totalorder 2, %s9
    // Predicated region
    $region37: #{basic_block_forward.5} parent=5 // pred_check
      %p345 = pneg %p344
    $region38: #{basic_block_forward.5} parent=5 // pred_check_branch
      %347 = sbr.rel (%p345) target = $region40
    $region39: #{basic_block_forward.5} parent=5 // pred_region
      %s348 = ssub.s32 %s9, 2
      // Predicated region
      $region41: #{basic_block_forward.5} parent=39 // pred_check
        %p349 = pneg %p143
      $region42: #{basic_block_forward.5} parent=39 // pred_check_branch
        %351 = sbr.rel (%p349) target = $region44
      $region43: #{basic_block_forward.5} parent=39 // pred_region
        %s352 = smul.u32 8, %s24
        %p353 = scmp.lt.s32.totalorder %s22, 1
        %s354 = scalar_select %p353, %s22, 1
        %p355 = scmp.lt.s32.totalorder %s352, 7
        %s356 = scalar_select %p355, %s352, 7
        %p357 = scmp.lt.s32.totalorder %s23, 0
        %s358 = scalar_select %p357, %s23, 0
        %s359 = sadd.s32 %s358, %s356
        %s360 = smul.addr %s354, 8
        %s361 = sadd.s32 %s359, %s360
        %s362 = smul.addr %s361, 4
        %s363 = scalar_lea.vmem %s3, %s362
      $region44: #{basic_block_forward.5} parent=39 // pred_fallthru
        _
    $region40: #{basic_block_forward.5} parent=5 // pred_fallthru
      _
  $region6: #{basic_block_forward.5} parent=0 // loop_footer
    %s13 = sadd.s32 1, %s9
  $region7: #{basic_block_forward.5} parent=0 // loop_footer_branch
    %8 = sbr.rel target = $region3
  $region8: #{basic_block_forward.5} parent=0 // loop_exit
    _

// kernel: basic_block_forward.7
$region0: #{basic_block_forward.7}
  #allocation0 [shape = 'u32[]', space=smem, size = 0x4, offset = 0x4, fixed_abs, tag = 'smem constant byte address 0x4 - core index']
  #allocation1 [shape = 'u32[72,128]{1,0:T(1,128)}', space=vmem, size = 0x9000, scoped, tag = 'internal scratch']
  %s0 = inlined_call_operand.vmem [shape: bf16[2,64,128], index: 0, kind: input, shape index: {}]
  %s1 = inlined_call_operand.vmem [shape: f32[1,128], index: 1, kind: input, shape index: {}]
  %s2 = inlined_call_operand.vmem [shape: f32[1,128], index: 2, kind: input, shape index: {}]
  %s3 = inlined_call_operand.vmem [shape: bf16[2,64,128], index: 3, kind: input, shape index: {}]
  %s4 = inlined_call_operand.vmem [shape: f32[1,128], index: 4, kind: input, shape index: {}]
  %s5 = inlined_call_operand.vmem [shape: f32[1,128], index: 5, kind: input, shape index: {}]
  %s6 = inlined_call_operand.vmem [shape: f32[2,64,128], index: 6, kind: output, shape index: {}]
  %s7 = sld [smem:[#allocation0]]
  $region57: #{basic_block_forward.7} parent=0
    _
  %s9 = ssub.s32 1, %s7
  %s10 = scalar_select 0, %s9, %s7
  loop: start=0, step=1, limit=4
  $region2: #{basic_block_forward.7} parent=0 // loop_pre_header
    _
  $region3: #{basic_block_forward.7} parent=0 // loop_header
    %s12 = sphi 0, %s16
    %p13 = scmp.ge.s32.totalorder %s12, 4
    %s19 = sphi 0, %s38
    %s20 = sphi 0, %s34
    %s21 = sphi 0, %s30
    %s22 = sphi 0, %s19
    %s23 = sphi 0, %s20
    %s24 = sphi 0, %s21
    %s25 = sphi 0, %s22
    %s26 = sphi 0, %s23
    %s27 = sphi 0, %s24
    %s45 = sphi 0, %s47
    %s48 = sphi 0, %s45
    %s49 = sphi 0, %s48
    %s65 = sphi 0, %s49
    %s71 = sphi 0, %s73
    %s74 = sphi 0, %s71
    %s75 = sphi 0, %s74
    %s91 = sphi 0, %s75
    %s97 = sphi 0, %s99
    %s100 = sphi 0, %s97
    %s101 = sphi 0, %s100
    %s117 = sphi 0, %s101
    %s127 = sphi 0, %s129
    %s130 = sphi 0, %s127
    %s131 = sphi 0, %s130
    %s147 = sphi 0, %s131
    %s153 = sphi 0, %s155
    %s156 = sphi 0, %s153
    %s157 = sphi 0, %s156
    %s173 = sphi 0, %s157
    %s179 = sphi 0, %s181
    %s182 = sphi 0, %s179
    %s183 = sphi 0, %s182
    %s199 = sphi 0, %s183
    %s209 = sphi 0, %s211
    %s212 = sphi 0, %s209
    %s213 = sphi 0, %s212
    %s229 = sphi 0, %s213
  $region4: #{basic_block_forward.7} parent=0 // loop_header_branch
    %15 = sbr.rel (%p13) target = $region8
  $region5: #{basic_block_forward.7} parent=0 // loop_body
    %s17 = ssub.s32 %s12, 1
    %s18 = ssub.s32 %s12, 2
    %s28 = sadd.s32 1, %s21
    %p29 = scmp.ge.s32.totalorder %s28, 1
    %s30 = scalar_select %p29, 0, %s28
    %s31 = sadd.s32 1, %s20
    %s32 = scalar_select %p29, %s31, %s20
    %p33 = scmp.ge.s32.totalorder %s32, 1
    %s34 = scalar_select %p33, 0, %s32
    %s35 = sadd.s32 1, %s19
    %s36 = scalar_select %p33, %s35, %s19
    %p37 = scmp.ge.s32.totalorder %s36, 2
    %s38 = scalar_select %p37, 0, %s36
    %s39 = ssub.s32 %s19, %s38
    %s40 = ssub.s32 %s21, %s30
    %s41 = sor.u32 %s39, %s40
    %s42 = ssub.s32 %s20, %s34
    %s43 = sor.u32 %s41, %s42
    %p44 = scmp.eq.s32.totalorder %s43, 0
    %s46 = sadd.s32 %s45, 1
    %s47 = scalar_select %p44, %s45, %s46
    %p50 = pneg %p44
    %p51 = scmp.eq.s32.totalorder %s12, 1
    %p52 = por %p50, %p51
    %p53 = scmp.ne.s32.totalorder %s45, %s48
    %p54 = scmp.eq.s32.totalorder %s12, 0
    %p55 = por %p53, %p54
    %p56 = scmp.ne.s32.totalorder %s45, %s48
    %p57 = scmp.eq.s32.totalorder %s17, 1
    %p58 = por %p56, %p57
    %p59 = scmp.ne.s32.totalorder %s48, %s49
    %p60 = scmp.eq.s32.totalorder %s17, 0
    %p61 = por %p59, %p60
    %p62 = scmp.ne.s32.totalorder %s48, %s49
    %p63 = scmp.eq.s32.totalorder %s18, 1
    %p64 = por %p62, %p63
    %p66 = scmp.ne.s32.totalorder %s49, %s65
    %p67 = scmp.eq.s32.totalorder %s18, 0
    %p68 = por %p66, %p67
    %s69 = ssub.s32 %s20, %s34
    %p70 = scmp.eq.s32.totalorder %s69, 0
    %s72 = sadd.s32 %s71, 1
    %s73 = scalar_select %p70, %s71, %s72
    %p76 = pneg %p70
    %p77 = scmp.eq.s32.totalorder %s12, 1
    %p78 = por %p76, %p77
    %p79 = scmp.ne.s32.totalorder %s71, %s74
    %p80 = scmp.eq.s32.totalorder %s12, 0
    %p81 = por %p79, %p80
    %p82 = scmp.ne.s32.totalorder %s71, %s74
    %p83 = scmp.eq.s32.totalorder %s17, 1
    %p84 = por %p82, %p83
    %p85 = scmp.ne.s32.totalorder %s74, %s75
    %p86 = scmp.eq.s32.totalorder %s17, 0
    %p87 = por %p85, %p86
    %p88 = scmp.ne.s32.totalorder %s74, %s75
    %p89 = scmp.eq.s32.totalorder %s18, 1
    %p90 = por %p88, %p89
    %p92 = scmp.ne.s32.totalorder %s75, %s91
    %p93 = scmp.eq.s32.totalorder %s18, 0
    %p94 = por %p92, %p93
    %s95 = ssub.s32 %s20, %s34
    %p96 = scmp.eq.s32.totalorder %s95, 0
    %s98 = sadd.s32 %s97, 1
    %s99 = scalar_select %p96, %s97, %s98
    %p102 = pneg %p96
    %p103 = scmp.eq.s32.totalorder %s12, 1
    %p104 = por %p102, %p103
    %p105 = scmp.ne.s32.totalorder %s97, %s100
    %p106 = scmp.eq.s32.totalorder %s12, 0
    %p107 = por %p105, %p106
    %p108 = scmp.ne.s32.totalorder %s97, %s100
    %p109 = scmp.eq.s32.totalorder %s17, 1
    %p110 = por %p108, %p109
    %p111 = scmp.ne.s32.totalorder %s100, %s101
    %p112 = scmp.eq.s32.totalorder %s17, 0
    %p113 = por %p111, %p112
    %p114 = scmp.ne.s32.totalorder %s100, %s101
    %p115 = scmp.eq.s32.totalorder %s18, 1
    %p116 = por %p114, %p115
    %p118 = scmp.ne.s32.totalorder %s101, %s117
    %p119 = scmp.eq.s32.totalorder %s18, 0
    %p120 = por %p118, %p119
    %s121 = ssub.s32 %s19, %s38
    %s122 = ssub.s32 %s21, %s30
    %s123 = sor.u32 %s121, %s122
    %s124 = ssub.s32 %s20, %s34
    %s125 = sor.u32 %s123, %s124
    %p126 = scmp.eq.s32.totalorder %s125, 0
    %s128 = sadd.s32 %s127, 1
    %s129 = scalar_select %p126, %s127, %s128
    %p132 = pneg %p126
    %p133 = scmp.eq.s32.totalorder %s12, 1
    %p134 = por %p132, %p133
    %p135 = scmp.ne.s32.totalorder %s127, %s130
    %p136 = scmp.eq.s32.totalorder %s12, 0
    %p137 = por %p135, %p136
    %p138 = scmp.ne.s32.totalorder %s127, %s130
    %p139 = scmp.eq.s32.totalorder %s17, 1
    %p140 = por %p138, %p139
    %p141 = scmp.ne.s32.totalorder %s130, %s131
    %p142 = scmp.eq.s32.totalorder %s17, 0
    %p143 = por %p141, %p142
    %p144 = scmp.ne.s32.totalorder %s130, %s131
    %p145 = scmp.eq.s32.totalorder %s18, 1
    %p146 = por %p144, %p145
    %p148 = scmp.ne.s32.totalorder %s131, %s147
    %p149 = scmp.eq.s32.totalorder %s18, 0
    %p150 = por %p148, %p149
    %s151 = ssub.s32 %s20, %s34
    %p152 = scmp.eq.s32.totalorder %s151, 0
    %s154 = sadd.s32 %s153, 1
    %s155 = scalar_select %p152, %s153, %s154
    %p158 = pneg %p152
    %p159 = scmp.eq.s32.totalorder %s12, 1
    %p160 = por %p158, %p159
    %p161 = scmp.ne.s32.totalorder %s153, %s156
    %p162 = scmp.eq.s32.totalorder %s12, 0
    %p163 = por %p161, %p162
    %p164 = scmp.ne.s32.totalorder %s153, %s156
    %p165 = scmp.eq.s32.totalorder %s17, 1
    %p166 = por %p164, %p165
    %p167 = scmp.ne.s32.totalorder %s156, %s157
    %p168 = scmp.eq.s32.totalorder %s17, 0
    %p169 = por %p167, %p168
    %p170 = scmp.ne.s32.totalorder %s156, %s157
    %p171 = scmp.eq.s32.totalorder %s18, 1
    %p172 = por %p170, %p171
    %p174 = scmp.ne.s32.totalorder %s157, %s173
    %p175 = scmp.eq.s32.totalorder %s18, 0
    %p176 = por %p174, %p175
    %s177 = ssub.s32 %s20, %s34
    %p178 = scmp.eq.s32.totalorder %s177, 0
    %s180 = sadd.s32 %s179, 1
    %s181 = scalar_select %p178, %s179, %s180
    %p184 = pneg %p178
    %p185 = scmp.eq.s32.totalorder %s12, 1
    %p186 = por %p184, %p185
    %p187 = scmp.ne.s32.totalorder %s179, %s182
    %p188 = scmp.eq.s32.totalorder %s12, 0
    %p189 = por %p187, %p188
    %p190 = scmp.ne.s32.totalorder %s179, %s182
    %p191 = scmp.eq.s32.totalorder %s17, 1
    %p192 = por %p190, %p191
    %p193 = scmp.ne.s32.totalorder %s182, %s183
    %p194 = scmp.eq.s32.totalorder %s17, 0
    %p195 = por %p193, %p194
    %p196 = scmp.ne.s32.totalorder %s182, %s183
    %p197 = scmp.eq.s32.totalorder %s18, 1
    %p198 = por %p196, %p197
    %p200 = scmp.ne.s32.totalorder %s183, %s199
    %p201 = scmp.eq.s32.totalorder %s18, 0
    %p202 = por %p200, %p201
    %s203 = ssub.s32 %s19, %s38
    %s204 = ssub.s32 %s21, %s30
    %s205 = sor.u32 %s203, %s204
    %s206 = ssub.s32 %s20, %s34
    %s207 = sor.u32 %s205, %s206
    %p208 = scmp.eq.s32.totalorder %s207, 0
    %s210 = sadd.s32 %s209, 1
    %s211 = scalar_select %p208, %s209, %s210
    %p214 = pneg %p208
    %p215 = scmp.eq.s32.totalorder %s12, 1
    %p216 = por %p214, %p215
    %p217 = scmp.ne.s32.totalorder %s209, %s212
    %p218 = scmp.eq.s32.totalorder %s12, 0
    %p219 = por %p217, %p218
    %p220 = scmp.ne.s32.totalorder %s209, %s212
    %p221 = scmp.eq.s32.totalorder %s17, 1
    %p222 = por %p220, %p221
    %p223 = scmp.ne.s32.totalorder %s212, %s213
    %p224 = scmp.eq.s32.totalorder %s17, 0
    %p225 = por %p223, %p224
    %p226 = scmp.ne.s32.totalorder %s212, %s213
    %p227 = scmp.eq.s32.totalorder %s18, 1
    %p228 = por %p226, %p227
    %p230 = scmp.ne.s32.totalorder %s213, %s229
    %p231 = scmp.eq.s32.totalorder %s18, 0
    %p232 = por %p230, %p231
    %p233 = scmp.le.s32.totalorder 1, %s12
    %p234 = scmp.lt.s32.totalorder %s12, 3
    %p235 = pnand %p233, %p234
    %p236 = pneg %p235
    // Predicated region
    $region9: #{basic_block_forward.7} parent=5 // pred_check
      _
    $region10: #{basic_block_forward.7} parent=5 // pred_check_branch
      %238 = sbr.rel (%p235) target = $region12
    $region11: #{basic_block_forward.7} parent=5 // pred_region
      %s239 = ssub.s32 %s12, 1
      // Predicated region
      $region13: #{basic_block_forward.7} parent=11 // pred_check
        %p240 = pneg %p87
      $region14: #{basic_block_forward.7} parent=11 // pred_check_branch
        %242 = sbr.rel (%p240) target = $region16
      $region15: #{basic_block_forward.7} parent=11 // pred_region
        %p243 = scmp.lt.s32.totalorder %s23, 0
        %s244 = scalar_select %p243, %s23, 0
        %s245 = scalar_lea.vmem %s1, %s244
      $region16: #{basic_block_forward.7} parent=11 // pred_fallthru
        _
      // Predicated region
      $region17: #{basic_block_forward.7} parent=11 // pred_check
        %p246 = pneg %p113
      $region18: #{basic_block_forward.7} parent=11 // pred_check_branch
        %248 = sbr.rel (%p246) target = $region20
      $region19: #{basic_block_forward.7} parent=11 // pred_region
        %p249 = scmp.lt.s32.totalorder %s23, 0
        %s250 = scalar_select %p249, %s23, 0
        %s251 = scalar_lea.vmem %s2, %s250
      $region20: #{basic_block_forward.7} parent=11 // pred_fallthru
        _
      // Predicated region
      $region21: #{basic_block_forward.7} parent=11 // pred_check
        %p252 = pneg %p169
      $region22: #{basic_block_forward.7} parent=11 // pred_check_branch
        %254 = sbr.rel (%p252) target = $region24
      $region23: #{basic_block_forward.7} parent=11 // pred_region
        %p255 = scmp.lt.s32.totalorder %s23, 0
        %s256 = scalar_select %p255, %s23, 0
        %s257 = scalar_lea.vmem %s4, %s256
      $region24: #{basic_block_forward.7} parent=11 // pred_fallthru
        _
      // Predicated region
      $region25: #{basic_block_forward.7} parent=11 // pred_check
        %p258 = pneg %p195
      $region26: #{basic_block_forward.7} parent=11 // pred_check_branch
        %260 = sbr.rel (%p258) target = $region28
      $region27: #{basic_block_forward.7} parent=11 // pred_region
        %p261 = scmp.lt.s32.totalorder %s23, 0
        %s262 = scalar_select %p261, %s23, 0
        %s263 = scalar_lea.vmem %s5, %s262
      $region28: #{basic_block_forward.7} parent=11 // pred_fallthru
        _
    $region12: #{basic_block_forward.7} parent=5 // pred_fallthru
      _
    %p264 = scmp.lt.s32.totalorder %s12, 2
    // Predicated region
    $region29: #{basic_block_forward.7} parent=5 // pred_check
      %p265 = pneg %p264
    $region30: #{basic_block_forward.7} parent=5 // pred_check_branch
      %267 = sbr.rel (%p265) target = $region32
    $region31: #{basic_block_forward.7} parent=5 // pred_region
      // Predicated region
      $region33: #{basic_block_forward.7} parent=31 // pred_check
        %p268 = pneg %p55
      $region34: #{basic_block_forward.7} parent=31 // pred_check_branch
        %270 = sbr.rel (%p268) target = $region36
      $region35: #{basic_block_forward.7} parent=31 // pred_region
        %s271 = smul.u32 8, %s21
        %p272 = scmp.lt.s32.totalorder %s19, 1
        %s273 = scalar_select %p272, %s19, 1
        %p274 = scmp.lt.s32.totalorder %s271, 7
        %s275 = scalar_select %p274, %s271, 7
        %p276 = scmp.lt.s32.totalorder %s20, 0
        %s277 = scalar_select %p276, %s20, 0
        %s278 = sadd.s32 %s277, %s275
        %s279 = smul.addr %s273, 8
        %s280 = sadd.s32 %s278, %s279
        %s281 = smul.addr %s280, 4
        %s282 = scalar_lea.vmem %s0, %s281
        %s283 = smul.u32 8, %s21
      $region36: #{basic_block_forward.7} parent=31 // pred_fallthru
        _
      // Predicated region
      $region37: #{basic_block_forward.7} parent=31 // pred_check
        %p284 = pneg %p137
      $region38: #{basic_block_forward.7} parent=31 // pred_check_branch
        %286 = sbr.rel (%p284) target = $region40
      $region39: #{basic_block_forward.7} parent=31 // pred_region
        %s287 = smul.u32 8, %s21
        %p288 = scmp.lt.s32.totalorder %s19, 1
        %s289 = scalar_select %p288, %s19, 1
        %p290 = scmp.lt.s32.totalorder %s287, 7
        %s291 = scalar_select %p290, %s287, 7
        %p292 = scmp.lt.s32.totalorder %s20, 0
        %s293 = scalar_select %p292, %s20, 0
        %s294 = sadd.s32 %s293, %s291
        %s295 = smul.addr %s289, 8
        %s296 = sadd.s32 %s294, %s295
        %s297 = smul.addr %s296, 4
        %s298 = scalar_lea.vmem %s3, %s297
        %s299 = smul.u32 8, %s21
      $region40: #{basic_block_forward.7} parent=31 // pred_fallthru
        _
    $region32: #{basic_block_forward.7} parent=5 // pred_fallthru
      _
    %p300 = scmp.le.s32.totalorder 1, %s12
    %p301 = scmp.lt.s32.totalorder %s12, 3
    %p302 = pnand %p300, %p301
    %p303 = pneg %p302
    // Predicated region
    $region41: #{basic_block_forward.7} parent=5 // pred_check
      _
    $region42: #{basic_block_forward.7} parent=5 // pred_check_branch
      %305 = sbr.rel (%p302) target = $region44
    $region43: #{basic_block_forward.7} parent=5 // pred_region
      %s306 = ssub.s32 %s12, 1
      %s307 = smul.u32 8, %s24
      %p308 = scmp.lt.s32.totalorder %s22, 1
      %s309 = scalar_select %p308, %s22, 1
      %p310 = scmp.lt.s32.totalorder %s307, 7
      %s311 = scalar_select %p310, %s307, 7
      %p312 = scmp.lt.s32.totalorder %s23, 0
      %s313 = scalar_select %p312, %s23, 0
      %s314 = sadd.s32 %s313, %s311
      %s315 = smul.addr %s309, 8
      %s316 = sadd.s32 %s314, %s315
      %s317 = smul.addr %s316, 4
      %s318 = scalar_lea.vmem %s0, %s317
      %p319 = pneg %p61
      %p320 = pneg %p58
      %p321 = scmp.lt.s32.totalorder %s23, 0
      %s322 = scalar_select %p321, %s23, 0
      %s323 = scalar_lea.vmem %s1, %s322
      %p324 = pneg %p87
      %p325 = pneg %p84
      %p326 = scmp.lt.s32.totalorder %s23, 0
      %s327 = scalar_select %p326, %s23, 0
      %s328 = scalar_lea.vmem %s2, %s327
      %p329 = pneg %p113
      %p330 = pneg %p110
      %s331 = smul.u32 8, %s24
      %p332 = scmp.lt.s32.totalorder %s22, 1
      %s333 = scalar_select %p332, %s22, 1
      %p334 = scmp.lt.s32.totalorder %s331, 7
      %s335 = scalar_select %p334, %s331, 7
      %p336 = scmp.lt.s32.totalorder %s23, 0
      %s337 = scalar_select %p336, %s23, 0
      %s338 = sadd.s32 %s337, %s335
      %s339 = smul.addr %s333, 8
      %s340 = sadd.s32 %s338, %s339
      %s341 = smul.addr %s340, 4
      %s342 = scalar_lea.vmem %s3, %s341
      %p343 = pneg %p143
      %p344 = pneg %p140
      %p345 = scmp.lt.s32.totalorder %s23, 0
      %s346 = scalar_select %p345, %s23, 0
      %s347 = scalar_lea.vmem %s4, %s346
      %p348 = pneg %p169
      %p349 = pneg %p166
      %p350 = scmp.lt.s32.totalorder %s23, 0
      %s351 = scalar_select %p350, %s23, 0
      %s352 = scalar_lea.vmem %s5, %s351
      %p353 = pneg %p195
      %p354 = pneg %p192
      %p355 = pneg %p225
      %p356 = pneg %p222
      %s357 = smul.u32 8, %s24
      %p358 = scmp.lt.s32.totalorder %s22, 1
      %s359 = scalar_select %p358, %s22, 1
      %p360 = scmp.lt.s32.totalorder %s357, 7
      %s361 = scalar_select %p360, %s357, 7
      %p362 = scmp.lt.s32.totalorder %s23, 0
      %s363 = scalar_select %p362, %s23, 0
      %s364 = sadd.s32 %s363, %s361
      %s365 = smul.addr %s359, 8
      %s366 = sadd.s32 %s364, %s365
      %s367 = smul.addr %s366, 8
      %s368 = scalar_lea.vmem %s6, %s367
      %s369 = smul.u32 8, %s24
      %p370 = scmp.lt.s32.totalorder %s22, 1
      %s371 = scalar_select %p370, %s22, 1
      %p372 = scmp.lt.s32.totalorder %s369, 7
      %s373 = scalar_select %p372, %s369, 7
      %p374 = scmp.lt.s32.totalorder %s23, 0
      %s375 = scalar_select %p374, %s23, 0
      %s376 = sadd.s32 %s375, %s373
      %s377 = smul.addr %s371, 8
      %s378 = sadd.s32 %s376, %s377
      %s379 = smul.addr %s378, 4
      %s380 = scalar_lea.vmem %s0, %s379
      %s381 = smul.u32 8, %s24
      %p382 = scmp.lt.s32.totalorder %s23, 0
      %s383 = scalar_select %p382, %s23, 0
      %s384 = scalar_lea.vmem %s1, %s383
      %p385 = scmp.lt.s32.totalorder %s23, 0
      %s386 = scalar_select %p385, %s23, 0
      %s387 = scalar_lea.vmem %s2, %s386
      %s388 = smul.u32 8, %s24
      %p389 = scmp.lt.s32.totalorder %s22, 1
      %s390 = scalar_select %p389, %s22, 1
      %p391 = scmp.lt.s32.totalorder %s388, 7
      %s392 = scalar_select %p391, %s388, 7
      %p393 = scmp.lt.s32.totalorder %s23, 0
      %s394 = scalar_select %p393, %s23, 0
      %s395 = sadd.s32 %s394, %s392
      %s396 = smul.addr %s390, 8
      %s397 = sadd.s32 %s395, %s396
      %s398 = smul.addr %s397, 4
      %s399 = scalar_lea.vmem %s3, %s398
      %s400 = smul.u32 8, %s24
      %p401 = scmp.lt.s32.totalorder %s23, 0
      %s402 = scalar_select %p401, %s23, 0
      %s403 = scalar_lea.vmem %s4, %s402
      %p404 = scmp.lt.s32.totalorder %s23, 0
      %s405 = scalar_select %p404, %s23, 0
      %s406 = scalar_lea.vmem %s5, %s405
      %s407 = smul.u32 8, %s24
      %p408 = scmp.lt.s32.totalorder %s22, 1
      %s409 = scalar_select %p408, %s22, 1
      %p410 = scmp.lt.s32.totalorder %s407, 7
      %s411 = scalar_select %p410, %s407, 7
      %p412 = scmp.lt.s32.totalorder %s23, 0
      %s413 = scalar_select %p412, %s23, 0
      %s414 = sadd.s32 %s413, %s411
      %s415 = smul.addr %s409, 8
      %s416 = sadd.s32 %s414, %s415
      %s417 = smul.addr %s416, 8
      %s418 = scalar_lea.vmem %s6, %s417
      %s419 = smul.u32 8, %s24
      %v420 = vld [vmem:[%s380] sm:$0xf]
      %v421 = vld [vmem:[%s380 + $0x4] sm:$0xf]
      %v422 = vld [vmem:[%s380 + $0x8] sm:$0xf]
      %v423 = vld [vmem:[%s380 + $0xc] sm:$0xf]
      %v424 = vld [vmem:[%s380 + $0x10] sm:$0xf]
      %v425 = vld [vmem:[%s380 + $0x14] sm:$0xf]
      %v426 = vld [vmem:[%s380 + $0x18] sm:$0xf]
      %v427 = vld [vmem:[%s380 + $0x1c] sm:$0xf]
      %v428 = vunpack.c.l.bf16 %v420
      %v429 = vunpack.c.l.bf16 %v421
      %v430 = vunpack.c.l.bf16 %v422
      %v431 = vunpack.c.l.bf16 %v423
      %v432 = vunpack.c.l.bf16 %v424
      %v433 = vunpack.c.l.bf16 %v425
      %v434 = vunpack.c.l.bf16 %v426
      %v435 = vunpack.c.l.bf16 %v427
      %v436 = vld [vmem:[%s384] sm:$0x1]
      %v438 = vperm.slane %v436, 0
      %v440 = vmul.f32 %v428, %v438
      %v441 = vmul.f32 %v429, %v438
      %v442 = vmul.f32 %v430, %v438
      %v443 = vmul.f32 %v431, %v438
      %v444 = vmul.f32 %v432, %v438
      %v445 = vmul.f32 %v433, %v438
      %v446 = vmul.f32 %v434, %v438
      %v447 = vmul.f32 %v435, %v438
      %v448 = vld [vmem:[%s387] sm:$0x1]
      %v450 = vperm.slane %v448, 0
      %v452 = vadd.f32 %v440, %v450
      %v453 = vadd.f32 %v441, %v450
      %v454 = vadd.f32 %v442, %v450
      %v455 = vadd.f32 %v443, %v450
      %v456 = vadd.f32 %v444, %v450
      %v457 = vadd.f32 %v445, %v450
      %v458 = vadd.f32 %v446, %v450
      %v459 = vadd.f32 %v447, %v450
      %v460 = vld [vmem:[%s399] sm:$0xf]
      %v461 = vld [vmem:[%s399 + $0x4] sm:$0xf]
      %v462 = vld [vmem:[%s399 + $0x8] sm:$0xf]
      %v463 = vld [vmem:[%s399 + $0xc] sm:$0xf]
      %v464 = vld [vmem:[%s399 + $0x10] sm:$0xf]
      %v465 = vld [vmem:[%s399 + $0x14] sm:$0xf]
      %v466 = vld [vmem:[%s399 + $0x18] sm:$0xf]
      %v467 = vld [vmem:[%s399 + $0x1c] sm:$0xf]
      %v468 = vunpack.c.l.bf16 %v460
      %v469 = vunpack.c.l.bf16 %v461
      %v470 = vunpack.c.l.bf16 %v462
      %v471 = vunpack.c.l.bf16 %v463
      %v472 = vunpack.c.l.bf16 %v464
      %v473 = vunpack.c.l.bf16 %v465
      %v474 = vunpack.c.l.bf16 %v466
      %v475 = vunpack.c.l.bf16 %v467
      %v476 = vld [vmem:[%s403] sm:$0x1]
      %v478 = vperm.slane %v476, 0
      %v480 = vmul.f32 %v468, %v478
      %v481 = vmul.f32 %v469, %v478
      %v482 = vmul.f32 %v470, %v478
      %v483 = vmul.f32 %v471, %v478
      %v484 = vmul.f32 %v472, %v478
      %v485 = vmul.f32 %v473, %v478
      %v486 = vmul.f32 %v474, %v478
      %v487 = vmul.f32 %v475, %v478
      %v488 = vld [vmem:[%s406] sm:$0x1]
      %v490 = vperm.slane %v488, 0
      %v492 = vadd.f32 %v480, %v490
      %v493 = vadd.f32 %v481, %v490
      %v494 = vadd.f32 %v482, %v490
      %v495 = vadd.f32 %v483, %v490
      %v496 = vadd.f32 %v484, %v490
      %v497 = vadd.f32 %v485, %v490
      %v498 = vadd.f32 %v486, %v490
      %v499 = vadd.f32 %v487, %v490
      %v500 = vadd.f32 %v452, %v492
      %v501 = vadd.f32 %v453, %v493
      %v502 = vadd.f32 %v454, %v494
      %v503 = vadd.f32 %v455, %v495
      %v504 = vadd.f32 %v456, %v496
      %v505 = vadd.f32 %v457, %v497
      %v506 = vadd.f32 %v458, %v498
      %v507 = vadd.f32 %v459, %v499
      %v508 = vmax.f32 %v500, 0.0
      %v509 = vmax.f32 %v501, 0.0
      %v510 = vmax.f32 %v502, 0.0
      %v511 = vmax.f32 %v503, 0.0
      %v512 = vmax.f32 %v504, 0.0
      %v513 = vmax.f32 %v505, 0.0
      %v514 = vmax.f32 %v506, 0.0
      %v515 = vmax.f32 %v507, 0.0
      %516 = vst [vmem:[%s418] sm:$0xff] %v508
      %517 = vst [vmem:[%s418 + $0x8] sm:$0xff] %v509
      %518 = vst [vmem:[%s418 + $0x10] sm:$0xff] %v510
      %519 = vst [vmem:[%s418 + $0x18] sm:$0xff] %v511
      %520 = vst [vmem:[%s418 + $0x20] sm:$0xff] %v512
      %521 = vst [vmem:[%s418 + $0x28] sm:$0xff] %v513
      %522 = vst [vmem:[%s418 + $0x30] sm:$0xff] %v514
      %523 = vst [vmem:[%s418 + $0x38] sm:$0xff] %v515
      %s524 = smul.u32 8, %s24
      %p525 = scmp.lt.s32.totalorder %s22, 1
      %s526 = scalar_select %p525, %s22, 1
      %p527 = scmp.lt.s32.totalorder %s524, 7
      %s528 = scalar_select %p527, %s524, 7
      %p529 = scmp.lt.s32.totalorder %s23, 0
      %s530 = scalar_select %p529, %s23, 0
      %s531 = sadd.s32 %s530, %s528
      %s532 = smul.addr %s526, 8
      %s533 = sadd.s32 %s531, %s532
      %s534 = smul.addr %s533, 8
      %s535 = scalar_lea.vmem %s6, %s534
      // Predicated region
      $region45: #{basic_block_forward.7} parent=43 // pred_check
        %p536 = pneg %p222
      $region46: #{basic_block_forward.7} parent=43 // pred_check_branch
        %538 = sbr.rel (%p536) target = $region48
      $region47: #{basic_block_forward.7} parent=43 // pred_region
        %s539 = smul.u32 8, %s24
      $region48: #{basic_block_forward.7} parent=43 // pred_fallthru
        _
    $region44: #{basic_block_forward.7} parent=5 // pred_fallthru
      _
    %p540 = scmp.le.s32.totalorder 2, %s12
    // Predicated region
    $region49: #{basic_block_forward.7} parent=5 // pred_check
      %p541 = pneg %p540
    $region50: #{basic_block_forward.7} parent=5 // pred_check_branch
      %543 = sbr.rel (%p541) target = $region52
    $region51: #{basic_block_forward.7} parent=5 // pred_region
      %s544 = ssub.s32 %s12, 2
      // Predicated region
      $region53: #{basic_block_forward.7} parent=51 // pred_check
        %p545 = pneg %p228
      $region54: #{basic_block_forward.7} parent=51 // pred_check_branch
        %547 = sbr.rel (%p545) target = $region56
      $region55: #{basic_block_forward.7} parent=51 // pred_region
        %s548 = smul.u32 8, %s27
        %p549 = scmp.lt.s32.totalorder %s25, 1
        %s550 = scalar_select %p549, %s25, 1
        %p551 = scmp.lt.s32.totalorder %s548, 7
        %s552 = scalar_select %p551, %s548, 7
        %p553 = scmp.lt.s32.totalorder %s26, 0
        %s554 = scalar_select %p553, %s26, 0
        %s555 = sadd.s32 %s554, %s552
        %s556 = smul.addr %s550, 8
        %s557 = sadd.s32 %s555, %s556
        %s558 = smul.addr %s557, 8
        %s559 = scalar_lea.vmem %s6, %s558
      $region56: #{basic_block_forward.7} parent=51 // pred_fallthru
        _
    $region52: #{basic_block_forward.7} parent=5 // pred_fallthru
      _
  $region6: #{basic_block_forward.7} parent=0 // loop_footer
    %s16 = sadd.s32 1, %s12
  $region7: #{basic_block_forward.7} parent=0 // loop_footer_branch
    %11 = sbr.rel target = $region3
  $region8: #{basic_block_forward.7} parent=0 // loop_exit
    _

// kernel: basic_block_forward.4
$region0: #{basic_block_forward.4}
  #allocation0 [shape = 'u32[]', space=smem, size = 0x4, offset = 0x4, fixed_abs, tag = 'smem constant byte address 0x4 - core index']
  #allocation1 [shape = 'u32[72,128]{1,0:T(1,128)}', space=vmem, size = 0x9000, scoped, tag = 'internal scratch']
  %s0 = inlined_call_operand.vmem [shape: bf16[2,36,9,4], index: 0, kind: input, shape index: {}]
  %s1 = inlined_call_operand.vmem [shape: bf16[9,4,128], index: 1, kind: input, shape index: {}]
  %s2 = inlined_call_operand.vmem [shape: bf16[4,128], index: 2, kind: input, shape index: {}]
  %s3 = inlined_call_operand.vmem [shape: bf16[2,64,128], index: 3, kind: output, shape index: {0}]
  %s4 = inlined_call_operand.vmem [shape: f32[2,1,128], index: 4, kind: output, shape index: {1}]
  %s5 = inlined_call_operand.vmem [shape: f32[2,1,128], index: 5, kind: output, shape index: {2}]
  %s6 = inlined_call_operand.vmem [shape: bf16[2,64,128], index: 6, kind: output, shape index: {3}]
  %s7 = inlined_call_operand.vmem [shape: f32[2,1,128], index: 7, kind: output, shape index: {4}]
  %s8 = inlined_call_operand.vmem [shape: f32[2,1,128], index: 8, kind: output, shape index: {5}]
  %9 = xla_tuple %s3, %s4, %s5, %s6, %s7, %s8
  %s10 = sld [smem:[#allocation0]]
  $region85: #{basic_block_forward.4} parent=0
    _
  %s12 = ssub.s32 1, %s10
  %s13 = scalar_select 0, %s12, %s10
  loop: start=0, step=1, limit=4
  $region2: #{basic_block_forward.4} parent=0 // loop_pre_header
    _
  $region3: #{basic_block_forward.4} parent=0 // loop_header
    %s15 = sphi 0, %s19
    %p16 = scmp.ge.s32.totalorder %s15, 4
    %s22 = sphi 0, %s34
    %s23 = sphi 0, %s30
    %s24 = sphi 0, %s22
    %s25 = sphi 0, %s23
    %s26 = sphi 0, %s24
    %s27 = sphi 0, %s25
    %s37 = sphi 0, %s39
    %s40 = sphi 0, %s37
    %s41 = sphi 0, %s40
    %s57 = sphi 0, %s41
    %s63 = sphi 0, %s65
    %s66 = sphi 0, %s63
    %s67 = sphi 0, %s66
    %s83 = sphi 0, %s67
    %s89 = sphi 0, %s91
    %s92 = sphi 0, %s89
    %s93 = sphi 0, %s92
    %s109 = sphi 0, %s93
    %s117 = sphi 0, %s119
    %s120 = sphi 0, %s117
    %s121 = sphi 0, %s120
    %s137 = sphi 0, %s121
    %s145 = sphi 0, %s147
    %s148 = sphi 0, %s145
    %s149 = sphi 0, %s148
    %s165 = sphi 0, %s149
    %s173 = sphi 0, %s175
    %s176 = sphi 0, %s173
    %s177 = sphi 0, %s176
    %s193 = sphi 0, %s177
    %s201 = sphi 0, %s203
    %s204 = sphi 0, %s201
    %s205 = sphi 0, %s204
    %s221 = sphi 0, %s205
    %s229 = sphi 0, %s231
    %s232 = sphi 0, %s229
    %s233 = sphi 0, %s232
    %s249 = sphi 0, %s233
    %s257 = sphi 0, %s259
    %s260 = sphi 0, %s257
    %s261 = sphi 0, %s260
    %s277 = sphi 0, %s261
  $region4: #{basic_block_forward.4} parent=0 // loop_header_branch
    %18 = sbr.rel (%p16) target = $region8
  $region5: #{basic_block_forward.4} parent=0 // loop_body
    %s20 = ssub.s32 %s15, 1
    %s21 = ssub.s32 %s15, 2
    %s28 = sadd.s32 1, %s23
    %p29 = scmp.ge.s32.totalorder %s28, 2
    %s30 = scalar_select %p29, 0, %s28
    %s31 = sadd.s32 1, %s22
    %s32 = scalar_select %p29, %s31, %s22
    %p33 = scmp.ge.s32.totalorder %s32, 1
    %s34 = scalar_select %p33, 0, %s32
    %s35 = ssub.s32 %s23, %s30
    %p36 = scmp.eq.s32.totalorder %s35, 0
    %s38 = sadd.s32 %s37, 1
    %s39 = scalar_select %p36, %s37, %s38
    %p42 = pneg %p36
    %p43 = scmp.eq.s32.totalorder %s15, 1
    %p44 = por %p42, %p43
    %p45 = scmp.ne.s32.totalorder %s37, %s40
    %p46 = scmp.eq.s32.totalorder %s15, 0
    %p47 = por %p45, %p46
    %p48 = scmp.ne.s32.totalorder %s37, %s40
    %p49 = scmp.eq.s32.totalorder %s20, 1
    %p50 = por %p48, %p49
    %p51 = scmp.ne.s32.totalorder %s40, %s41
    %p52 = scmp.eq.s32.totalorder %s20, 0
    %p53 = por %p51, %p52
    %p54 = scmp.ne.s32.totalorder %s40, %s41
    %p55 = scmp.eq.s32.totalorder %s21, 1
    %p56 = por %p54, %p55
    %p58 = scmp.ne.s32.totalorder %s41, %s57
    %p59 = scmp.eq.s32.totalorder %s21, 0
    %p60 = por %p58, %p59
    %s61 = ssub.s32 %s22, %s34
    %p62 = scmp.eq.s32.totalorder %s61, 0
    %s64 = sadd.s32 %s63, 1
    %s65 = scalar_select %p62, %s63, %s64
    %p68 = pneg %p62
    %p69 = scmp.eq.s32.totalorder %s15, 1
    %p70 = por %p68, %p69
    %p71 = scmp.ne.s32.totalorder %s63, %s66
    %p72 = scmp.eq.s32.totalorder %s15, 0
    %p73 = por %p71, %p72
    %p74 = scmp.ne.s32.totalorder %s63, %s66
    %p75 = scmp.eq.s32.totalorder %s20, 1
    %p76 = por %p74, %p75
    %p77 = scmp.ne.s32.totalorder %s66, %s67
    %p78 = scmp.eq.s32.totalorder %s20, 0
    %p79 = por %p77, %p78
    %p80 = scmp.ne.s32.totalorder %s66, %s67
    %p81 = scmp.eq.s32.totalorder %s21, 1
    %p82 = por %p80, %p81
    %p84 = scmp.ne.s32.totalorder %s67, %s83
    %p85 = scmp.eq.s32.totalorder %s21, 0
    %p86 = por %p84, %p85
    %s87 = ssub.s32 %s22, %s34
    %p88 = scmp.eq.s32.totalorder %s87, 0
    %s90 = sadd.s32 %s89, 1
    %s91 = scalar_select %p88, %s89, %s90
    %p94 = pneg %p88
    %p95 = scmp.eq.s32.totalorder %s15, 1
    %p96 = por %p94, %p95
    %p97 = scmp.ne.s32.totalorder %s89, %s92
    %p98 = scmp.eq.s32.totalorder %s15, 0
    %p99 = por %p97, %p98
    %p100 = scmp.ne.s32.totalorder %s89, %s92
    %p101 = scmp.eq.s32.totalorder %s20, 1
    %p102 = por %p100, %p101
    %p103 = scmp.ne.s32.totalorder %s92, %s93
    %p104 = scmp.eq.s32.totalorder %s20, 0
    %p105 = por %p103, %p104
    %p106 = scmp.ne.s32.totalorder %s92, %s93
    %p107 = scmp.eq.s32.totalorder %s21, 1
    %p108 = por %p106, %p107
    %p110 = scmp.ne.s32.totalorder %s93, %s109
    %p111 = scmp.eq.s32.totalorder %s21, 0
    %p112 = por %p110, %p111
    %s113 = ssub.s32 %s23, %s30
    %s114 = ssub.s32 %s22, %s34
    %s115 = sor.u32 %s113, %s114
    %p116 = scmp.eq.s32.totalorder %s115, 0
    %s118 = sadd.s32 %s117, 1
    %s119 = scalar_select %p116, %s117, %s118
    %p122 = pneg %p116
    %p123 = scmp.eq.s32.totalorder %s15, 1
    %p124 = por %p122, %p123
    %p125 = scmp.ne.s32.totalorder %s117, %s120
    %p126 = scmp.eq.s32.totalorder %s15, 0
    %p127 = por %p125, %p126
    %p128 = scmp.ne.s32.totalorder %s117, %s120
    %p129 = scmp.eq.s32.totalorder %s20, 1
    %p130 = por %p128, %p129
    %p131 = scmp.ne.s32.totalorder %s120, %s121
    %p132 = scmp.eq.s32.totalorder %s20, 0
    %p133 = por %p131, %p132
    %p134 = scmp.ne.s32.totalorder %s120, %s121
    %p135 = scmp.eq.s32.totalorder %s21, 1
    %p136 = por %p134, %p135
    %p138 = scmp.ne.s32.totalorder %s121, %s137
    %p139 = scmp.eq.s32.totalorder %s21, 0
    %p140 = por %p138, %p139
    %s141 = ssub.s32 %s23, %s30
    %s142 = ssub.s32 %s22, %s34
    %s143 = sor.u32 %s141, %s142
    %p144 = scmp.eq.s32.totalorder %s143, 0
    %s146 = sadd.s32 %s145, 1
    %s147 = scalar_select %p144, %s145, %s146
    %p150 = pneg %p144
    %p151 = scmp.eq.s32.totalorder %s15, 1
    %p152 = por %p150, %p151
    %p153 = scmp.ne.s32.totalorder %s145, %s148
    %p154 = scmp.eq.s32.totalorder %s15, 0
    %p155 = por %p153, %p154
    %p156 = scmp.ne.s32.totalorder %s145, %s148
    %p157 = scmp.eq.s32.totalorder %s20, 1
    %p158 = por %p156, %p157
    %p159 = scmp.ne.s32.totalorder %s148, %s149
    %p160 = scmp.eq.s32.totalorder %s20, 0
    %p161 = por %p159, %p160
    %p162 = scmp.ne.s32.totalorder %s148, %s149
    %p163 = scmp.eq.s32.totalorder %s21, 1
    %p164 = por %p162, %p163
    %p166 = scmp.ne.s32.totalorder %s149, %s165
    %p167 = scmp.eq.s32.totalorder %s21, 0
    %p168 = por %p166, %p167
    %s169 = ssub.s32 %s23, %s30
    %s170 = ssub.s32 %s22, %s34
    %s171 = sor.u32 %s169, %s170
    %p172 = scmp.eq.s32.totalorder %s171, 0
    %s174 = sadd.s32 %s173, 1
    %s175 = scalar_select %p172, %s173, %s174
    %p178 = pneg %p172
    %p179 = scmp.eq.s32.totalorder %s15, 1
    %p180 = por %p178, %p179
    %p181 = scmp.ne.s32.totalorder %s173, %s176
    %p182 = scmp.eq.s32.totalorder %s15, 0
    %p183 = por %p181, %p182
    %p184 = scmp.ne.s32.totalorder %s173, %s176
    %p185 = scmp.eq.s32.totalorder %s20, 1
    %p186 = por %p184, %p185
    %p187 = scmp.ne.s32.totalorder %s176, %s177
    %p188 = scmp.eq.s32.totalorder %s20, 0
    %p189 = por %p187, %p188
    %p190 = scmp.ne.s32.totalorder %s176, %s177
    %p191 = scmp.eq.s32.totalorder %s21, 1
    %p192 = por %p190, %p191
    %p194 = scmp.ne.s32.totalorder %s177, %s193
    %p195 = scmp.eq.s32.totalorder %s21, 0
    %p196 = por %p194, %p195
    %s197 = ssub.s32 %s23, %s30
    %s198 = ssub.s32 %s22, %s34
    %s199 = sor.u32 %s197, %s198
    %p200 = scmp.eq.s32.totalorder %s199, 0
    %s202 = sadd.s32 %s201, 1
    %s203 = scalar_select %p200, %s201, %s202
    %p206 = pneg %p200
    %p207 = scmp.eq.s32.totalorder %s15, 1
    %p208 = por %p206, %p207
    %p209 = scmp.ne.s32.totalorder %s201, %s204
    %p210 = scmp.eq.s32.totalorder %s15, 0
    %p211 = por %p209, %p210
    %p212 = scmp.ne.s32.totalorder %s201, %s204
    %p213 = scmp.eq.s32.totalorder %s20, 1
    %p214 = por %p212, %p213
    %p215 = scmp.ne.s32.totalorder %s204, %s205
    %p216 = scmp.eq.s32.totalorder %s20, 0
    %p217 = por %p215, %p216
    %p218 = scmp.ne.s32.totalorder %s204, %s205
    %p219 = scmp.eq.s32.totalorder %s21, 1
    %p220 = por %p218, %p219
    %p222 = scmp.ne.s32.totalorder %s205, %s221
    %p223 = scmp.eq.s32.totalorder %s21, 0
    %p224 = por %p222, %p223
    %s225 = ssub.s32 %s23, %s30
    %s226 = ssub.s32 %s22, %s34
    %s227 = sor.u32 %s225, %s226
    %p228 = scmp.eq.s32.totalorder %s227, 0
    %s230 = sadd.s32 %s229, 1
    %s231 = scalar_select %p228, %s229, %s230
    %p234 = pneg %p228
    %p235 = scmp.eq.s32.totalorder %s15, 1
    %p236 = por %p234, %p235
    %p237 = scmp.ne.s32.totalorder %s229, %s232
    %p238 = scmp.eq.s32.totalorder %s15, 0
    %p239 = por %p237, %p238
    %p240 = scmp.ne.s32.totalorder %s229, %s232
    %p241 = scmp.eq.s32.totalorder %s20, 1
    %p242 = por %p240, %p241
    %p243 = scmp.ne.s32.totalorder %s232, %s233
    %p244 = scmp.eq.s32.totalorder %s20, 0
    %p245 = por %p243, %p244
    %p246 = scmp.ne.s32.totalorder %s232, %s233
    %p247 = scmp.eq.s32.totalorder %s21, 1
    %p248 = por %p246, %p247
    %p250 = scmp.ne.s32.totalorder %s233, %s249
    %p251 = scmp.eq.s32.totalorder %s21, 0
    %p252 = por %p250, %p251
    %s253 = ssub.s32 %s23, %s30
    %s254 = ssub.s32 %s22, %s34
    %s255 = sor.u32 %s253, %s254
    %p256 = scmp.eq.s32.totalorder %s255, 0
    %s258 = sadd.s32 %s257, 1
    %s259 = scalar_select %p256, %s257, %s258
    %p262 = pneg %p256
    %p263 = scmp.eq.s32.totalorder %s15, 1
    %p264 = por %p262, %p263
    %p265 = scmp.ne.s32.totalorder %s257, %s260
    %p266 = scmp.eq.s32.totalorder %s15, 0
    %p267 = por %p265, %p266
    %p268 = scmp.ne.s32.totalorder %s257, %s260
    %p269 = scmp.eq.s32.totalorder %s20, 1
    %p270 = por %p268, %p269
    %p271 = scmp.ne.s32.totalorder %s260, %s261
    %p272 = scmp.eq.s32.totalorder %s20, 0
    %p273 = por %p271, %p272
    %p274 = scmp.ne.s32.totalorder %s260, %s261
    %p275 = scmp.eq.s32.totalorder %s21, 1
    %p276 = por %p274, %p275
    %p278 = scmp.ne.s32.totalorder %s261, %s277
    %p279 = scmp.eq.s32.totalorder %s21, 0
    %p280 = por %p278, %p279
    %p281 = scmp.le.s32.totalorder 1, %s15
    %p282 = scmp.lt.s32.totalorder %s15, 3
    %p283 = pnand %p281, %p282
    %p284 = pneg %p283
    // Predicated region
    $region9: #{basic_block_forward.4} parent=5 // pred_check
      _
    $region10: #{basic_block_forward.4} parent=5 // pred_check_branch
      %286 = sbr.rel (%p283) target = $region12
    $region11: #{basic_block_forward.4} parent=5 // pred_region
      %s287 = ssub.s32 %s15, 1
      // Predicated region
      $region13: #{basic_block_forward.4} parent=11 // pred_check
        %p288 = pneg %p79
      $region14: #{basic_block_forward.4} parent=11 // pred_check_branch
        %290 = sbr.rel (%p288) target = $region16
      $region15: #{basic_block_forward.4} parent=11 // pred_region
        %p291 = scmp.lt.s32.totalorder %s24, 0
        %s292 = scalar_select %p291, %s24, 0
        %s293 = smul.addr %s292, 2
        %s294 = scalar_lea.vmem %s1, %s293
      $region16: #{basic_block_forward.4} parent=11 // pred_fallthru
        _
      // Predicated region
      $region17: #{basic_block_forward.4} parent=11 // pred_check
        %p295 = pneg %p105
      $region18: #{basic_block_forward.4} parent=11 // pred_check_branch
        %297 = sbr.rel (%p295) target = $region20
      $region19: #{basic_block_forward.4} parent=11 // pred_region
        %p298 = scmp.lt.s32.totalorder %s24, 0
        %s299 = scalar_select %p298, %s24, 0
        %s300 = smul.addr %s299, 2
        %s301 = scalar_lea.vmem %s2, %s300
      $region20: #{basic_block_forward.4} parent=11 // pred_fallthru
        _
    $region12: #{basic_block_forward.4} parent=5 // pred_fallthru
      _
    %p302 = scmp.lt.s32.totalorder %s15, 2
    // Predicated region
    $region21: #{basic_block_forward.4} parent=5 // pred_check
      %p303 = pneg %p302
    $region22: #{basic_block_forward.4} parent=5 // pred_check_branch
      %305 = sbr.rel (%p303) target = $region24
    $region23: #{basic_block_forward.4} parent=5 // pred_region
      // Predicated region
      $region25: #{basic_block_forward.4} parent=23 // pred_check
        %p306 = pneg %p47
      $region26: #{basic_block_forward.4} parent=23 // pred_check_branch
        %308 = sbr.rel (%p306) target = $region28
      $region27: #{basic_block_forward.4} parent=23 // pred_region
        %p309 = scmp.lt.s32.totalorder %s23, 1
        %s310 = scalar_select %p309, %s23, 1
        %s311 = smul.addr %s310, 72
        %s312 = smul.addr %s311, 4
        %s313 = scalar_lea.vmem %s0, %s312
      $region28: #{basic_block_forward.4} parent=23 // pred_fallthru
        _
    $region24: #{basic_block_forward.4} parent=5 // pred_fallthru
      _
    %p314 = scmp.le.s32.totalorder 1, %s15
    %p315 = scmp.lt.s32.totalorder %s15, 3
    %p316 = pnand %p314, %p315
    %p317 = pneg %p316
    // Predicated region
    $region29: #{basic_block_forward.4} parent=5 // pred_check
      _
    $region30: #{basic_block_forward.4} parent=5 // pred_check_branch
      %319 = sbr.rel (%p316) target = $region32
    $region31: #{basic_block_forward.4} parent=5 // pred_region
      %s320 = ssub.s32 %s15, 1
      %p321 = scmp.lt.s32.totalorder %s25, 1
      %s322 = scalar_select %p321, %s25, 1
      %s323 = smul.addr %s322, 72
      %s324 = smul.addr %s323, 4
      %s325 = scalar_lea.vmem %s0, %s324
      %p326 = pneg %p53
      %p327 = pneg %p50
      %p328 = scmp.lt.s32.totalorder %s24, 0
      %s329 = scalar_select %p328, %s24, 0
      %s330 = smul.addr %s329, 2
      %s331 = scalar_lea.vmem %s1, %s330
      %p332 = pneg %p79
      %p333 = pneg %p76
      %p334 = scmp.lt.s32.totalorder %s24, 0
      %s335 = scalar_select %p334, %s24, 0
      %s336 = smul.addr %s335, 2
      %s337 = scalar_lea.vmem %s2, %s336
      %p338 = pneg %p105
      %p339 = pneg %p102
      %p340 = pneg %p133
      %p341 = pneg %p130
      %p342 = scmp.lt.s32.totalorder %s25, 1
      %s343 = scalar_select %p342, %s25, 1
      %p344 = scmp.lt.s32.totalorder %s24, 0
      %s345 = scalar_select %p344, %s24, 0
      %s346 = smul.addr %s343, 8
      %s347 = sadd.s32 %s345, %s346
      %s348 = smul.addr %s347, 4
      %s349 = scalar_lea.vmem %s3, %s348
      %p350 = pneg %p161
      %p351 = pneg %p158
      %p352 = scmp.lt.s32.totalorder %s25, 1
      %s353 = scalar_select %p352, %s25, 1
      %p354 = scmp.lt.s32.totalorder %s24, 0
      %s355 = scalar_select %p354, %s24, 0
      %s356 = sadd.s32 %s355, %s353
      %s357 = scalar_lea.vmem %s4, %s356
      %p358 = pneg %p189
      %p359 = pneg %p186
      %p360 = scmp.lt.s32.totalorder %s25, 1
      %s361 = scalar_select %p360, %s25, 1
      %p362 = scmp.lt.s32.totalorder %s24, 0
      %s363 = scalar_select %p362, %s24, 0
      %s364 = sadd.s32 %s363, %s361
      %s365 = scalar_lea.vmem %s5, %s364
      %p366 = pneg %p217
      %p367 = pneg %p214
      %p368 = scmp.lt.s32.totalorder %s25, 1
      %s369 = scalar_select %p368, %s25, 1
      %p370 = scmp.lt.s32.totalorder %s24, 0
      %s371 = scalar_select %p370, %s24, 0
      %s372 = smul.addr %s369, 8
      %s373 = sadd.s32 %s371, %s372
      %s374 = smul.addr %s373, 4
      %s375 = scalar_lea.vmem %s6, %s374
      %p376 = pneg %p245
      %p377 = pneg %p242
      %p378 = scmp.lt.s32.totalorder %s25, 1
      %s379 = scalar_select %p378, %s25, 1
      %p380 = scmp.lt.s32.totalorder %s24, 0
      %s381 = scalar_select %p380, %s24, 0
      %s382 = sadd.s32 %s381, %s379
      %s383 = scalar_lea.vmem %s7, %s382
      %p384 = pneg %p273
      %p385 = pneg %p270
      %p386 = scmp.lt.s32.totalorder %s25, 1
      %s387 = scalar_select %p386, %s25, 1
      %p388 = scmp.lt.s32.totalorder %s24, 0
      %s389 = scalar_select %p388, %s24, 0
      %s390 = sadd.s32 %s389, %s387
      %s391 = scalar_lea.vmem %s8, %s390
      %p392 = scmp.lt.s32.totalorder %s25, 1
      %s393 = scalar_select %p392, %s25, 1
      %s394 = smul.addr %s393, 72
      %s395 = smul.addr %s394, 4
      %s396 = scalar_lea.vmem %s0, %s395
      %p397 = scmp.lt.s32.totalorder %s24, 0
      %s398 = scalar_select %p397, %s24, 0
      %s399 = smul.addr %s398, 2
      %s400 = scalar_lea.vmem %s1, %s399
      %p401 = scmp.lt.s32.totalorder %s24, 0
      %s402 = scalar_select %p401, %s24, 0
      %s403 = smul.addr %s402, 2
      %s404 = scalar_lea.vmem %s2, %s403
      %p405 = scmp.lt.s32.totalorder %s25, 1
      %s406 = scalar_select %p405, %s25, 1
      %p407 = scmp.lt.s32.totalorder %s24, 0
      %s408 = scalar_select %p407, %s24, 0
      %s409 = smul.addr %s406, 8
      %s410 = sadd.s32 %s408, %s409
      %s411 = smul.addr %s410, 4
      %s412 = scalar_lea.vmem %s3, %s411
      %p413 = scmp.lt.s32.totalorder %s25, 1
      %s414 = scalar_select %p413, %s25, 1
      %p415 = scmp.lt.s32.totalorder %s24, 0
      %s416 = scalar_select %p415, %s24, 0
      %s417 = sadd.s32 %s416, %s414
      %s418 = scalar_lea.vmem %s4, %s417
      %p419 = scmp.lt.s32.totalorder %s25, 1
      %s420 = scalar_select %p419, %s25, 1
      %p421 = scmp.lt.s32.totalorder %s24, 0
      %s422 = scalar_select %p421, %s24, 0
      %s423 = sadd.s32 %s422, %s420
      %s424 = scalar_lea.vmem %s5, %s423
      %p425 = scmp.lt.s32.totalorder %s25, 1
      %s426 = scalar_select %p425, %s25, 1
      %p427 = scmp.lt.s32.totalorder %s24, 0
      %s428 = scalar_select %p427, %s24, 0
      %s429 = smul.addr %s426, 8
      %s430 = sadd.s32 %s428, %s429
      %s431 = smul.addr %s430, 4
      %s432 = scalar_lea.vmem %s6, %s431
      %p433 = scmp.lt.s32.totalorder %s25, 1
      %s434 = scalar_select %p433, %s25, 1
      %p435 = scmp.lt.s32.totalorder %s24, 0
      %s436 = scalar_select %p435, %s24, 0
      %s437 = sadd.s32 %s436, %s434
      %s438 = scalar_lea.vmem %s7, %s437
      %p439 = scmp.lt.s32.totalorder %s25, 1
      %s440 = scalar_select %p439, %s25, 1
      %p441 = scmp.lt.s32.totalorder %s24, 0
      %s442 = scalar_select %p441, %s24, 0
      %s443 = sadd.s32 %s442, %s440
      %s444 = scalar_lea.vmem %s8, %s443
      %v446 = vld [vmem:[%s396] sm:$0xf]
      %v447 = vld [vmem:[%s396 + $0x8] sm:$0xf]
      %v448 = vld [vmem:[%s396 + $0x10] sm:$0xf]
      %v449 = vld [vmem:[%s396 + $0x18] sm:$0xf]
      %v450 = vld [vmem:[%s396 + $0x20] sm:$0xf]
      %v451 = vld [vmem:[%s396 + $0x28] sm:$0xf]
      %v452 = vld [vmem:[%s396 + $0x30] sm:$0xf]
      %v453 = vld [vmem:[%s396 + $0x38] sm:$0xf]
      %s454 = scalar_lea.vmem %s396, 72
      %v455 = vld [vmem:[%s454] sm:$0xf]
      %v456 = vld [vmem:[%s454 + $0x8] sm:$0xf]
      %v457 = vld [vmem:[%s454 + $0x10] sm:$0xf]
      %v458 = vld [vmem:[%s454 + $0x18] sm:$0xf]
      %v459 = vld [vmem:[%s454 + $0x20] sm:$0xf]
      %v460 = vld [vmem:[%s454 + $0x28] sm:$0xf]
      %v461 = vld [vmem:[%s454 + $0x30] sm:$0xf]
      %v462 = vld [vmem:[%s454 + $0x38] sm:$0xf]
      %v463 = vld [vmem:[%s396 + $0x4] sm:$0x1]
      %v464 = vld [vmem:[%s396 + $0xc] sm:$0x1]
      %v465 = vld [vmem:[%s396 + $0x14] sm:$0x1]
      %v466 = vld [vmem:[%s396 + $0x1c] sm:$0x1]
      %v467 = vld [vmem:[%s396 + $0x24] sm:$0x1]
      %v468 = vld [vmem:[%s396 + $0x2c] sm:$0x1]
      %v469 = vld [vmem:[%s396 + $0x34] sm:$0x1]
      %v470 = vld [vmem:[%s396 + $0x3c] sm:$0x1]
      %vm471 = vsmask.f32 3328
      %vm472 = vsmask.f32 7440
      %vm473 = vmor %vm471, %vm472
      %v475 = vshrl.u32 %v446, 16
      %v477 = vrot.slane %v475, 4
      %v478 = vshll.u32 %v446, 16
      %v480 = vrot.slane %v478, 5
      %v481 = vor.u32 %v477, %v480
      %v482 = vrot.slane %v481, 4
      %v484 = vshll.u32 %v463, 16
      %v486 = vrot.slane %v484, 5
      %v487 = vsel %vm473, %v482, %v486
      %v489 = vshrl.u32 %v447, 16
      %v491 = vrot.slane %v489, 4
      %v492 = vshll.u32 %v447, 16
      %v494 = vrot.slane %v492, 5
      %v495 = vor.u32 %v491, %v494
      %v496 = vrot.slane %v495, 4
      %v498 = vshll.u32 %v464, 16
      %v500 = vrot.slane %v498, 5
      %v501 = vsel %vm473, %v496, %v500
      %v503 = vshrl.u32 %v448, 16
      %v505 = vrot.slane %v503, 4
      %v506 = vshll.u32 %v448, 16
      %v508 = vrot.slane %v506, 5
      %v509 = vor.u32 %v505, %v508
      %v510 = vrot.slane %v509, 4
      %v512 = vshll.u32 %v465, 16
      %v514 = vrot.slane %v512, 5
      %v515 = vsel %vm473, %v510, %v514
      %v517 = vshrl.u32 %v449, 16
      %v519 = vrot.slane %v517, 4
      %v520 = vshll.u32 %v449, 16
      %v522 = vrot.slane %v520, 5
      %v523 = vor.u32 %v519, %v522
      %v524 = vrot.slane %v523, 4
      %v526 = vshll.u32 %v466, 16
      %v528 = vrot.slane %v526, 5
      %v529 = vsel %vm473, %v524, %v528
      %v531 = vshrl.u32 %v450, 16
      %v533 = vrot.slane %v531, 4
      %v534 = vshll.u32 %v450, 16
      %v536 = vrot.slane %v534, 5
      %v537 = vor.u32 %v533, %v536
      %v538 = vrot.slane %v537, 4
      %v540 = vshll.u32 %v467, 16
      %v542 = vrot.slane %v540, 5
      %v543 = vsel %vm473, %v538, %v542
      %v545 = vshrl.u32 %v451, 16
      %v547 = vrot.slane %v545, 4
      %v548 = vshll.u32 %v451, 16
      %v550 = vrot.slane %v548, 5
      %v551 = vor.u32 %v547, %v550
      %v552 = vrot.slane %v551, 4
      %v554 = vshll.u32 %v468, 16
      %v556 = vrot.slane %v554, 5
      %v557 = vsel %vm473, %v552, %v556
      %v559 = vshrl.u32 %v452, 16
      %v561 = vrot.slane %v559, 4
      %v562 = vshll.u32 %v452, 16
      %v564 = vrot.slane %v562, 5
      %v565 = vor.u32 %v561, %v564
      %v566 = vrot.slane %v565, 4
      %v568 = vshll.u32 %v469, 16
      %v570 = vrot.slane %v568, 5
      %v571 = vsel %vm473, %v566, %v570
      %v573 = vshrl.u32 %v453, 16
      %v575 = vrot.slane %v573, 4
      %v576 = vshll.u32 %v453, 16
      %v578 = vrot.slane %v576, 5
      %v579 = vor.u32 %v575, %v578
      %v580 = vrot.slane %v579, 4
      %v582 = vshll.u32 %v470, 16
      %v584 = vrot.slane %v582, 5
      %v585 = vsel %vm473, %v580, %v584
      %s586 = scalar_lea.vmem %s396, 144
      %v587 = vld [vmem:[%s586] sm:$0xf]
      %v588 = vld [vmem:[%s586 + $0x8] sm:$0xf]
      %v589 = vld [vmem:[%s586 + $0x10] sm:$0xf]
      %v590 = vld [vmem:[%s586 + $0x18] sm:$0xf]
      %v591 = vld [vmem:[%s586 + $0x20] sm:$0xf]
      %v592 = vld [vmem:[%s586 + $0x28] sm:$0xf]
      %v593 = vld [vmem:[%s586 + $0x30] sm:$0xf]
      %v594 = vld [vmem:[%s586 + $0x38] sm:$0xf]
      %s595 = scalar_lea.vmem %s396, 216
      %v596 = vld [vmem:[%s595] sm:$0xf]
      %v597 = vld [vmem:[%s595 + $0x8] sm:$0xf]
      %v598 = vld [vmem:[%s595 + $0x10] sm:$0xf]
      %v599 = vld [vmem:[%s595 + $0x18] sm:$0xf]
      %v600 = vld [vmem:[%s595 + $0x20] sm:$0xf]
      %v601 = vld [vmem:[%s595 + $0x28] sm:$0xf]
      %v602 = vld [vmem:[%s595 + $0x30] sm:$0xf]
      %v603 = vld [vmem:[%s595 + $0x38] sm:$0xf]
      %v604 = vld [vmem:[%s586 + $0x4] sm:$0x1]
      %v605 = vld [vmem:[%s586 + $0xc] sm:$0x1]
      %v606 = vld [vmem:[%s586 + $0x14] sm:$0x1]
      %v607 = vld [vmem:[%s586 + $0x1c] sm:$0x1]
      %v608 = vld [vmem:[%s586 + $0x24] sm:$0x1]
      %v609 = vld [vmem:[%s586 + $0x2c] sm:$0x1]
      %v610 = vld [vmem:[%s586 + $0x34] sm:$0x1]
      %v611 = vld [vmem:[%s586 + $0x3c] sm:$0x1]
      %v613 = vshrl.u32 %v587, 16
      %v615 = vrot.slane %v613, 4
      %v616 = vshll.u32 %v587, 16
      %v618 = vrot.slane %v616, 5
      %v619 = vor.u32 %v615, %v618
      %v620 = vrot.slane %v619, 4
      %v622 = vshll.u32 %v604, 16
      %v624 = vrot.slane %v622, 5
      %v625 = vsel %vm473, %v620, %v624
      %v627 = vshrl.u32 %v588, 16
      %v629 = vrot.slane %v627, 4
      %v630 = vshll.u32 %v588, 16
      %v632 = vrot.slane %v630, 5
      %v633 = vor.u32 %v629, %v632
      %v634 = vrot.slane %v633, 4
      %v636 = vshll.u32 %v605, 16
      %v638 = vrot.slane %v636, 5
      %v639 = vsel %vm473, %v634, %v638
      %v641 = vshrl.u32 %v589, 16
      %v643 = vrot.slane %v641, 4
      %v644 = vshll.u32 %v589, 16
      %v646 = vrot.slane %v644, 5
      %v647 = vor.u32 %v643, %v646
      %v648 = vrot.slane %v647, 4
      %v650 = vshll.u32 %v606, 16
      %v652 = vrot.slane %v650, 5
      %v653 = vsel %vm473, %v648, %v652
      %v655 = vshrl.u32 %v590, 16
      %v657 = vrot.slane %v655, 4
      %v658 = vshll.u32 %v590, 16
      %v660 = vrot.slane %v658, 5
      %v661 = vor.u32 %v657, %v660
      %v662 = vrot.slane %v661, 4
      %v664 = vshll.u32 %v607, 16
      %v666 = vrot.slane %v664, 5
      %v667 = vsel %vm473, %v662, %v666
      %v669 = vshrl.u32 %v591, 16
      %v671 = vrot.slane %v669, 4
      %v672 = vshll.u32 %v591, 16
      %v674 = vrot.slane %v672, 5
      %v675 = vor.u32 %v671, %v674
      %v676 = vrot.slane %v675, 4
      %v678 = vshll.u32 %v608, 16
      %v680 = vrot.slane %v678, 5
      %v681 = vsel %vm473, %v676, %v680
      %v683 = vshrl.u32 %v592, 16
      %v685 = vrot.slane %v683, 4
      %v686 = vshll.u32 %v592, 16
      %v688 = vrot.slane %v686, 5
      %v689 = vor.u32 %v685, %v688
      %v690 = vrot.slane %v689, 4
      %v692 = vshll.u32 %v609, 16
      %v694 = vrot.slane %v692, 5
      %v695 = vsel %vm473, %v690, %v694
      %v697 = vshrl.u32 %v593, 16
      %v699 = vrot.slane %v697, 4
      %v700 = vshll.u32 %v593, 16
      %v702 = vrot.slane %v700, 5
      %v703 = vor.u32 %v699, %v702
      %v704 = vrot.slane %v703, 4
      %v706 = vshll.u32 %v610, 16
      %v708 = vrot.slane %v706, 5
      %v709 = vsel %vm473, %v704, %v708
      %v711 = vshrl.u32 %v594, 16
      %v713 = vrot.slane %v711, 4
      %v714 = vshll.u32 %v594, 16
      %v716 = vrot.slane %v714, 5
      %v717 = vor.u32 %v713, %v716
      %v718 = vrot.slane %v717, 4
      %v720 = vshll.u32 %v611, 16
      %v722 = vrot.slane %v720, 5
      %v723 = vsel %vm473, %v718, %v722
      %s724 = scalar_lea.vmem %s396, 8
      %v725 = vld [vmem:[%s724] sm:$0xf]
      %v726 = vld [vmem:[%s724 + $0x8] sm:$0xf]
      %v727 = vld [vmem:[%s724 + $0x10] sm:$0xf]
      %v728 = vld [vmem:[%s724 + $0x18] sm:$0xf]
      %v729 = vld [vmem:[%s724 + $0x20] sm:$0xf]
      %v730 = vld [vmem:[%s724 + $0x28] sm:$0xf]
      %v731 = vld [vmem:[%s724 + $0x30] sm:$0xf]
      %v732 = vld [vmem:[%s724 + $0x38] sm:$0xf]
      %s733 = scalar_lea.vmem %s396, 80
      %v734 = vld [vmem:[%s733] sm:$0xf]
      %v735 = vld [vmem:[%s733 + $0x8] sm:$0xf]
      %v736 = vld [vmem:[%s733 + $0x10] sm:$0xf]
      %v737 = vld [vmem:[%s733 + $0x18] sm:$0xf]
      %v738 = vld [vmem:[%s733 + $0x20] sm:$0xf]
      %v739 = vld [vmem:[%s733 + $0x28] sm:$0xf]
      %v740 = vld [vmem:[%s733 + $0x30] sm:$0xf]
      %v741 = vld [vmem:[%s733 + $0x38] sm:$0xf]
      %v742 = vld [vmem:[%s724 + $0x4] sm:$0x1]
      %v743 = vld [vmem:[%s724 + $0xc] sm:$0x1]
      %v744 = vld [vmem:[%s724 + $0x14] sm:$0x1]
      %v745 = vld [vmem:[%s724 + $0x1c] sm:$0x1]
      %v746 = vld [vmem:[%s724 + $0x24] sm:$0x1]
      %v747 = vld [vmem:[%s724 + $0x2c] sm:$0x1]
      %v748 = vld [vmem:[%s724 + $0x34] sm:$0x1]
      %v749 = vld [vmem:[%s724 + $0x3c] sm:$0x1]
      %v751 = vshrl.u32 %v725, 16
      %v753 = vrot.slane %v751, 4
      %v754 = vshll.u32 %v725, 16
      %v756 = vrot.slane %v754, 5
      %v757 = vor.u32 %v753, %v756
      %v758 = vrot.slane %v757, 4
      %v760 = vshll.u32 %v742, 16
      %v762 = vrot.slane %v760, 5
      %v763 = vsel %vm473, %v758, %v762
      %v765 = vshrl.u32 %v726, 16
      %v767 = vrot.slane %v765, 4
      %v768 = vshll.u32 %v726, 16
      %v770 = vrot.slane %v768, 5
      %v771 = vor.u32 %v767, %v770
      %v772 = vrot.slane %v771, 4
      %v774 = vshll.u32 %v743, 16
      %v776 = vrot.slane %v774, 5
      %v777 = vsel %vm473, %v772, %v776
      %v779 = vshrl.u32 %v727, 16
      %v781 = vrot.slane %v779, 4
      %v782 = vshll.u32 %v727, 16
      %v784 = vrot.slane %v782, 5
      %v785 = vor.u32 %v781, %v784
      %v786 = vrot.slane %v785, 4
      %v788 = vshll.u32 %v744, 16
      %v790 = vrot.slane %v788, 5
      %v791 = vsel %vm473, %v786, %v790
      %v793 = vshrl.u32 %v728, 16
      %v795 = vrot.slane %v793, 4
      %v796 = vshll.u32 %v728, 16
      %v798 = vrot.slane %v796, 5
      %v799 = vor.u32 %v795, %v798
      %v800 = vrot.slane %v799, 4
      %v802 = vshll.u32 %v745, 16
      %v804 = vrot.slane %v802, 5
      %v805 = vsel %vm473, %v800, %v804
      %v807 = vshrl.u32 %v729, 16
      %v809 = vrot.slane %v807, 4
      %v810 = vshll.u32 %v729, 16
      %v812 = vrot.slane %v810, 5
      %v813 = vor.u32 %v809, %v812
      %v814 = vrot.slane %v813, 4
      %v816 = vshll.u32 %v746, 16
      %v818 = vrot.slane %v816, 5
      %v819 = vsel %vm473, %v814, %v818
      %v821 = vshrl.u32 %v730, 16
      %v823 = vrot.slane %v821, 4
      %v824 = vshll.u32 %v730, 16
      %v826 = vrot.slane %v824, 5
      %v827 = vor.u32 %v823, %v826
      %v828 = vrot.slane %v827, 4
      %v830 = vshll.u32 %v747, 16
      %v832 = vrot.slane %v830, 5
      %v833 = vsel %vm473, %v828, %v832
      %v835 = vshrl.u32 %v731, 16
      %v837 = vrot.slane %v835, 4
      %v838 = vshll.u32 %v731, 16
      %v840 = vrot.slane %v838, 5
      %v841 = vor.u32 %v837, %v840
      %v842 = vrot.slane %v841, 4
      %v844 = vshll.u32 %v748, 16
      %v846 = vrot.slane %v844, 5
      %v847 = vsel %vm473, %v842, %v846
      %v849 = vshrl.u32 %v732, 16
      %v851 = vrot.slane %v849, 4
      %v852 = vshll.u32 %v732, 16
      %v854 = vrot.slane %v852, 5
      %v855 = vor.u32 %v851, %v854
      %v856 = vrot.slane %v855, 4
      %v858 = vshll.u32 %v749, 16
      %v860 = vrot.slane %v858, 5
      %v861 = vsel %vm473, %v856, %v860
      %v862 = vld [vmem:[%s400] sm:$0x3]
      %s863 = scalar_lea.vmem %s400, 2
      %v864 = vld [vmem:[%s863] sm:$0x3]
      %v873 = vunpack.c.l.b16 %v455
      %v874 = vunpack.c.l.b16 %v456
      %v875 = vunpack.c.l.b16 %v457
      %v876 = vunpack.c.l.b16 %v458
      %v877 = vunpack.c.l.b16 %v459
      %v878 = vunpack.c.l.b16 %v460
      %v879 = vunpack.c.l.b16 %v461
      %v880 = vunpack.c.l.b16 %v462
      %v881 = vpack.c.b16 %v874, %v873
      %v882 = vpack.c.b16 %v876, %v875
      %v883 = vpack.c.b16 %v878, %v877
      %v884 = vpack.c.b16 %v880, %v879
      %vm885 = vcmask 31744
      %v887 = vsel %vm885, %v881, 0
      %v890 = vsel %vm885, %v882, 0
      %v893 = vsel %vm885, %v883, 0
      %v896 = vsel %vm885, %v884, 0
      %vm898 = vcmask 1041408
      %v900 = vsel %vm898, %v864, 0
      %902 = vmatpush.bf16.msra.mxu0 0
      %903 = vmatpush.bf16.msra.mxu0 0
      %904 = vmatpush.bf16.msra.mxu0 0
      %905 = vmatpush.bf16.msra.mxu0 0
      %906 = vmatpush.bf16.msra.mxu0 0
      %907 = vmatpush.bf16.msra.mxu0 0
      %908 = vmatpush.bf16.msra.mxu0 0
      %909 = vmatpush.bf16.msra.mxu0 %v900
      %910 = vmatmul.bf16.gmra.mxu0 %v887
      %v911 = vpop.f32.mrf.mxu0
      %v912 = vadd.f32 0.0, %v911
      %v913 = vpop.f32.mrf.mxu0
      %v914 = vadd.f32 0.0, %v913
      %915 = vmatmul.bf16.gmra.mxu0 %v890
      %v916 = vpop.f32.mrf.mxu0
      %v917 = vadd.f32 0.0, %v916
      %v918 = vpop.f32.mrf.mxu0
      %v919 = vadd.f32 0.0, %v918
      %920 = vmatmul.bf16.gmra.mxu0 %v893
      %v921 = vpop.f32.mrf.mxu0
      %v922 = vadd.f32 0.0, %v921
      %v923 = vpop.f32.mrf.mxu0
      %v924 = vadd.f32 0.0, %v923
      %925 = vmatmul.bf16.gmra.mxu0 %v896
      %v926 = vpop.f32.mrf.mxu0
      %v927 = vadd.f32 0.0, %v926
      %v928 = vpop.f32.mrf.mxu0
      %v929 = vadd.f32 0.0, %v928
      %930 = vdwg.mxu0
      %v939 = vunpack.c.l.b16 %v446
      %v940 = vunpack.c.l.b16 %v447
      %v941 = vunpack.c.l.b16 %v448
      %v942 = vunpack.c.l.b16 %v449
      %v943 = vunpack.c.l.b16 %v450
      %v944 = vunpack.c.l.b16 %v451
      %v945 = vunpack.c.l.b16 %v452
      %v946 = vunpack.c.l.b16 %v453
      %v947 = vpack.c.b16 %v940, %v939
      %v948 = vpack.c.b16 %v942, %v941
      %v949 = vpack.c.b16 %v944, %v943
      %v950 = vpack.c.b16 %v946, %v945
      %v952 = vsel %vm885, %v947, 0
      %v955 = vsel %vm885, %v948, 0
      %v958 = vsel %vm885, %v949, 0
      %v961 = vsel %vm885, %v950, 0
      %v964 = vsel %vm898, %v862, 0
      %966 = vmatpush.bf16.msra.mxu0 0
      %967 = vmatpush.bf16.msra.mxu0 0
      %968 = vmatpush.bf16.msra.mxu0 0
      %969 = vmatpush.bf16.msra.mxu0 0
      %970 = vmatpush.bf16.msra.mxu0 0
      %971 = vmatpush.bf16.msra.mxu0 0
      %972 = vmatpush.bf16.msra.mxu0 0
      %973 = vmatpush.bf16.msra.mxu0 %v964
      %974 = vmatmul.bf16.gmra.mxu0 %v952
      %v975 = vpop.f32.mrf.mxu0
      %v976 = vadd.f32 %v912, %v975
      %v977 = vpop.f32.mrf.mxu0
      %v978 = vadd.f32 %v914, %v977
      %979 = vmatmul.bf16.gmra.mxu0 %v955
      %v980 = vpop.f32.mrf.mxu0
      %v981 = vadd.f32 %v917, %v980
      %v982 = vpop.f32.mrf.mxu0
      %v983 = vadd.f32 %v919, %v982
      %984 = vmatmul.bf16.gmra.mxu0 %v958
      %v985 = vpop.f32.mrf.mxu0
      %v986 = vadd.f32 %v922, %v985
      %v987 = vpop.f32.mrf.mxu0
      %v988 = vadd.f32 %v924, %v987
      %989 = vmatmul.bf16.gmra.mxu0 %v961
      %v990 = vpop.f32.mrf.mxu0
      %v991 = vadd.f32 %v927, %v990
      %v992 = vpop.f32.mrf.mxu0
      %v993 = vadd.f32 %v929, %v992
      %994 = vdwg.mxu0
      %s995 = scalar_lea.vmem %s400, 4
      %v996 = vld [vmem:[%s995] sm:$0x3]
      %v997 = vunpack.c.l.b16 %v487
      %v998 = vunpack.c.l.b16 %v501
      %v999 = vunpack.c.l.b16 %v515
      %v1000 = vunpack.c.l.b16 %v529
      %v1001 = vunpack.c.l.b16 %v543
      %v1002 = vunpack.c.l.b16 %v557
      %v1003 = vunpack.c.l.b16 %v571
      %v1004 = vunpack.c.l.b16 %v585
      %v1005 = vpack.c.b16 %v998, %v997
      %v1006 = vpack.c.b16 %v1000, %v999
      %v1007 = vpack.c.b16 %v1002, %v1001
      %v1008 = vpack.c.b16 %v1004, %v1003
      %v1010 = vsel %vm885, %v1005, 0
      %v1013 = vsel %vm885, %v1006, 0
      %v1016 = vsel %vm885, %v1007, 0
      %v1019 = vsel %vm885, %v1008, 0
      %v1022 = vsel %vm898, %v996, 0
      %1024 = vmatpush.bf16.msra.mxu0 0
      %1025 = vmatpush.bf16.msra.mxu0 0
      %1026 = vmatpush.bf16.msra.mxu0 0
      %1027 = vmatpush.bf16.msra.mxu0 0
      %1028 = vmatpush.bf16.msra.mxu0 0
      %1029 = vmatpush.bf16.msra.mxu0 0
      %1030 = vmatpush.bf16.msra.mxu0 0
      %1031 = vmatpush.bf16.msra.mxu0 %v1022
      %1032 = vmatmul.bf16.gmra.mxu0 %v1010
      %v1033 = vpop.f32.mrf.mxu0
      %v1034 = vadd.f32 0.0, %v1033
      %v1035 = vpop.f32.mrf.mxu0
      %v1036 = vadd.f32 0.0, %v1035
      %1037 = vmatmul.bf16.gmra.mxu0 %v1013
      %v1038 = vpop.f32.mrf.mxu0
      %v1039 = vadd.f32 0.0, %v1038
      %v1040 = vpop.f32.mrf.mxu0
      %v1041 = vadd.f32 0.0, %v1040
      %1042 = vmatmul.bf16.gmra.mxu0 %v1016
      %v1043 = vpop.f32.mrf.mxu0
      %v1044 = vadd.f32 0.0, %v1043
      %v1045 = vpop.f32.mrf.mxu0
      %v1046 = vadd.f32 0.0, %v1045
      %1047 = vmatmul.bf16.gmra.mxu0 %v1019
      %v1048 = vpop.f32.mrf.mxu0
      %v1049 = vadd.f32 0.0, %v1048
      %v1050 = vpop.f32.mrf.mxu0
      %v1051 = vadd.f32 0.0, %v1050
      %1052 = vdwg.mxu0
      %v1053 = vadd.f32 %v976, %v1034
      %v1054 = vadd.f32 %v978, %v1036
      %v1055 = vadd.f32 %v981, %v1039
      %v1056 = vadd.f32 %v983, %v1041
      %v1057 = vadd.f32 %v986, %v1044
      %v1058 = vadd.f32 %v988, %v1046
      %v1059 = vadd.f32 %v991, %v1049
      %v1060 = vadd.f32 %v993, %v1051
      %s1061 = scalar_lea.vmem %s400, 6
      %v1062 = vld [vmem:[%s1061] sm:$0x3]
      %v1071 = vunpack.c.l.b16 %v587
      %v1072 = vunpack.c.l.b16 %v588
      %v1073 = vunpack.c.l.b16 %v589
      %v1074 = vunpack.c.l.b16 %v590
      %v1075 = vunpack.c.l.b16 %v591
      %v1076 = vunpack.c.l.b16 %v592
      %v1077 = vunpack.c.l.b16 %v593
      %v1078 = vunpack.c.l.b16 %v594
      %v1079 = vpack.c.b16 %v1072, %v1071
      %v1080 = vpack.c.b16 %v1074, %v1073
      %v1081 = vpack.c.b16 %v1076, %v1075
      %v1082 = vpack.c.b16 %v1078, %v1077
      %v1084 = vsel %vm885, %v1079, 0
      %v1087 = vsel %vm885, %v1080, 0
      %v1090 = vsel %vm885, %v1081, 0
      %v1093 = vsel %vm885, %v1082, 0
      %v1096 = vsel %vm898, %v1062, 0
      %1098 = vmatpush.bf16.msra.mxu0 0
      %1099 = vmatpush.bf16.msra.mxu0 0
      %1100 = vmatpush.bf16.msra.mxu0 0
      %1101 = vmatpush.bf16.msra.mxu0 0
      %1102 = vmatpush.bf16.msra.mxu0 0
      %1103 = vmatpush.bf16.msra.mxu0 0
      %1104 = vmatpush.bf16.msra.mxu0 0
      %1105 = vmatpush.bf16.msra.mxu0 %v1096
      %1106 = vmatmul.bf16.gmra.mxu0 %v1084
      %v1107 = vpop.f32.mrf.mxu0
      %v1108 = vadd.f32 0.0, %v1107
      %v1109 = vpop.f32.mrf.mxu0
      %v1110 = vadd.f32 0.0, %v1109
      %1111 = vmatmul.bf16.gmra.mxu0 %v1087
      %v1112 = vpop.f32.mrf.mxu0
      %v1113 = vadd.f32 0.0, %v1112
      %v1114 = vpop.f32.mrf.mxu0
      %v1115 = vadd.f32 0.0, %v1114
      %1116 = vmatmul.bf16.gmra.mxu0 %v1090
      %v1117 = vpop.f32.mrf.mxu0
      %v1118 = vadd.f32 0.0, %v1117
      %v1119 = vpop.f32.mrf.mxu0
      %v1120 = vadd.f32 0.0, %v1119
      %1121 = vmatmul.bf16.gmra.mxu0 %v1093
      %v1122 = vpop.f32.mrf.mxu0
      %v1123 = vadd.f32 0.0, %v1122
      %v1124 = vpop.f32.mrf.mxu0
      %v1125 = vadd.f32 0.0, %v1124
      %1126 = vdwg.mxu0
      %v1127 = vadd.f32 %v1053, %v1108
      %v1128 = vadd.f32 %v1054, %v1110
      %v1129 = vadd.f32 %v1055, %v1113
      %v1130 = vadd.f32 %v1056, %v1115
      %v1131 = vadd.f32 %v1057, %v1118
      %v1132 = vadd.f32 %v1058, %v1120
      %v1133 = vadd.f32 %v1059, %v1123
      %v1134 = vadd.f32 %v1060, %v1125
      %s1135 = scalar_lea.vmem %s400, 8
      %v1136 = vld [vmem:[%s1135] sm:$0x3]
      %v1145 = vunpack.c.l.b16 %v596
      %v1146 = vunpack.c.l.b16 %v597
      %v1147 = vunpack.c.l.b16 %v598
      %v1148 = vunpack.c.l.b16 %v599
      %v1149 = vunpack.c.l.b16 %v600
      %v1150 = vunpack.c.l.b16 %v601
      %v1151 = vunpack.c.l.b16 %v602
      %v1152 = vunpack.c.l.b16 %v603
      %v1153 = vpack.c.b16 %v1146, %v1145
      %v1154 = vpack.c.b16 %v1148, %v1147
      %v1155 = vpack.c.b16 %v1150, %v1149
      %v1156 = vpack.c.b16 %v1152, %v1151
      %v1158 = vsel %vm885, %v1153, 0
      %v1161 = vsel %vm885, %v1154, 0
      %v1164 = vsel %vm885, %v1155, 0
      %v1167 = vsel %vm885, %v1156, 0
      %v1170 = vsel %vm898, %v1136, 0
      %1172 = vmatpush.bf16.msra.mxu0 0
      %1173 = vmatpush.bf16.msra.mxu0 0
      %1174 = vmatpush.bf16.msra.mxu0 0
      %1175 = vmatpush.bf16.msra.mxu0 0
      %1176 = vmatpush.bf16.msra.mxu0 0
      %1177 = vmatpush.bf16.msra.mxu0 0
      %1178 = vmatpush.bf16.msra.mxu0 0
      %1179 = vmatpush.bf16.msra.mxu0 %v1170
      %1180 = vmatmul.bf16.gmra.mxu0 %v1158
      %v1181 = vpop.f32.mrf.mxu0
      %v1182 = vadd.f32 0.0, %v1181
      %v1183 = vpop.f32.mrf.mxu0
      %v1184 = vadd.f32 0.0, %v1183
      %1185 = vmatmul.bf16.gmra.mxu0 %v1161
      %v1186 = vpop.f32.mrf.mxu0
      %v1187 = vadd.f32 0.0, %v1186
      %v1188 = vpop.f32.mrf.mxu0
      %v1189 = vadd.f32 0.0, %v1188
      %1190 = vmatmul.bf16.gmra.mxu0 %v1164
      %v1191 = vpop.f32.mrf.mxu0
      %v1192 = vadd.f32 0.0, %v1191
      %v1193 = vpop.f32.mrf.mxu0
      %v1194 = vadd.f32 0.0, %v1193
      %1195 = vmatmul.bf16.gmra.mxu0 %v1167
      %v1196 = vpop.f32.mrf.mxu0
      %v1197 = vadd.f32 0.0, %v1196
      %v1198 = vpop.f32.mrf.mxu0
      %v1199 = vadd.f32 0.0, %v1198
      %1200 = vdwg.mxu0
      %v1201 = vadd.f32 %v1127, %v1182
      %v1202 = vadd.f32 %v1128, %v1184
      %v1203 = vadd.f32 %v1129, %v1187
      %v1204 = vadd.f32 %v1130, %v1189
      %v1205 = vadd.f32 %v1131, %v1192
      %v1206 = vadd.f32 %v1132, %v1194
      %v1207 = vadd.f32 %v1133, %v1197
      %v1208 = vadd.f32 %v1134, %v1199
      %s1209 = scalar_lea.vmem %s400, 10
      %v1210 = vld [vmem:[%s1209] sm:$0x3]
      %v1211 = vunpack.c.l.b16 %v625
      %v1212 = vunpack.c.l.b16 %v639
      %v1213 = vunpack.c.l.b16 %v653
      %v1214 = vunpack.c.l.b16 %v667
      %v1215 = vunpack.c.l.b16 %v681
      %v1216 = vunpack.c.l.b16 %v695
      %v1217 = vunpack.c.l.b16 %v709
      %v1218 = vunpack.c.l.b16 %v723
      %v1219 = vpack.c.b16 %v1212, %v1211
      %v1220 = vpack.c.b16 %v1214, %v1213
      %v1221 = vpack.c.b16 %v1216, %v1215
      %v1222 = vpack.c.b16 %v1218, %v1217
      %v1224 = vsel %vm885, %v1219, 0
      %v1227 = vsel %vm885, %v1220, 0
      %v1230 = vsel %vm885, %v1221, 0
      %v1233 = vsel %vm885, %v1222, 0
      %v1236 = vsel %vm898, %v1210, 0
      %1238 = vmatpush.bf16.msra.mxu0 0
      %1239 = vmatpush.bf16.msra.mxu0 0
      %1240 = vmatpush.bf16.msra.mxu0 0
      %1241 = vmatpush.bf16.msra.mxu0 0
      %1242 = vmatpush.bf16.msra.mxu0 0
      %1243 = vmatpush.bf16.msra.mxu0 0
      %1244 = vmatpush.bf16.msra.mxu0 0
      %1245 = vmatpush.bf16.msra.mxu0 %v1236
      %1246 = vmatmul.bf16.gmra.mxu0 %v1224
      %v1247 = vpop.f32.mrf.mxu0
      %v1248 = vadd.f32 0.0, %v1247
      %v1249 = vpop.f32.mrf.mxu0
      %v1250 = vadd.f32 0.0, %v1249
      %1251 = vmatmul.bf16.gmra.mxu0 %v1227
      %v1252 = vpop.f32.mrf.mxu0
      %v1253 = vadd.f32 0.0, %v1252
      %v1254 = vpop.f32.mrf.mxu0
      %v1255 = vadd.f32 0.0, %v1254
      %1256 = vmatmul.bf16.gmra.mxu0 %v1230
      %v1257 = vpop.f32.mrf.mxu0
      %v1258 = vadd.f32 0.0, %v1257
      %v1259 = vpop.f32.mrf.mxu0
      %v1260 = vadd.f32 0.0, %v1259
      %1261 = vmatmul.bf16.gmra.mxu0 %v1233
      %v1262 = vpop.f32.mrf.mxu0
      %v1263 = vadd.f32 0.0, %v1262
      %v1264 = vpop.f32.mrf.mxu0
      %v1265 = vadd.f32 0.0, %v1264
      %1266 = vdwg.mxu0
      %v1267 = vadd.f32 %v1201, %v1248
      %v1268 = vadd.f32 %v1202, %v1250
      %v1269 = vadd.f32 %v1203, %v1253
      %v1270 = vadd.f32 %v1204, %v1255
      %v1271 = vadd.f32 %v1205, %v1258
      %v1272 = vadd.f32 %v1206, %v1260
      %v1273 = vadd.f32 %v1207, %v1263
      %v1274 = vadd.f32 %v1208, %v1265
      %s1275 = scalar_lea.vmem %s400, 12
      %v1276 = vld [vmem:[%s1275] sm:$0x3]
      %v1285 = vunpack.c.l.b16 %v725
      %v1286 = vunpack.c.l.b16 %v726
      %v1287 = vunpack.c.l.b16 %v727
      %v1288 = vunpack.c.l.b16 %v728
      %v1289 = vunpack.c.l.b16 %v729
      %v1290 = vunpack.c.l.b16 %v730
      %v1291 = vunpack.c.l.b16 %v731
      %v1292 = vunpack.c.l.b16 %v732
      %v1293 = vpack.c.b16 %v1286, %v1285
      %v1294 = vpack.c.b16 %v1288, %v1287
      %v1295 = vpack.c.b16 %v1290, %v1289
      %v1296 = vpack.c.b16 %v1292, %v1291
      %v1298 = vsel %vm885, %v1293, 0
      %v1301 = vsel %vm885, %v1294, 0
      %v1304 = vsel %vm885, %v1295, 0
      %v1307 = vsel %vm885, %v1296, 0
      %v1310 = vsel %vm898, %v1276, 0
      %1312 = vmatpush.bf16.msra.mxu0 0
      %1313 = vmatpush.bf16.msra.mxu0 0
      %1314 = vmatpush.bf16.msra.mxu0 0
      %1315 = vmatpush.bf16.msra.mxu0 0
      %1316 = vmatpush.bf16.msra.mxu0 0
      %1317 = vmatpush.bf16.msra.mxu0 0
      %1318 = vmatpush.bf16.msra.mxu0 0
      %1319 = vmatpush.bf16.msra.mxu0 %v1310
      %1320 = vmatmul.bf16.gmra.mxu0 %v1298
      %v1321 = vpop.f32.mrf.mxu0
      %v1322 = vadd.f32 0.0, %v1321
      %v1323 = vpop.f32.mrf.mxu0
      %v1324 = vadd.f32 0.0, %v1323
      %1325 = vmatmul.bf16.gmra.mxu0 %v1301
      %v1326 = vpop.f32.mrf.mxu0
      %v1327 = vadd.f32 0.0, %v1326
      %v1328 = vpop.f32.mrf.mxu0
      %v1329 = vadd.f32 0.0, %v1328
      %1330 = vmatmul.bf16.gmra.mxu0 %v1304
      %v1331 = vpop.f32.mrf.mxu0
      %v1332 = vadd.f32 0.0, %v1331
      %v1333 = vpop.f32.mrf.mxu0
      %v1334 = vadd.f32 0.0, %v1333
      %1335 = vmatmul.bf16.gmra.mxu0 %v1307
      %v1336 = vpop.f32.mrf.mxu0
      %v1337 = vadd.f32 0.0, %v1336
      %v1338 = vpop.f32.mrf.mxu0
      %v1339 = vadd.f32 0.0, %v1338
      %1340 = vdwg.mxu0
      %v1341 = vadd.f32 %v1267, %v1322
      %v1342 = vadd.f32 %v1268, %v1324
      %v1343 = vadd.f32 %v1269, %v1327
      %v1344 = vadd.f32 %v1270, %v1329
      %v1345 = vadd.f32 %v1271, %v1332
      %v1346 = vadd.f32 %v1272, %v1334
      %v1347 = vadd.f32 %v1273, %v1337
      %v1348 = vadd.f32 %v1274, %v1339
      %s1349 = scalar_lea.vmem %s400, 14
      %v1350 = vld [vmem:[%s1349] sm:$0x3]
      %v1359 = vunpack.c.l.b16 %v734
      %v1360 = vunpack.c.l.b16 %v735
      %v1361 = vunpack.c.l.b16 %v736
      %v1362 = vunpack.c.l.b16 %v737
      %v1363 = vunpack.c.l.b16 %v738
      %v1364 = vunpack.c.l.b16 %v739
      %v1365 = vunpack.c.l.b16 %v740
      %v1366 = vunpack.c.l.b16 %v741
      %v1367 = vpack.c.b16 %v1360, %v1359
      %v1368 = vpack.c.b16 %v1362, %v1361
      %v1369 = vpack.c.b16 %v1364, %v1363
      %v1370 = vpack.c.b16 %v1366, %v1365
      %v1372 = vsel %vm885, %v1367, 0
      %v1375 = vsel %vm885, %v1368, 0
      %v1378 = vsel %vm885, %v1369, 0
      %v1381 = vsel %vm885, %v1370, 0
      %v1384 = vsel %vm898, %v1350, 0
      %1386 = vmatpush.bf16.msra.mxu0 0
      %1387 = vmatpush.bf16.msra.mxu0 0
      %1388 = vmatpush.bf16.msra.mxu0 0
      %1389 = vmatpush.bf16.msra.mxu0 0
      %1390 = vmatpush.bf16.msra.mxu0 0
      %1391 = vmatpush.bf16.msra.mxu0 0
      %1392 = vmatpush.bf16.msra.mxu0 0
      %1393 = vmatpush.bf16.msra.mxu0 %v1384
      %1394 = vmatmul.bf16.gmra.mxu0 %v1372
      %v1395 = vpop.f32.mrf.mxu0
      %v1396 = vadd.f32 0.0, %v1395
      %v1397 = vpop.f32.mrf.mxu0
      %v1398 = vadd.f32 0.0, %v1397
      %1399 = vmatmul.bf16.gmra.mxu0 %v1375
      %v1400 = vpop.f32.mrf.mxu0
      %v1401 = vadd.f32 0.0, %v1400
      %v1402 = vpop.f32.mrf.mxu0
      %v1403 = vadd.f32 0.0, %v1402
      %1404 = vmatmul.bf16.gmra.mxu0 %v1378
      %v1405 = vpop.f32.mrf.mxu0
      %v1406 = vadd.f32 0.0, %v1405
      %v1407 = vpop.f32.mrf.mxu0
      %v1408 = vadd.f32 0.0, %v1407
      %1409 = vmatmul.bf16.gmra.mxu0 %v1381
      %v1410 = vpop.f32.mrf.mxu0
      %v1411 = vadd.f32 0.0, %v1410
      %v1412 = vpop.f32.mrf.mxu0
      %v1413 = vadd.f32 0.0, %v1412
      %1414 = vdwg.mxu0
      %v1415 = vadd.f32 %v1341, %v1396
      %v1416 = vadd.f32 %v1342, %v1398
      %v1417 = vadd.f32 %v1343, %v1401
      %v1418 = vadd.f32 %v1344, %v1403
      %v1419 = vadd.f32 %v1345, %v1406
      %v1420 = vadd.f32 %v1346, %v1408
      %v1421 = vadd.f32 %v1347, %v1411
      %v1422 = vadd.f32 %v1348, %v1413
      %s1423 = scalar_lea.vmem %s400, 16
      %v1424 = vld [vmem:[%s1423] sm:$0x3]
      %v1425 = vunpack.c.l.b16 %v763
      %v1426 = vunpack.c.l.b16 %v777
      %v1427 = vunpack.c.l.b16 %v791
      %v1428 = vunpack.c.l.b16 %v805
      %v1429 = vunpack.c.l.b16 %v819
      %v1430 = vunpack.c.l.b16 %v833
      %v1431 = vunpack.c.l.b16 %v847
      %v1432 = vunpack.c.l.b16 %v861
      %v1433 = vpack.c.b16 %v1426, %v1425
      %v1434 = vpack.c.b16 %v1428, %v1427
      %v1435 = vpack.c.b16 %v1430, %v1429
      %v1436 = vpack.c.b16 %v1432, %v1431
      %v1438 = vsel %vm885, %v1433, 0
      %v1441 = vsel %vm885, %v1434, 0
      %v1444 = vsel %vm885, %v1435, 0
      %v1447 = vsel %vm885, %v1436, 0
      %v1450 = vsel %vm898, %v1424, 0
      %1452 = vmatpush.bf16.msra.mxu0 0
      %1453 = vmatpush.bf16.msra.mxu0 0
      %1454 = vmatpush.bf16.msra.mxu0 0
      %1455 = vmatpush.bf16.msra.mxu0 0
      %1456 = vmatpush.bf16.msra.mxu0 0
      %1457 = vmatpush.bf16.msra.mxu0 0
      %1458 = vmatpush.bf16.msra.mxu0 0
      %1459 = vmatpush.bf16.msra.mxu0 %v1450
      %1460 = vmatmul.bf16.gmra.mxu0 %v1438
      %v1461 = vpop.f32.mrf.mxu0
      %v1462 = vadd.f32 0.0, %v1461
      %v1463 = vpop.f32.mrf.mxu0
      %v1464 = vadd.f32 0.0, %v1463
      %1465 = vmatmul.bf16.gmra.mxu0 %v1441
      %v1466 = vpop.f32.mrf.mxu0
      %v1467 = vadd.f32 0.0, %v1466
      %v1468 = vpop.f32.mrf.mxu0
      %v1469 = vadd.f32 0.0, %v1468
      %1470 = vmatmul.bf16.gmra.mxu0 %v1444
      %v1471 = vpop.f32.mrf.mxu0
      %v1472 = vadd.f32 0.0, %v1471
      %v1473 = vpop.f32.mrf.mxu0
      %v1474 = vadd.f32 0.0, %v1473
      %1475 = vmatmul.bf16.gmra.mxu0 %v1447
      %v1476 = vpop.f32.mrf.mxu0
      %v1477 = vadd.f32 0.0, %v1476
      %v1478 = vpop.f32.mrf.mxu0
      %v1479 = vadd.f32 0.0, %v1478
      %1480 = vdwg.mxu0
      %v1481 = vadd.f32 %v1415, %v1462
      %v1482 = vadd.f32 %v1416, %v1464
      %v1483 = vadd.f32 %v1417, %v1467
      %v1484 = vadd.f32 %v1418, %v1469
      %v1485 = vadd.f32 %v1419, %v1472
      %v1486 = vadd.f32 %v1420, %v1474
      %v1487 = vadd.f32 %v1421, %v1477
      %v1488 = vadd.f32 %v1422, %v1479
      %v1489 = vpack.c.bf16 %v1481, %v1481
      %v1490 = vpack.c.bf16 %v1482, %v1482
      %v1491 = vpack.c.bf16 %v1483, %v1483
      %v1492 = vpack.c.bf16 %v1484, %v1484
      %v1493 = vpack.c.bf16 %v1485, %v1485
      %v1494 = vpack.c.bf16 %v1486, %v1486
      %v1495 = vpack.c.bf16 %v1487, %v1487
      %v1496 = vpack.c.bf16 %v1488, %v1488
      %1497 = vst [vmem:[%s412] sm:$0xf] %v1489
      %1498 = vst [vmem:[%s412 + $0x4] sm:$0xf] %v1490
      %1499 = vst [vmem:[%s412 + $0x8] sm:$0xf] %v1491
      %1500 = vst [vmem:[%s412 + $0xc] sm:$0xf] %v1492
      %1501 = vst [vmem:[%s412 + $0x10] sm:$0xf] %v1493
      %1502 = vst [vmem:[%s412 + $0x14] sm:$0xf] %v1494
      %1503 = vst [vmem:[%s412 + $0x18] sm:$0xf] %v1495
      %1504 = vst [vmem:[%s412 + $0x1c] sm:$0xf] %v1496
      %v1505 = vadd.f32 %v1481, %v1482
      %v1506 = vadd.f32 %v1505, %v1483
      %v1507 = vadd.f32 %v1506, %v1484
      %v1508 = vadd.f32 %v1507, %v1485
      %v1509 = vadd.f32 %v1508, %v1486
      %v1510 = vadd.f32 %v1509, %v1487
      %v1511 = vadd.f32 %v1510, %v1488
      %v1512 = vrot.slane %v1511, 4
      %v1513 = vadd.f32 %v1511, %v1512
      %v1514 = vrot.slane %v1513, 2
      %v1515 = vadd.f32 %v1513, %v1514
      %v1516 = vrot.slane %v1515, 1
      %v1517 = vadd.f32 %v1515, %v1516
      %1518 = vst [vmem:[%s418] sm:$0x1] %v1517
      %v1519 = vmul.f32 %v1481, %v1481
      %v1520 = vmul.f32 %v1482, %v1482
      %v1521 = vmul.f32 %v1483, %v1483
      %v1522 = vmul.f32 %v1484, %v1484
      %v1523 = vmul.f32 %v1485, %v1485
      %v1524 = vmul.f32 %v1486, %v1486
      %v1525 = vmul.f32 %v1487, %v1487
      %v1526 = vmul.f32 %v1488, %v1488
      %v1527 = vadd.f32 %v1519, %v1520
      %v1528 = vadd.f32 %v1527, %v1521
      %v1529 = vadd.f32 %v1528, %v1522
      %v1530 = vadd.f32 %v1529, %v1523
      %v1531 = vadd.f32 %v1530, %v1524
      %v1532 = vadd.f32 %v1531, %v1525
      %v1533 = vadd.f32 %v1532, %v1526
      %v1534 = vrot.slane %v1533, 4
      %v1535 = vadd.f32 %v1533, %v1534
      %v1536 = vrot.slane %v1535, 2
      %v1537 = vadd.f32 %v1535, %v1536
      %v1538 = vrot.slane %v1537, 1
      %v1539 = vadd.f32 %v1537, %v1538
      %1540 = vst [vmem:[%s424] sm:$0x1] %v1539
      %v1541 = vld [vmem:[%s404] sm:$0x3]
      %v1543 = vsel %vm898, %v1541, 0
      %1545 = vmatpush.bf16.msra.mxu0 0
      %1546 = vmatpush.bf16.msra.mxu0 0
      %1547 = vmatpush.bf16.msra.mxu0 0
      %1548 = vmatpush.bf16.msra.mxu0 0
      %1549 = vmatpush.bf16.msra.mxu0 0
      %1550 = vmatpush.bf16.msra.mxu0 0
      %1551 = vmatpush.bf16.msra.mxu0 0
      %1552 = vmatpush.bf16.msra.mxu0 %v1543
      %1553 = vmatmul.bf16.gmra.mxu0 %v1158
      %v1554 = vpop.f32.mrf.mxu0
      %v1555 = vadd.f32 0.0, %v1554
      %v1556 = vpop.f32.mrf.mxu0
      %v1557 = vadd.f32 0.0, %v1556
      %1558 = vmatmul.bf16.gmra.mxu0 %v1161
      %v1559 = vpop.f32.mrf.mxu0
      %v1560 = vadd.f32 0.0, %v1559
      %v1561 = vpop.f32.mrf.mxu0
      %v1562 = vadd.f32 0.0, %v1561
      %1563 = vmatmul.bf16.gmra.mxu0 %v1164
      %v1564 = vpop.f32.mrf.mxu0
      %v1565 = vadd.f32 0.0, %v1564
      %v1566 = vpop.f32.mrf.mxu0
      %v1567 = vadd.f32 0.0, %v1566
      %1568 = vmatmul.bf16.gmra.mxu0 %v1167
      %v1569 = vpop.f32.mrf.mxu0
      %v1570 = vadd.f32 0.0, %v1569
      %v1571 = vpop.f32.mrf.mxu0
      %v1572 = vadd.f32 0.0, %v1571
      %1573 = vdwg.mxu0
      %v1574 = vpack.c.bf16 %v1555, %v1555
      %v1575 = vpack.c.bf16 %v1557, %v1557
      %v1576 = vpack.c.bf16 %v1560, %v1560
      %v1577 = vpack.c.bf16 %v1562, %v1562
      %v1578 = vpack.c.bf16 %v1565, %v1565
      %v1579 = vpack.c.bf16 %v1567, %v1567
      %v1580 = vpack.c.bf16 %v1570, %v1570
      %v1581 = vpack.c.bf16 %v1572, %v1572
      %1582 = vst [vmem:[%s432] sm:$0xf] %v1574
      %1583 = vst [vmem:[%s432 + $0x4] sm:$0xf] %v1575
      %1584 = vst [vmem:[%s432 + $0x8] sm:$0xf] %v1576
      %1585 = vst [vmem:[%s432 + $0xc] sm:$0xf] %v1577
      %1586 = vst [vmem:[%s432 + $0x10] sm:$0xf] %v1578
      %1587 = vst [vmem:[%s432 + $0x14] sm:$0xf] %v1579
      %1588 = vst [vmem:[%s432 + $0x18] sm:$0xf] %v1580
      %1589 = vst [vmem:[%s432 + $0x1c] sm:$0xf] %v1581
      %v1590 = vadd.f32 %v1555, %v1557
      %v1591 = vadd.f32 %v1590, %v1560
      %v1592 = vadd.f32 %v1591, %v1562
      %v1593 = vadd.f32 %v1592, %v1565
      %v1594 = vadd.f32 %v1593, %v1567
      %v1595 = vadd.f32 %v1594, %v1570
      %v1596 = vadd.f32 %v1595, %v1572
      %v1597 = vrot.slane %v1596, 4
      %v1598 = vadd.f32 %v1596, %v1597
      %v1599 = vrot.slane %v1598, 2
      %v1600 = vadd.f32 %v1598, %v1599
      %v1601 = vrot.slane %v1600, 1
      %v1602 = vadd.f32 %v1600, %v1601
      %1603 = vst [vmem:[%s438] sm:$0x1] %v1602
      %v1604 = vmul.f32 %v1555, %v1555
      %v1605 = vmul.f32 %v1557, %v1557
      %v1606 = vmul.f32 %v1560, %v1560
      %v1607 = vmul.f32 %v1562, %v1562
      %v1608 = vmul.f32 %v1565, %v1565
      %v1609 = vmul.f32 %v1567, %v1567
      %v1610 = vmul.f32 %v1570, %v1570
      %v1611 = vmul.f32 %v1572, %v1572
      %v1612 = vadd.f32 %v1604, %v1605
      %v1613 = vadd.f32 %v1612, %v1606
      %v1614 = vadd.f32 %v1613, %v1607
      %v1615 = vadd.f32 %v1614, %v1608
      %v1616 = vadd.f32 %v1615, %v1609
      %v1617 = vadd.f32 %v1616, %v1610
      %v1618 = vadd.f32 %v1617, %v1611
      %v1619 = vrot.slane %v1618, 4
      %v1620 = vadd.f32 %v1618, %v1619
      %v1621 = vrot.slane %v1620, 2
      %v1622 = vadd.f32 %v1620, %v1621
      %v1623 = vrot.slane %v1622, 1
      %v1624 = vadd.f32 %v1622, %v1623
      %1625 = vst [vmem:[%s444] sm:$0x1] %v1624
      %p1626 = scmp.lt.s32.totalorder %s25, 1
      %s1627 = scalar_select %p1626, %s25, 1
      %p1628 = scmp.lt.s32.totalorder %s24, 0
      %s1629 = scalar_select %p1628, %s24, 0
      %s1630 = smul.addr %s1627, 8
      %s1631 = sadd.s32 %s1629, %s1630
      %s1632 = smul.addr %s1631, 4
      %s1633 = scalar_lea.vmem %s3, %s1632
      %p1634 = scmp.lt.s32.totalorder %s25, 1
      %s1635 = scalar_select %p1634, %s25, 1
      %p1636 = scmp.lt.s32.totalorder %s24, 0
      %s1637 = scalar_select %p1636, %s24, 0
      %s1638 = sadd.s32 %s1637, %s1635
      %s1639 = scalar_lea.vmem %s4, %s1638
      %p1640 = scmp.lt.s32.totalorder %s25, 1
      %s1641 = scalar_select %p1640, %s25, 1
      %p1642 = scmp.lt.s32.totalorder %s24, 0
      %s1643 = scalar_select %p1642, %s24, 0
      %s1644 = sadd.s32 %s1643, %s1641
      %s1645 = scalar_lea.vmem %s5, %s1644
      %p1646 = scmp.lt.s32.totalorder %s25, 1
      %s1647 = scalar_select %p1646, %s25, 1
      %p1648 = scmp.lt.s32.totalorder %s24, 0
      %s1649 = scalar_select %p1648, %s24, 0
      %s1650 = smul.addr %s1647, 8
      %s1651 = sadd.s32 %s1649, %s1650
      %s1652 = smul.addr %s1651, 4
      %s1653 = scalar_lea.vmem %s6, %s1652
      %p1654 = scmp.lt.s32.totalorder %s25, 1
      %s1655 = scalar_select %p1654, %s25, 1
      %p1656 = scmp.lt.s32.totalorder %s24, 0
      %s1657 = scalar_select %p1656, %s24, 0
      %s1658 = sadd.s32 %s1657, %s1655
      %s1659 = scalar_lea.vmem %s7, %s1658
      %p1660 = scmp.lt.s32.totalorder %s25, 1
      %s1661 = scalar_select %p1660, %s25, 1
      %p1662 = scmp.lt.s32.totalorder %s24, 0
      %s1663 = scalar_select %p1662, %s24, 0
      %s1664 = sadd.s32 %s1663, %s1661
      %s1665 = scalar_lea.vmem %s8, %s1664
      // Predicated region
      $region33: #{basic_block_forward.4} parent=31 // pred_check
        %p1666 = pneg %p130
      $region34: #{basic_block_forward.4} parent=31 // pred_check_branch
        %1668 = sbr.rel (%p1666) target = $region36
      $region35: #{basic_block_forward.4} parent=31 // pred_region
        _
      $region36: #{basic_block_forward.4} parent=31 // pred_fallthru
        _
      // Predicated region
      $region37: #{basic_block_forward.4} parent=31 // pred_check
        %p1669 = pneg %p158
      $region38: #{basic_block_forward.4} parent=31 // pred_check_branch
        %1671 = sbr.rel (%p1669) target = $region40
      $region39: #{basic_block_forward.4} parent=31 // pred_region
        _
      $region40: #{basic_block_forward.4} parent=31 // pred_fallthru
        _
      // Predicated region
      $region41: #{basic_block_forward.4} parent=31 // pred_check
        %p1672 = pneg %p186
      $region42: #{basic_block_forward.4} parent=31 // pred_check_branch
        %1674 = sbr.rel (%p1672) target = $region44
      $region43: #{basic_block_forward.4} parent=31 // pred_region
        _
      $region44: #{basic_block_forward.4} parent=31 // pred_fallthru
        _
      // Predicated region
      $region45: #{basic_block_forward.4} parent=31 // pred_check
        %p1675 = pneg %p214
      $region46: #{basic_block_forward.4} parent=31 // pred_check_branch
        %1677 = sbr.rel (%p1675) target = $region48
      $region47: #{basic_block_forward.4} parent=31 // pred_region
        _
      $region48: #{basic_block_forward.4} parent=31 // pred_fallthru
        _
      // Predicated region
      $region49: #{basic_block_forward.4} parent=31 // pred_check
        %p1678 = pneg %p242
      $region50: #{basic_block_forward.4} parent=31 // pred_check_branch
        %1680 = sbr.rel (%p1678) target = $region52
      $region51: #{basic_block_forward.4} parent=31 // pred_region
        _
      $region52: #{basic_block_forward.4} parent=31 // pred_fallthru
        _
      // Predicated region
      $region53: #{basic_block_forward.4} parent=31 // pred_check
        %p1681 = pneg %p270
      $region54: #{basic_block_forward.4} parent=31 // pred_check_branch
        %1683 = sbr.rel (%p1681) target = $region56
      $region55: #{basic_block_forward.4} parent=31 // pred_region
        _
      $region56: #{basic_block_forward.4} parent=31 // pred_fallthru
        _
    $region32: #{basic_block_forward.4} parent=5 // pred_fallthru
      _
    %p1684 = scmp.le.s32.totalorder 2, %s15
    // Predicated region
    $region57: #{basic_block_forward.4} parent=5 // pred_check
      %p1685 = pneg %p1684
    $region58: #{basic_block_forward.4} parent=5 // pred_check_branch
      %1687 = sbr.rel (%p1685) target = $region60
    $region59: #{basic_block_forward.4} parent=5 // pred_region
      %s1688 = ssub.s32 %s15, 2
      // Predicated region
      $region61: #{basic_block_forward.4} parent=59 // pred_check
        %p1689 = pneg %p136
      $region62: #{basic_block_forward.4} parent=59 // pred_check_branch
        %1691 = sbr.rel (%p1689) target = $region64
      $region63: #{basic_block_forward.4} parent=59 // pred_region
        %p1692 = scmp.lt.s32.totalorder %s27, 1
        %s1693 = scalar_select %p1692, %s27, 1
        %p1694 = scmp.lt.s32.totalorder %s26, 0
        %s1695 = scalar_select %p1694, %s26, 0
        %s1696 = smul.addr %s1693, 8
        %s1697 = sadd.s32 %s1695, %s1696
        %s1698 = smul.addr %s1697, 4
        %s1699 = scalar_lea.vmem %s3, %s1698
      $region64: #{basic_block_forward.4} parent=59 // pred_fallthru
        _
      // Predicated region
      $region65: #{basic_block_forward.4} parent=59 // pred_check
        %p1700 = pneg %p164
      $region66: #{basic_block_forward.4} parent=59 // pred_check_branch
        %1702 = sbr.rel (%p1700) target = $region68
      $region67: #{basic_block_forward.4} parent=59 // pred_region
        %p1703 = scmp.lt.s32.totalorder %s27, 1
        %s1704 = scalar_select %p1703, %s27, 1
        %p1705 = scmp.lt.s32.totalorder %s26, 0
        %s1706 = scalar_select %p1705, %s26, 0
        %s1707 = sadd.s32 %s1706, %s1704
        %s1708 = scalar_lea.vmem %s4, %s1707
      $region68: #{basic_block_forward.4} parent=59 // pred_fallthru
        _
      // Predicated region
      $region69: #{basic_block_forward.4} parent=59 // pred_check
        %p1709 = pneg %p192
      $region70: #{basic_block_forward.4} parent=59 // pred_check_branch
        %1711 = sbr.rel (%p1709) target = $region72
      $region71: #{basic_block_forward.4} parent=59 // pred_region
        %p1712 = scmp.lt.s32.totalorder %s27, 1
        %s1713 = scalar_select %p1712, %s27, 1
        %p1714 = scmp.lt.s32.totalorder %s26, 0
        %s1715 = scalar_select %p1714, %s26, 0
        %s1716 = sadd.s32 %s1715, %s1713
        %s1717 = scalar_lea.vmem %s5, %s1716
      $region72: #{basic_block_forward.4} parent=59 // pred_fallthru
        _
      // Predicated region
      $region73: #{basic_block_forward.4} parent=59 // pred_check
        %p1718 = pneg %p220
      $region74: #{basic_block_forward.4} parent=59 // pred_check_branch
        %1720 = sbr.rel (%p1718) target = $region76
      $region75: #{basic_block_forward.4} parent=59 // pred_region
        %p1721 = scmp.lt.s32.totalorder %s27, 1
        %s1722 = scalar_select %p1721, %s27, 1
        %p1723 = scmp.lt.s32.totalorder %s26, 0
        %s1724 = scalar_select %p1723, %s26, 0
        %s1725 = smul.addr %s1722, 8
        %s1726 = sadd.s32 %s1724, %s1725
        %s1727 = smul.addr %s1726, 4
        %s1728 = scalar_lea.vmem %s6, %s1727
      $region76: #{basic_block_forward.4} parent=59 // pred_fallthru
        _
      // Predicated region
      $region77: #{basic_block_forward.4} parent=59 // pred_check
        %p1729 = pneg %p248
      $region78: #{basic_block_forward.4} parent=59 // pred_check_branch
        %1731 = sbr.rel (%p1729) target = $region80
      $region79: #{basic_block_forward.4} parent=59 // pred_region
        %p1732 = scmp.lt.s32.totalorder %s27, 1
        %s1733 = scalar_select %p1732, %s27, 1
        %p1734 = scmp.lt.s32.totalorder %s26, 0
        %s1735 = scalar_select %p1734, %s26, 0
        %s1736 = sadd.s32 %s1735, %s1733
        %s1737 = scalar_lea.vmem %s7, %s1736
      $region80: #{basic_block_forward.4} parent=59 // pred_fallthru
        _
      // Predicated region
      $region81: #{basic_block_forward.4} parent=59 // pred_check
        %p1738 = pneg %p276
      $region82: #{basic_block_forward.4} parent=59 // pred_check_branch
        %1740 = sbr.rel (%p1738) target = $region84
      $region83: #{basic_block_forward.4} parent=59 // pred_region
        %p1741 = scmp.lt.s32.totalorder %s27, 1
        %s1742 = scalar_select %p1741, %s27, 1
        %p1743 = scmp.lt.s32.totalorder %s26, 0
        %s1744 = scalar_select %p1743, %s26, 0
        %s1745 = sadd.s32 %s1744, %s1742
        %s1746 = scalar_lea.vmem %s8, %s1745
      $region84: #{basic_block_forward.4} parent=59 // pred_fallthru
        _
    $region60: #{basic_block_forward.4} parent=5 // pred_fallthru
      _
  $region6: #{basic_block_forward.4} parent=0 // loop_footer
    %s19 = sadd.s32 1, %s15
  $region7: #{basic_block_forward.4} parent=0 // loop_footer_branch
    %14 = sbr.rel target = $region3
  $region8: #{basic_block_forward.4} parent=0 // loop_exit
    _

// kernel: basic_block_forward.6
$region0: #{basic_block_forward.6}
  #allocation0 [shape = 'u32[]', space=smem, size = 0x4, offset = 0x4, fixed_abs, tag = 'smem constant byte address 0x4 - core index']
  #allocation1 [shape = 'u32[72,128]{1,0:T(1,128)}', space=vmem, size = 0x9000, scoped, tag = 'internal scratch']
  %s0 = inlined_call_operand.vmem [shape: bf16[2,10,10,128], index: 0, kind: input, shape index: {}]
  %s1 = inlined_call_operand.vmem [shape: bf16[9,128,128], index: 1, kind: input, shape index: {}]
  %s2 = inlined_call_operand.vmem [shape: bf16[2,64,128], index: 2, kind: output, shape index: {0}]
  %s3 = inlined_call_operand.vmem [shape: f32[2,1,128], index: 3, kind: output, shape index: {1}]
  %s4 = inlined_call_operand.vmem [shape: f32[2,1,128], index: 4, kind: output, shape index: {2}]
  %5 = xla_tuple %s2, %s3, %s4
  %s6 = sld [smem:[#allocation0]]
  $region57: #{basic_block_forward.6} parent=0
    _
  %s8 = ssub.s32 1, %s6
  %s9 = scalar_select 0, %s8, %s6
  loop: start=0, step=1, limit=4
  $region2: #{basic_block_forward.6} parent=0 // loop_pre_header
    _
  $region3: #{basic_block_forward.6} parent=0 // loop_header
    %s11 = sphi 0, %s15
    %p12 = scmp.ge.s32.totalorder %s11, 4
    %s18 = sphi 0, %s30
    %s19 = sphi 0, %s26
    %s20 = sphi 0, %s18
    %s21 = sphi 0, %s19
    %s22 = sphi 0, %s20
    %s23 = sphi 0, %s21
    %s33 = sphi 0, %s35
    %s36 = sphi 0, %s33
    %s37 = sphi 0, %s36
    %s53 = sphi 0, %s37
    %s59 = sphi 0, %s61
    %s62 = sphi 0, %s59
    %s63 = sphi 0, %s62
    %s79 = sphi 0, %s63
    %s87 = sphi 0, %s89
    %s90 = sphi 0, %s87
    %s91 = sphi 0, %s90
    %s107 = sphi 0, %s91
    %s115 = sphi 0, %s117
    %s118 = sphi 0, %s115
    %s119 = sphi 0, %s118
    %s135 = sphi 0, %s119
    %s143 = sphi 0, %s145
    %s146 = sphi 0, %s143
    %s147 = sphi 0, %s146
    %s163 = sphi 0, %s147
  $region4: #{basic_block_forward.6} parent=0 // loop_header_branch
    %14 = sbr.rel (%p12) target = $region8
  $region5: #{basic_block_forward.6} parent=0 // loop_body
    %s16 = ssub.s32 %s11, 1
    %s17 = ssub.s32 %s11, 2
    %s24 = sadd.s32 1, %s19
    %p25 = scmp.ge.s32.totalorder %s24, 2
    %s26 = scalar_select %p25, 0, %s24
    %s27 = sadd.s32 1, %s18
    %s28 = scalar_select %p25, %s27, %s18
    %p29 = scmp.ge.s32.totalorder %s28, 1
    %s30 = scalar_select %p29, 0, %s28
    %s31 = ssub.s32 %s19, %s26
    %p32 = scmp.eq.s32.totalorder %s31, 0
    %s34 = sadd.s32 %s33, 1
    %s35 = scalar_select %p32, %s33, %s34
    %p38 = pneg %p32
    %p39 = scmp.eq.s32.totalorder %s11, 1
    %p40 = por %p38, %p39
    %p41 = scmp.ne.s32.totalorder %s33, %s36
    %p42 = scmp.eq.s32.totalorder %s11, 0
    %p43 = por %p41, %p42
    %p44 = scmp.ne.s32.totalorder %s33, %s36
    %p45 = scmp.eq.s32.totalorder %s16, 1
    %p46 = por %p44, %p45
    %p47 = scmp.ne.s32.totalorder %s36, %s37
    %p48 = scmp.eq.s32.totalorder %s16, 0
    %p49 = por %p47, %p48
    %p50 = scmp.ne.s32.totalorder %s36, %s37
    %p51 = scmp.eq.s32.totalorder %s17, 1
    %p52 = por %p50, %p51
    %p54 = scmp.ne.s32.totalorder %s37, %s53
    %p55 = scmp.eq.s32.totalorder %s17, 0
    %p56 = por %p54, %p55
    %s57 = ssub.s32 %s18, %s30
    %p58 = scmp.eq.s32.totalorder %s57, 0
    %s60 = sadd.s32 %s59, 1
    %s61 = scalar_select %p58, %s59, %s60
    %p64 = pneg %p58
    %p65 = scmp.eq.s32.totalorder %s11, 1
    %p66 = por %p64, %p65
    %p67 = scmp.ne.s32.totalorder %s59, %s62
    %p68 = scmp.eq.s32.totalorder %s11, 0
    %p69 = por %p67, %p68
    %p70 = scmp.ne.s32.totalorder %s59, %s62
    %p71 = scmp.eq.s32.totalorder %s16, 1
    %p72 = por %p70, %p71
    %p73 = scmp.ne.s32.totalorder %s62, %s63
    %p74 = scmp.eq.s32.totalorder %s16, 0
    %p75 = por %p73, %p74
    %p76 = scmp.ne.s32.totalorder %s62, %s63
    %p77 = scmp.eq.s32.totalorder %s17, 1
    %p78 = por %p76, %p77
    %p80 = scmp.ne.s32.totalorder %s63, %s79
    %p81 = scmp.eq.s32.totalorder %s17, 0
    %p82 = por %p80, %p81
    %s83 = ssub.s32 %s19, %s26
    %s84 = ssub.s32 %s18, %s30
    %s85 = sor.u32 %s83, %s84
    %p86 = scmp.eq.s32.totalorder %s85, 0
    %s88 = sadd.s32 %s87, 1
    %s89 = scalar_select %p86, %s87, %s88
    %p92 = pneg %p86
    %p93 = scmp.eq.s32.totalorder %s11, 1
    %p94 = por %p92, %p93
    %p95 = scmp.ne.s32.totalorder %s87, %s90
    %p96 = scmp.eq.s32.totalorder %s11, 0
    %p97 = por %p95, %p96
    %p98 = scmp.ne.s32.totalorder %s87, %s90
    %p99 = scmp.eq.s32.totalorder %s16, 1
    %p100 = por %p98, %p99
    %p101 = scmp.ne.s32.totalorder %s90, %s91
    %p102 = scmp.eq.s32.totalorder %s16, 0
    %p103 = por %p101, %p102
    %p104 = scmp.ne.s32.totalorder %s90, %s91
    %p105 = scmp.eq.s32.totalorder %s17, 1
    %p106 = por %p104, %p105
    %p108 = scmp.ne.s32.totalorder %s91, %s107
    %p109 = scmp.eq.s32.totalorder %s17, 0
    %p110 = por %p108, %p109
    %s111 = ssub.s32 %s19, %s26
    %s112 = ssub.s32 %s18, %s30
    %s113 = sor.u32 %s111, %s112
    %p114 = scmp.eq.s32.totalorder %s113, 0
    %s116 = sadd.s32 %s115, 1
    %s117 = scalar_select %p114, %s115, %s116
    %p120 = pneg %p114
    %p121 = scmp.eq.s32.totalorder %s11, 1
    %p122 = por %p120, %p121
    %p123 = scmp.ne.s32.totalorder %s115, %s118
    %p124 = scmp.eq.s32.totalorder %s11, 0
    %p125 = por %p123, %p124
    %p126 = scmp.ne.s32.totalorder %s115, %s118
    %p127 = scmp.eq.s32.totalorder %s16, 1
    %p128 = por %p126, %p127
    %p129 = scmp.ne.s32.totalorder %s118, %s119
    %p130 = scmp.eq.s32.totalorder %s16, 0
    %p131 = por %p129, %p130
    %p132 = scmp.ne.s32.totalorder %s118, %s119
    %p133 = scmp.eq.s32.totalorder %s17, 1
    %p134 = por %p132, %p133
    %p136 = scmp.ne.s32.totalorder %s119, %s135
    %p137 = scmp.eq.s32.totalorder %s17, 0
    %p138 = por %p136, %p137
    %s139 = ssub.s32 %s19, %s26
    %s140 = ssub.s32 %s18, %s30
    %s141 = sor.u32 %s139, %s140
    %p142 = scmp.eq.s32.totalorder %s141, 0
    %s144 = sadd.s32 %s143, 1
    %s145 = scalar_select %p142, %s143, %s144
    %p148 = pneg %p142
    %p149 = scmp.eq.s32.totalorder %s11, 1
    %p150 = por %p148, %p149
    %p151 = scmp.ne.s32.totalorder %s143, %s146
    %p152 = scmp.eq.s32.totalorder %s11, 0
    %p153 = por %p151, %p152
    %p154 = scmp.ne.s32.totalorder %s143, %s146
    %p155 = scmp.eq.s32.totalorder %s16, 1
    %p156 = por %p154, %p155
    %p157 = scmp.ne.s32.totalorder %s146, %s147
    %p158 = scmp.eq.s32.totalorder %s16, 0
    %p159 = por %p157, %p158
    %p160 = scmp.ne.s32.totalorder %s146, %s147
    %p161 = scmp.eq.s32.totalorder %s17, 1
    %p162 = por %p160, %p161
    %p164 = scmp.ne.s32.totalorder %s147, %s163
    %p165 = scmp.eq.s32.totalorder %s17, 0
    %p166 = por %p164, %p165
    %p167 = scmp.le.s32.totalorder 1, %s11
    %p168 = scmp.lt.s32.totalorder %s11, 3
    %p169 = pnand %p167, %p168
    %p170 = pneg %p169
    // Predicated region
    $region9: #{basic_block_forward.6} parent=5 // pred_check
      _
    $region10: #{basic_block_forward.6} parent=5 // pred_check_branch
      %172 = sbr.rel (%p169) target = $region12
    $region11: #{basic_block_forward.6} parent=5 // pred_region
      %s173 = ssub.s32 %s11, 1
      // Predicated region
      $region13: #{basic_block_forward.6} parent=11 // pred_check
        %p174 = pneg %p75
      $region14: #{basic_block_forward.6} parent=11 // pred_check_branch
        %176 = sbr.rel (%p174) target = $region16
      $region15: #{basic_block_forward.6} parent=11 // pred_region
        %p177 = scmp.lt.s32.totalorder %s20, 0
        %s178 = scalar_select %p177, %s20, 0
        %s179 = smul.addr %s178, 4
        %s180 = scalar_lea.vmem %s1, %s179
      $region16: #{basic_block_forward.6} parent=11 // pred_fallthru
        _
    $region12: #{basic_block_forward.6} parent=5 // pred_fallthru
      _
    %p181 = scmp.lt.s32.totalorder %s11, 2
    // Predicated region
    $region17: #{basic_block_forward.6} parent=5 // pred_check
      %p182 = pneg %p181
    $region18: #{basic_block_forward.6} parent=5 // pred_check_branch
      %184 = sbr.rel (%p182) target = $region20
    $region19: #{basic_block_forward.6} parent=5 // pred_region
      // Predicated region
      $region21: #{basic_block_forward.6} parent=19 // pred_check
        %p185 = pneg %p43
      $region22: #{basic_block_forward.6} parent=19 // pred_check_branch
        %187 = sbr.rel (%p185) target = $region24
      $region23: #{basic_block_forward.6} parent=19 // pred_region
        %p188 = scmp.lt.s32.totalorder %s19, 1
        %s189 = scalar_select %p188, %s19, 1
        %s190 = smul.addr %s189, 20
        %s191 = smul.addr %s190, 4
        %s192 = scalar_lea.vmem %s0, %s191
      $region24: #{basic_block_forward.6} parent=19 // pred_fallthru
        _
    $region20: #{basic_block_forward.6} parent=5 // pred_fallthru
      _
    %p193 = scmp.le.s32.totalorder 1, %s11
    %p194 = scmp.lt.s32.totalorder %s11, 3
    %p195 = pnand %p193, %p194
    %p196 = pneg %p195
    // Predicated region
    $region25: #{basic_block_forward.6} parent=5 // pred_check
      _
    $region26: #{basic_block_forward.6} parent=5 // pred_check_branch
      %198 = sbr.rel (%p195) target = $region28
    $region27: #{basic_block_forward.6} parent=5 // pred_region
      %s199 = ssub.s32 %s11, 1
      %p200 = scmp.lt.s32.totalorder %s21, 1
      %s201 = scalar_select %p200, %s21, 1
      %s202 = smul.addr %s201, 20
      %s203 = smul.addr %s202, 4
      %s204 = scalar_lea.vmem %s0, %s203
      %p205 = pneg %p49
      %p206 = pneg %p46
      %p207 = scmp.lt.s32.totalorder %s20, 0
      %s208 = scalar_select %p207, %s20, 0
      %s209 = smul.addr %s208, 4
      %s210 = scalar_lea.vmem %s1, %s209
      %p211 = pneg %p75
      %p212 = pneg %p72
      %p213 = pneg %p103
      %p214 = pneg %p100
      %p215 = scmp.lt.s32.totalorder %s21, 1
      %s216 = scalar_select %p215, %s21, 1
      %p217 = scmp.lt.s32.totalorder %s20, 0
      %s218 = scalar_select %p217, %s20, 0
      %s219 = smul.addr %s216, 8
      %s220 = sadd.s32 %s218, %s219
      %s221 = smul.addr %s220, 4
      %s222 = scalar_lea.vmem %s2, %s221
      %p223 = pneg %p131
      %p224 = pneg %p128
      %p225 = scmp.lt.s32.totalorder %s21, 1
      %s226 = scalar_select %p225, %s21, 1
      %p227 = scmp.lt.s32.totalorder %s20, 0
      %s228 = scalar_select %p227, %s20, 0
      %s229 = sadd.s32 %s228, %s226
      %s230 = scalar_lea.vmem %s3, %s229
      %p231 = pneg %p159
      %p232 = pneg %p156
      %p233 = scmp.lt.s32.totalorder %s21, 1
      %s234 = scalar_select %p233, %s21, 1
      %p235 = scmp.lt.s32.totalorder %s20, 0
      %s236 = scalar_select %p235, %s20, 0
      %s237 = sadd.s32 %s236, %s234
      %s238 = scalar_lea.vmem %s4, %s237
      %p239 = scmp.lt.s32.totalorder %s21, 1
      %s240 = scalar_select %p239, %s21, 1
      %s241 = smul.addr %s240, 20
      %s242 = smul.addr %s241, 4
      %s243 = scalar_lea.vmem %s0, %s242
      %p244 = scmp.lt.s32.totalorder %s20, 0
      %s245 = scalar_select %p244, %s20, 0
      %s246 = smul.addr %s245, 4
      %s247 = scalar_lea.vmem %s1, %s246
      %p248 = scmp.lt.s32.totalorder %s21, 1
      %s249 = scalar_select %p248, %s21, 1
      %p250 = scmp.lt.s32.totalorder %s20, 0
      %s251 = scalar_select %p250, %s20, 0
      %s252 = smul.addr %s249, 8
      %s253 = sadd.s32 %s251, %s252
      %s254 = smul.addr %s253, 4
      %s255 = scalar_lea.vmem %s2, %s254
      %p256 = scmp.lt.s32.totalorder %s21, 1
      %s257 = scalar_select %p256, %s21, 1
      %p258 = scmp.lt.s32.totalorder %s20, 0
      %s259 = scalar_select %p258, %s20, 0
      %s260 = sadd.s32 %s259, %s257
      %s261 = scalar_lea.vmem %s3, %s260
      %p262 = scmp.lt.s32.totalorder %s21, 1
      %s263 = scalar_select %p262, %s21, 1
      %p264 = scmp.lt.s32.totalorder %s20, 0
      %s265 = scalar_select %p264, %s20, 0
      %s266 = sadd.s32 %s265, %s263
      %s267 = scalar_lea.vmem %s4, %s266
      %v268 = vld [vmem:[%s243] sm:$0xf]
      %v269 = vld [vmem:[%s243 + $0x8] sm:$0xf]
      %v270 = vld [vmem:[%s243 + $0x10] sm:$0xf]
      %v271 = vld [vmem:[%s243 + $0x18] sm:$0xf]
      %v272 = vld [vmem:[%s243 + $0x20] sm:$0xf]
      %v273 = vld [vmem:[%s243 + $0x28] sm:$0xf]
      %v274 = vld [vmem:[%s243 + $0x30] sm:$0xf]
      %v275 = vld [vmem:[%s243 + $0x38] sm:$0xf]
      %v276 = vld [vmem:[%s243 + $0x4] sm:$0x1]
      %v277 = vld [vmem:[%s243 + $0xc] sm:$0x1]
      %v278 = vld [vmem:[%s243 + $0x14] sm:$0x1]
      %v279 = vld [vmem:[%s243 + $0x1c] sm:$0x1]
      %v280 = vld [vmem:[%s243 + $0x24] sm:$0x1]
      %v281 = vld [vmem:[%s243 + $0x2c] sm:$0x1]
      %v282 = vld [vmem:[%s243 + $0x34] sm:$0x1]
      %v283 = vld [vmem:[%s243 + $0x3c] sm:$0x1]
      %vm284 = vsmask.f32 3328
      %vm285 = vsmask.f32 7440
      %vm286 = vmor %vm284, %vm285
      %v288 = vshrl.u32 %v268, 16
      %v290 = vrot.slane %v288, 4
      %v291 = vshll.u32 %v268, 16
      %v293 = vrot.slane %v291, 5
      %v294 = vor.u32 %v290, %v293
      %v295 = vrot.slane %v294, 4
      %v297 = vshll.u32 %v276, 16
      %v299 = vrot.slane %v297, 5
      %v300 = vsel %vm286, %v295, %v299
      %v302 = vshrl.u32 %v269, 16
      %v304 = vrot.slane %v302, 4
      %v305 = vshll.u32 %v269, 16
      %v307 = vrot.slane %v305, 5
      %v308 = vor.u32 %v304, %v307
      %v309 = vrot.slane %v308, 4
      %v311 = vshll.u32 %v277, 16
      %v313 = vrot.slane %v311, 5
      %v314 = vsel %vm286, %v309, %v313
      %v316 = vshrl.u32 %v270, 16
      %v318 = vrot.slane %v316, 4
      %v319 = vshll.u32 %v270, 16
      %v321 = vrot.slane %v319, 5
      %v322 = vor.u32 %v318, %v321
      %v323 = vrot.slane %v322, 4
      %v325 = vshll.u32 %v278, 16
      %v327 = vrot.slane %v325, 5
      %v328 = vsel %vm286, %v323, %v327
      %v330 = vshrl.u32 %v271, 16
      %v332 = vrot.slane %v330, 4
      %v333 = vshll.u32 %v271, 16
      %v335 = vrot.slane %v333, 5
      %v336 = vor.u32 %v332, %v335
      %v337 = vrot.slane %v336, 4
      %v339 = vshll.u32 %v279, 16
      %v341 = vrot.slane %v339, 5
      %v342 = vsel %vm286, %v337, %v341
      %v344 = vshrl.u32 %v272, 16
      %v346 = vrot.slane %v344, 4
      %v347 = vshll.u32 %v272, 16
      %v349 = vrot.slane %v347, 5
      %v350 = vor.u32 %v346, %v349
      %v351 = vrot.slane %v350, 4
      %v353 = vshll.u32 %v280, 16
      %v355 = vrot.slane %v353, 5
      %v356 = vsel %vm286, %v351, %v355
      %v358 = vshrl.u32 %v273, 16
      %v360 = vrot.slane %v358, 4
      %v361 = vshll.u32 %v273, 16
      %v363 = vrot.slane %v361, 5
      %v364 = vor.u32 %v360, %v363
      %v365 = vrot.slane %v364, 4
      %v367 = vshll.u32 %v281, 16
      %v369 = vrot.slane %v367, 5
      %v370 = vsel %vm286, %v365, %v369
      %v372 = vshrl.u32 %v274, 16
      %v374 = vrot.slane %v372, 4
      %v375 = vshll.u32 %v274, 16
      %v377 = vrot.slane %v375, 5
      %v378 = vor.u32 %v374, %v377
      %v379 = vrot.slane %v378, 4
      %v381 = vshll.u32 %v282, 16
      %v383 = vrot.slane %v381, 5
      %v384 = vsel %vm286, %v379, %v383
      %v386 = vshrl.u32 %v275, 16
      %v388 = vrot.slane %v386, 4
      %v389 = vshll.u32 %v275, 16
      %v391 = vrot.slane %v389, 5
      %v392 = vor.u32 %v388, %v391
      %v393 = vrot.slane %v392, 4
      %v395 = vshll.u32 %v283, 16
      %v397 = vrot.slane %v395, 5
      %v398 = vsel %vm286, %v393, %v397
      %v399 = vld [vmem:[%s243] sm:$0xe]
      %v400 = vld [vmem:[%s243 + $0x8] sm:$0xe]
      %v401 = vld [vmem:[%s243 + $0x10] sm:$0xe]
      %v402 = vld [vmem:[%s243 + $0x18] sm:$0xe]
      %v403 = vld [vmem:[%s243 + $0x20] sm:$0xe]
      %v404 = vld [vmem:[%s243 + $0x28] sm:$0xe]
      %v405 = vld [vmem:[%s243 + $0x30] sm:$0xe]
      %v406 = vld [vmem:[%s243 + $0x38] sm:$0xe]
      %vm423 = vcmask 1042432
      %vm424 = vcmask 1046532
      %vm425 = vmor %vm423, %vm424
      %v426 = vrot.slane %v399, 5
      %v427 = vrot.slane %v426, 4
      %v428 = vrot.slane %v276, 5
      %v429 = vsel %vm425, %v427, %v428
      %v430 = vrot.slane %v400, 5
      %v431 = vrot.slane %v430, 4
      %v432 = vrot.slane %v277, 5
      %v433 = vsel %vm425, %v431, %v432
      %v434 = vrot.slane %v401, 5
      %v435 = vrot.slane %v434, 4
      %v436 = vrot.slane %v278, 5
      %v437 = vsel %vm425, %v435, %v436
      %v438 = vrot.slane %v402, 5
      %v439 = vrot.slane %v438, 4
      %v440 = vrot.slane %v279, 5
      %v441 = vsel %vm425, %v439, %v440
      %v442 = vrot.slane %v403, 5
      %v443 = vrot.slane %v442, 4
      %v444 = vrot.slane %v280, 5
      %v445 = vsel %vm425, %v443, %v444
      %v446 = vrot.slane %v404, 5
      %v447 = vrot.slane %v446, 4
      %v448 = vrot.slane %v281, 5
      %v449 = vsel %vm425, %v447, %v448
      %v450 = vrot.slane %v405, 5
      %v451 = vrot.slane %v450, 4
      %v452 = vrot.slane %v282, 5
      %v453 = vsel %vm425, %v451, %v452
      %v454 = vrot.slane %v406, 5
      %v455 = vrot.slane %v454, 4
      %v456 = vrot.slane %v283, 5
      %v457 = vsel %vm425, %v455, %v456
      %s458 = scalar_lea.vmem %s243, 8
      %v459 = vld [vmem:[%s458] sm:$0xf]
      %v460 = vld [vmem:[%s458 + $0x8] sm:$0xf]
      %v461 = vld [vmem:[%s458 + $0x10] sm:$0xf]
      %v462 = vld [vmem:[%s458 + $0x18] sm:$0xf]
      %v463 = vld [vmem:[%s458 + $0x20] sm:$0xf]
      %v464 = vld [vmem:[%s458 + $0x28] sm:$0xf]
      %v465 = vld [vmem:[%s458 + $0x30] sm:$0xf]
      %v466 = vld [vmem:[%s458 + $0x38] sm:$0xf]
      %v467 = vld [vmem:[%s458 + $0x4] sm:$0x1]
      %v468 = vld [vmem:[%s458 + $0xc] sm:$0x1]
      %v469 = vld [vmem:[%s458 + $0x14] sm:$0x1]
      %v470 = vld [vmem:[%s458 + $0x1c] sm:$0x1]
      %v471 = vld [vmem:[%s458 + $0x24] sm:$0x1]
      %v472 = vld [vmem:[%s458 + $0x2c] sm:$0x1]
      %v473 = vld [vmem:[%s458 + $0x34] sm:$0x1]
      %v474 = vld [vmem:[%s458 + $0x3c] sm:$0x1]
      %v476 = vshrl.u32 %v459, 16
      %v478 = vrot.slane %v476, 4
      %v479 = vshll.u32 %v459, 16
      %v481 = vrot.slane %v479, 5
      %v482 = vor.u32 %v478, %v481
      %v483 = vrot.slane %v482, 4
      %v485 = vshll.u32 %v467, 16
      %v487 = vrot.slane %v485, 5
      %v488 = vsel %vm286, %v483, %v487
      %v490 = vshrl.u32 %v460, 16
      %v492 = vrot.slane %v490, 4
      %v493 = vshll.u32 %v460, 16
      %v495 = vrot.slane %v493, 5
      %v496 = vor.u32 %v492, %v495
      %v497 = vrot.slane %v496, 4
      %v499 = vshll.u32 %v468, 16
      %v501 = vrot.slane %v499, 5
      %v502 = vsel %vm286, %v497, %v501
      %v504 = vshrl.u32 %v461, 16
      %v506 = vrot.slane %v504, 4
      %v507 = vshll.u32 %v461, 16
      %v509 = vrot.slane %v507, 5
      %v510 = vor.u32 %v506, %v509
      %v511 = vrot.slane %v510, 4
      %v513 = vshll.u32 %v469, 16
      %v515 = vrot.slane %v513, 5
      %v516 = vsel %vm286, %v511, %v515
      %v518 = vshrl.u32 %v462, 16
      %v520 = vrot.slane %v518, 4
      %v521 = vshll.u32 %v462, 16
      %v523 = vrot.slane %v521, 5
      %v524 = vor.u32 %v520, %v523
      %v525 = vrot.slane %v524, 4
      %v527 = vshll.u32 %v470, 16
      %v529 = vrot.slane %v527, 5
      %v530 = vsel %vm286, %v525, %v529
      %v532 = vshrl.u32 %v463, 16
      %v534 = vrot.slane %v532, 4
      %v535 = vshll.u32 %v463, 16
      %v537 = vrot.slane %v535, 5
      %v538 = vor.u32 %v534, %v537
      %v539 = vrot.slane %v538, 4
      %v541 = vshll.u32 %v471, 16
      %v543 = vrot.slane %v541, 5
      %v544 = vsel %vm286, %v539, %v543
      %v546 = vshrl.u32 %v464, 16
      %v548 = vrot.slane %v546, 4
      %v549 = vshll.u32 %v464, 16
      %v551 = vrot.slane %v549, 5
      %v552 = vor.u32 %v548, %v551
      %v553 = vrot.slane %v552, 4
      %v555 = vshll.u32 %v472, 16
      %v557 = vrot.slane %v555, 5
      %v558 = vsel %vm286, %v553, %v557
      %v560 = vshrl.u32 %v465, 16
      %v562 = vrot.slane %v560, 4
      %v563 = vshll.u32 %v465, 16
      %v565 = vrot.slane %v563, 5
      %v566 = vor.u32 %v562, %v565
      %v567 = vrot.slane %v566, 4
      %v569 = vshll.u32 %v473, 16
      %v571 = vrot.slane %v569, 5
      %v572 = vsel %vm286, %v567, %v571
      %v574 = vshrl.u32 %v466, 16
      %v576 = vrot.slane %v574, 4
      %v577 = vshll.u32 %v466, 16
      %v579 = vrot.slane %v577, 5
      %v580 = vor.u32 %v576, %v579
      %v581 = vrot.slane %v580, 4
      %v583 = vshll.u32 %v474, 16
      %v585 = vrot.slane %v583, 5
      %v586 = vsel %vm286, %v581, %v585
      %v587 = vld [vmem:[%s458] sm:$0xe]
      %v588 = vld [vmem:[%s458 + $0x8] sm:$0xe]
      %v589 = vld [vmem:[%s458 + $0x10] sm:$0xe]
      %v590 = vld [vmem:[%s458 + $0x18] sm:$0xe]
      %v591 = vld [vmem:[%s458 + $0x20] sm:$0xe]
      %v592 = vld [vmem:[%s458 + $0x28] sm:$0xe]
      %v593 = vld [vmem:[%s458 + $0x30] sm:$0xe]
      %v594 = vld [vmem:[%s458 + $0x38] sm:$0xe]
      %v611 = vrot.slane %v587, 5
      %v612 = vrot.slane %v611, 4
      %v613 = vrot.slane %v467, 5
      %v614 = vsel %vm425, %v612, %v613
      %v615 = vrot.slane %v588, 5
      %v616 = vrot.slane %v615, 4
      %v617 = vrot.slane %v468, 5
      %v618 = vsel %vm425, %v616, %v617
      %v619 = vrot.slane %v589, 5
      %v620 = vrot.slane %v619, 4
      %v621 = vrot.slane %v469, 5
      %v622 = vsel %vm425, %v620, %v621
      %v623 = vrot.slane %v590, 5
      %v624 = vrot.slane %v623, 4
      %v625 = vrot.slane %v470, 5
      %v626 = vsel %vm425, %v624, %v625
      %v627 = vrot.slane %v591, 5
      %v628 = vrot.slane %v627, 4
      %v629 = vrot.slane %v471, 5
      %v630 = vsel %vm425, %v628, %v629
      %v631 = vrot.slane %v592, 5
      %v632 = vrot.slane %v631, 4
      %v633 = vrot.slane %v472, 5
      %v634 = vsel %vm425, %v632, %v633
      %v635 = vrot.slane %v593, 5
      %v636 = vrot.slane %v635, 4
      %v637 = vrot.slane %v473, 5
      %v638 = vsel %vm425, %v636, %v637
      %v639 = vrot.slane %v594, 5
      %v640 = vrot.slane %v639, 4
      %v641 = vrot.slane %v474, 5
      %v642 = vsel %vm425, %v640, %v641
      %s643 = scalar_lea.vmem %s243, 16
      %v644 = vld [vmem:[%s643] sm:$0xf]
      %v645 = vld [vmem:[%s643 + $0x8] sm:$0xf]
      %v646 = vld [vmem:[%s643 + $0x10] sm:$0xf]
      %v647 = vld [vmem:[%s643 + $0x18] sm:$0xf]
      %v648 = vld [vmem:[%s643 + $0x20] sm:$0xf]
      %v649 = vld [vmem:[%s643 + $0x28] sm:$0xf]
      %v650 = vld [vmem:[%s643 + $0x30] sm:$0xf]
      %v651 = vld [vmem:[%s643 + $0x38] sm:$0xf]
      %v652 = vld [vmem:[%s643 + $0x4] sm:$0x1]
      %v653 = vld [vmem:[%s643 + $0xc] sm:$0x1]
      %v654 = vld [vmem:[%s643 + $0x14] sm:$0x1]
      %v655 = vld [vmem:[%s643 + $0x1c] sm:$0x1]
      %v656 = vld [vmem:[%s643 + $0x24] sm:$0x1]
      %v657 = vld [vmem:[%s643 + $0x2c] sm:$0x1]
      %v658 = vld [vmem:[%s643 + $0x34] sm:$0x1]
      %v659 = vld [vmem:[%s643 + $0x3c] sm:$0x1]
      %v661 = vshrl.u32 %v644, 16
      %v663 = vrot.slane %v661, 4
      %v664 = vshll.u32 %v644, 16
      %v666 = vrot.slane %v664, 5
      %v667 = vor.u32 %v663, %v666
      %v668 = vrot.slane %v667, 4
      %v670 = vshll.u32 %v652, 16
      %v672 = vrot.slane %v670, 5
      %v673 = vsel %vm286, %v668, %v672
      %v675 = vshrl.u32 %v645, 16
      %v677 = vrot.slane %v675, 4
      %v678 = vshll.u32 %v645, 16
      %v680 = vrot.slane %v678, 5
      %v681 = vor.u32 %v677, %v680
      %v682 = vrot.slane %v681, 4
      %v684 = vshll.u32 %v653, 16
      %v686 = vrot.slane %v684, 5
      %v687 = vsel %vm286, %v682, %v686
      %v689 = vshrl.u32 %v646, 16
      %v691 = vrot.slane %v689, 4
      %v692 = vshll.u32 %v646, 16
      %v694 = vrot.slane %v692, 5
      %v695 = vor.u32 %v691, %v694
      %v696 = vrot.slane %v695, 4
      %v698 = vshll.u32 %v654, 16
      %v700 = vrot.slane %v698, 5
      %v701 = vsel %vm286, %v696, %v700
      %v703 = vshrl.u32 %v647, 16
      %v705 = vrot.slane %v703, 4
      %v706 = vshll.u32 %v647, 16
      %v708 = vrot.slane %v706, 5
      %v709 = vor.u32 %v705, %v708
      %v710 = vrot.slane %v709, 4
      %v712 = vshll.u32 %v655, 16
      %v714 = vrot.slane %v712, 5
      %v715 = vsel %vm286, %v710, %v714
      %v717 = vshrl.u32 %v648, 16
      %v719 = vrot.slane %v717, 4
      %v720 = vshll.u32 %v648, 16
      %v722 = vrot.slane %v720, 5
      %v723 = vor.u32 %v719, %v722
      %v724 = vrot.slane %v723, 4
      %v726 = vshll.u32 %v656, 16
      %v728 = vrot.slane %v726, 5
      %v729 = vsel %vm286, %v724, %v728
      %v731 = vshrl.u32 %v649, 16
      %v733 = vrot.slane %v731, 4
      %v734 = vshll.u32 %v649, 16
      %v736 = vrot.slane %v734, 5
      %v737 = vor.u32 %v733, %v736
      %v738 = vrot.slane %v737, 4
      %v740 = vshll.u32 %v657, 16
      %v742 = vrot.slane %v740, 5
      %v743 = vsel %vm286, %v738, %v742
      %v745 = vshrl.u32 %v650, 16
      %v747 = vrot.slane %v745, 4
      %v748 = vshll.u32 %v650, 16
      %v750 = vrot.slane %v748, 5
      %v751 = vor.u32 %v747, %v750
      %v752 = vrot.slane %v751, 4
      %v754 = vshll.u32 %v658, 16
      %v756 = vrot.slane %v754, 5
      %v757 = vsel %vm286, %v752, %v756
      %v759 = vshrl.u32 %v651, 16
      %v761 = vrot.slane %v759, 4
      %v762 = vshll.u32 %v651, 16
      %v764 = vrot.slane %v762, 5
      %v765 = vor.u32 %v761, %v764
      %v766 = vrot.slane %v765, 4
      %v768 = vshll.u32 %v659, 16
      %v770 = vrot.slane %v768, 5
      %v771 = vsel %vm286, %v766, %v770
      %v772 = vld [vmem:[%s643] sm:$0xe]
      %v773 = vld [vmem:[%s643 + $0x8] sm:$0xe]
      %v774 = vld [vmem:[%s643 + $0x10] sm:$0xe]
      %v775 = vld [vmem:[%s643 + $0x18] sm:$0xe]
      %v776 = vld [vmem:[%s643 + $0x20] sm:$0xe]
      %v777 = vld [vmem:[%s643 + $0x28] sm:$0xe]
      %v778 = vld [vmem:[%s643 + $0x30] sm:$0xe]
      %v779 = vld [vmem:[%s643 + $0x38] sm:$0xe]
      %v796 = vrot.slane %v772, 5
      %v797 = vrot.slane %v796, 4
      %v798 = vrot.slane %v652, 5
      %v799 = vsel %vm425, %v797, %v798
      %v800 = vrot.slane %v773, 5
      %v801 = vrot.slane %v800, 4
      %v802 = vrot.slane %v653, 5
      %v803 = vsel %vm425, %v801, %v802
      %v804 = vrot.slane %v774, 5
      %v805 = vrot.slane %v804, 4
      %v806 = vrot.slane %v654, 5
      %v807 = vsel %vm425, %v805, %v806
      %v808 = vrot.slane %v775, 5
      %v809 = vrot.slane %v808, 4
      %v810 = vrot.slane %v655, 5
      %v811 = vsel %vm425, %v809, %v810
      %v812 = vrot.slane %v776, 5
      %v813 = vrot.slane %v812, 4
      %v814 = vrot.slane %v656, 5
      %v815 = vsel %vm425, %v813, %v814
      %v816 = vrot.slane %v777, 5
      %v817 = vrot.slane %v816, 4
      %v818 = vrot.slane %v657, 5
      %v819 = vsel %vm425, %v817, %v818
      %v820 = vrot.slane %v778, 5
      %v821 = vrot.slane %v820, 4
      %v822 = vrot.slane %v658, 5
      %v823 = vsel %vm425, %v821, %v822
      %v824 = vrot.slane %v779, 5
      %v825 = vrot.slane %v824, 4
      %v826 = vrot.slane %v659, 5
      %v827 = vsel %vm425, %v825, %v826
      %v836 = vunpack.c.l.b16 %v268
      %v837 = vunpack.c.l.b16 %v269
      %v838 = vunpack.c.l.b16 %v270
      %v839 = vunpack.c.l.b16 %v271
      %v840 = vunpack.c.l.b16 %v272
      %v841 = vunpack.c.l.b16 %v273
      %v842 = vunpack.c.l.b16 %v274
      %v843 = vunpack.c.l.b16 %v275
      %v844 = vpack.c.b16 %v837, %v836
      %v845 = vpack.c.b16 %v839, %v838
      %v846 = vpack.c.b16 %v841, %v840
      %v847 = vpack.c.b16 %v843, %v842
      %v852 = vunpack.c.l.b16 %v300
      %v853 = vunpack.c.l.b16 %v314
      %v854 = vunpack.c.l.b16 %v328
      %v855 = vunpack.c.l.b16 %v342
      %v856 = vunpack.c.l.b16 %v356
      %v857 = vunpack.c.l.b16 %v370
      %v858 = vunpack.c.l.b16 %v384
      %v859 = vunpack.c.l.b16 %v398
      %v860 = vpack.c.b16 %v853, %v852
      %v861 = vpack.c.b16 %v855, %v854
      %v862 = vpack.c.b16 %v857, %v856
      %v863 = vpack.c.b16 %v859, %v858
      %v868 = vunpack.c.l.b16 %v429
      %v869 = vunpack.c.l.b16 %v433
      %v870 = vunpack.c.l.b16 %v437
      %v871 = vunpack.c.l.b16 %v441
      %v872 = vunpack.c.l.b16 %v445
      %v873 = vunpack.c.l.b16 %v449
      %v874 = vunpack.c.l.b16 %v453
      %v875 = vunpack.c.l.b16 %v457
      %v876 = vpack.c.b16 %v869, %v868
      %v877 = vpack.c.b16 %v871, %v870
      %v878 = vpack.c.b16 %v873, %v872
      %v879 = vpack.c.b16 %v875, %v874
      %v892 = vunpack.c.l.b16 %v459
      %v893 = vunpack.c.l.b16 %v460
      %v894 = vunpack.c.l.b16 %v461
      %v895 = vunpack.c.l.b16 %v462
      %v896 = vunpack.c.l.b16 %v463
      %v897 = vunpack.c.l.b16 %v464
      %v898 = vunpack.c.l.b16 %v465
      %v899 = vunpack.c.l.b16 %v466
      %v900 = vpack.c.b16 %v893, %v892
      %v901 = vpack.c.b16 %v895, %v894
      %v902 = vpack.c.b16 %v897, %v896
      %v903 = vpack.c.b16 %v899, %v898
      %v908 = vunpack.c.l.b16 %v488
      %v909 = vunpack.c.l.b16 %v502
      %v910 = vunpack.c.l.b16 %v516
      %v911 = vunpack.c.l.b16 %v530
      %v912 = vunpack.c.l.b16 %v544
      %v913 = vunpack.c.l.b16 %v558
      %v914 = vunpack.c.l.b16 %v572
      %v915 = vunpack.c.l.b16 %v586
      %v916 = vpack.c.b16 %v909, %v908
      %v917 = vpack.c.b16 %v911, %v910
      %v918 = vpack.c.b16 %v913, %v912
      %v919 = vpack.c.b16 %v915, %v914
      %v924 = vunpack.c.l.b16 %v614
      %v925 = vunpack.c.l.b16 %v618
      %v926 = vunpack.c.l.b16 %v622
      %v927 = vunpack.c.l.b16 %v626
      %v928 = vunpack.c.l.b16 %v630
      %v929 = vunpack.c.l.b16 %v634
      %v930 = vunpack.c.l.b16 %v638
      %v931 = vunpack.c.l.b16 %v642
      %v932 = vpack.c.b16 %v925, %v924
      %v933 = vpack.c.b16 %v927, %v926
      %v934 = vpack.c.b16 %v929, %v928
      %v935 = vpack.c.b16 %v931, %v930
      %v948 = vunpack.c.l.b16 %v644
      %v949 = vunpack.c.l.b16 %v645
      %v950 = vunpack.c.l.b16 %v646
      %v951 = vunpack.c.l.b16 %v647
      %v952 = vunpack.c.l.b16 %v648
      %v953 = vunpack.c.l.b16 %v649
      %v954 = vunpack.c.l.b16 %v650
      %v955 = vunpack.c.l.b16 %v651
      %v956 = vpack.c.b16 %v949, %v948
      %v957 = vpack.c.b16 %v951, %v950
      %v958 = vpack.c.b16 %v953, %v952
      %v959 = vpack.c.b16 %v955, %v954
      %v964 = vunpack.c.l.b16 %v673
      %v965 = vunpack.c.l.b16 %v687
      %v966 = vunpack.c.l.b16 %v701
      %v967 = vunpack.c.l.b16 %v715
      %v968 = vunpack.c.l.b16 %v729
      %v969 = vunpack.c.l.b16 %v743
      %v970 = vunpack.c.l.b16 %v757
      %v971 = vunpack.c.l.b16 %v771
      %v972 = vpack.c.b16 %v965, %v964
      %v973 = vpack.c.b16 %v967, %v966
      %v974 = vpack.c.b16 %v969, %v968
      %v975 = vpack.c.b16 %v971, %v970
      %v980 = vunpack.c.l.b16 %v799
      %v981 = vunpack.c.l.b16 %v803
      %v982 = vunpack.c.l.b16 %v807
      %v983 = vunpack.c.l.b16 %v811
      %v984 = vunpack.c.l.b16 %v815
      %v985 = vunpack.c.l.b16 %v819
      %v986 = vunpack.c.l.b16 %v823
      %v987 = vunpack.c.l.b16 %v827
      %v988 = vpack.c.b16 %v981, %v980
      %v989 = vpack.c.b16 %v983, %v982
      %v990 = vpack.c.b16 %v985, %v984
      %v991 = vpack.c.b16 %v987, %v986
      %v996 = vld [vmem:[%s247] sm:$0xf]
      %v997 = vld [vmem:[%s247 + $0x4] sm:$0xf]
      %v998 = vld [vmem:[%s247 + $0x8] sm:$0xf]
      %v999 = vld [vmem:[%s247 + $0xc] sm:$0xf]
      %v1000 = vld [vmem:[%s247 + $0x10] sm:$0xf]
      %v1001 = vld [vmem:[%s247 + $0x14] sm:$0xf]
      %v1002 = vld [vmem:[%s247 + $0x18] sm:$0xf]
      %v1003 = vld [vmem:[%s247 + $0x1c] sm:$0xf]
      %v1004 = vld [vmem:[%s247 + $0x20] sm:$0xf]
      %v1005 = vld [vmem:[%s247 + $0x24] sm:$0xf]
      %v1006 = vld [vmem:[%s247 + $0x28] sm:$0xf]
      %v1007 = vld [vmem:[%s247 + $0x2c] sm:$0xf]
      %v1008 = vld [vmem:[%s247 + $0x30] sm:$0xf]
      %v1009 = vld [vmem:[%s247 + $0x34] sm:$0xf]
      %v1010 = vld [vmem:[%s247 + $0x38] sm:$0xf]
      %v1011 = vld [vmem:[%s247 + $0x3c] sm:$0xf]
      %v1012 = vld [vmem:[%s247 + $0x40] sm:$0xf]
      %v1013 = vld [vmem:[%s247 + $0x44] sm:$0xf]
      %v1014 = vld [vmem:[%s247 + $0x48] sm:$0xf]
      %v1015 = vld [vmem:[%s247 + $0x4c] sm:$0xf]
      %v1016 = vld [vmem:[%s247 + $0x50] sm:$0xf]
      %v1017 = vld [vmem:[%s247 + $0x54] sm:$0xf]
      %v1018 = vld [vmem:[%s247 + $0x58] sm:$0xf]
      %v1019 = vld [vmem:[%s247 + $0x5c] sm:$0xf]
      %v1020 = vld [vmem:[%s247 + $0x60] sm:$0xf]
      %v1021 = vld [vmem:[%s247 + $0x64] sm:$0xf]
      %v1022 = vld [vmem:[%s247 + $0x68] sm:$0xf]
      %v1023 = vld [vmem:[%s247 + $0x6c] sm:$0xf]
      %v1024 = vld [vmem:[%s247 + $0x70] sm:$0xf]
      %v1025 = vld [vmem:[%s247 + $0x74] sm:$0xf]
      %v1026 = vld [vmem:[%s247 + $0x78] sm:$0xf]
      %v1027 = vld [vmem:[%s247 + $0x7c] sm:$0xf]
      %v1028 = vld [vmem:[%s247 + $0x80] sm:$0xf]
      %v1029 = vld [vmem:[%s247 + $0x84] sm:$0xf]
      %v1030 = vld [vmem:[%s247 + $0x88] sm:$0xf]
      %v1031 = vld [vmem:[%s247 + $0x8c] sm:$0xf]
      %v1032 = vld [vmem:[%s247 + $0x90] sm:$0xf]
      %v1033 = vld [vmem:[%s247 + $0x94] sm:$0xf]
      %v1034 = vld [vmem:[%s247 + $0x98] sm:$0xf]
      %v1035 = vld [vmem:[%s247 + $0x9c] sm:$0xf]
      %v1036 = vld [vmem:[%s247 + $0xa0] sm:$0xf]
      %v1037 = vld [vmem:[%s247 + $0xa4] sm:$0xf]
      %v1038 = vld [vmem:[%s247 + $0xa8] sm:$0xf]
      %v1039 = vld [vmem:[%s247 + $0xac] sm:$0xf]
      %v1040 = vld [vmem:[%s247 + $0xb0] sm:$0xf]
      %v1041 = vld [vmem:[%s247 + $0xb4] sm:$0xf]
      %v1042 = vld [vmem:[%s247 + $0xb8] sm:$0xf]
      %v1043 = vld [vmem:[%s247 + $0xbc] sm:$0xf]
      %v1044 = vld [vmem:[%s247 + $0xc0] sm:$0xf]
      %v1045 = vld [vmem:[%s247 + $0xc4] sm:$0xf]
      %v1046 = vld [vmem:[%s247 + $0xc8] sm:$0xf]
      %v1047 = vld [vmem:[%s247 + $0xcc] sm:$0xf]
      %v1048 = vld [vmem:[%s247 + $0xd0] sm:$0xf]
      %v1049 = vld [vmem:[%s247 + $0xd4] sm:$0xf]
      %v1050 = vld [vmem:[%s247 + $0xd8] sm:$0xf]
      %v1051 = vld [vmem:[%s247 + $0xdc] sm:$0xf]
      %v1052 = vld [vmem:[%s247 + $0xe0] sm:$0xf]
      %v1053 = vld [vmem:[%s247 + $0xe4] sm:$0xf]
      %v1054 = vld [vmem:[%s247 + $0xe8] sm:$0xf]
      %v1055 = vld [vmem:[%s247 + $0xec] sm:$0xf]
      %v1056 = vld [vmem:[%s247 + $0xf0] sm:$0xf]
      %v1057 = vld [vmem:[%s247 + $0xf4] sm:$0xf]
      %v1058 = vld [vmem:[%s247 + $0xf8] sm:$0xf]
      %v1059 = vld [vmem:[%s247 + $0xfc] sm:$0xf]
      %v1060 = vld [vmem:[%s247 + $0x100] sm:$0xf]
      %v1061 = vld [vmem:[%s247 + $0x104] sm:$0xf]
      %v1062 = vld [vmem:[%s247 + $0x108] sm:$0xf]
      %v1063 = vld [vmem:[%s247 + $0x10c] sm:$0xf]
      %v1064 = vld [vmem:[%s247 + $0x110] sm:$0xf]
      %v1065 = vld [vmem:[%s247 + $0x114] sm:$0xf]
      %v1066 = vld [vmem:[%s247 + $0x118] sm:$0xf]
      %v1067 = vld [vmem:[%s247 + $0x11c] sm:$0xf]
      %v1068 = vld [vmem:[%s247 + $0x120] sm:$0xf]
      %v1069 = vld [vmem:[%s247 + $0x124] sm:$0xf]
      %v1070 = vld [vmem:[%s247 + $0x128] sm:$0xf]
      %v1071 = vld [vmem:[%s247 + $0x12c] sm:$0xf]
      %v1072 = vld [vmem:[%s247 + $0x130] sm:$0xf]
      %v1073 = vld [vmem:[%s247 + $0x134] sm:$0xf]
      %v1074 = vld [vmem:[%s247 + $0x138] sm:$0xf]
      %v1075 = vld [vmem:[%s247 + $0x13c] sm:$0xf]
      %v1076 = vld [vmem:[%s247 + $0x140] sm:$0xf]
      %v1077 = vld [vmem:[%s247 + $0x144] sm:$0xf]
      %v1078 = vld [vmem:[%s247 + $0x148] sm:$0xf]
      %v1079 = vld [vmem:[%s247 + $0x14c] sm:$0xf]
      %v1080 = vld [vmem:[%s247 + $0x150] sm:$0xf]
      %v1081 = vld [vmem:[%s247 + $0x154] sm:$0xf]
      %v1082 = vld [vmem:[%s247 + $0x158] sm:$0xf]
      %v1083 = vld [vmem:[%s247 + $0x15c] sm:$0xf]
      %v1084 = vld [vmem:[%s247 + $0x160] sm:$0xf]
      %v1085 = vld [vmem:[%s247 + $0x164] sm:$0xf]
      %v1086 = vld [vmem:[%s247 + $0x168] sm:$0xf]
      %v1087 = vld [vmem:[%s247 + $0x16c] sm:$0xf]
      %v1088 = vld [vmem:[%s247 + $0x170] sm:$0xf]
      %v1089 = vld [vmem:[%s247 + $0x174] sm:$0xf]
      %v1090 = vld [vmem:[%s247 + $0x178] sm:$0xf]
      %v1091 = vld [vmem:[%s247 + $0x17c] sm:$0xf]
      %v1092 = vld [vmem:[%s247 + $0x180] sm:$0xf]
      %v1093 = vld [vmem:[%s247 + $0x184] sm:$0xf]
      %v1094 = vld [vmem:[%s247 + $0x188] sm:$0xf]
      %v1095 = vld [vmem:[%s247 + $0x18c] sm:$0xf]
      %v1096 = vld [vmem:[%s247 + $0x190] sm:$0xf]
      %v1097 = vld [vmem:[%s247 + $0x194] sm:$0xf]
      %v1098 = vld [vmem:[%s247 + $0x198] sm:$0xf]
      %v1099 = vld [vmem:[%s247 + $0x19c] sm:$0xf]
      %v1100 = vld [vmem:[%s247 + $0x1a0] sm:$0xf]
      %v1101 = vld [vmem:[%s247 + $0x1a4] sm:$0xf]
      %v1102 = vld [vmem:[%s247 + $0x1a8] sm:$0xf]
      %v1103 = vld [vmem:[%s247 + $0x1ac] sm:$0xf]
      %v1104 = vld [vmem:[%s247 + $0x1b0] sm:$0xf]
      %v1105 = vld [vmem:[%s247 + $0x1b4] sm:$0xf]
      %v1106 = vld [vmem:[%s247 + $0x1b8] sm:$0xf]
      %v1107 = vld [vmem:[%s247 + $0x1bc] sm:$0xf]
      %v1108 = vld [vmem:[%s247 + $0x1c0] sm:$0xf]
      %v1109 = vld [vmem:[%s247 + $0x1c4] sm:$0xf]
      %v1110 = vld [vmem:[%s247 + $0x1c8] sm:$0xf]
      %v1111 = vld [vmem:[%s247 + $0x1cc] sm:$0xf]
      %v1112 = vld [vmem:[%s247 + $0x1d0] sm:$0xf]
      %v1113 = vld [vmem:[%s247 + $0x1d4] sm:$0xf]
      %v1114 = vld [vmem:[%s247 + $0x1d8] sm:$0xf]
      %v1115 = vld [vmem:[%s247 + $0x1dc] sm:$0xf]
      %v1116 = vld [vmem:[%s247 + $0x1e0] sm:$0xf]
      %v1117 = vld [vmem:[%s247 + $0x1e4] sm:$0xf]
      %v1118 = vld [vmem:[%s247 + $0x1e8] sm:$0xf]
      %v1119 = vld [vmem:[%s247 + $0x1ec] sm:$0xf]
      %v1120 = vld [vmem:[%s247 + $0x1f0] sm:$0xf]
      %v1121 = vld [vmem:[%s247 + $0x1f4] sm:$0xf]
      %v1122 = vld [vmem:[%s247 + $0x1f8] sm:$0xf]
      %v1123 = vld [vmem:[%s247 + $0x1fc] sm:$0xf]
      %v1124 = vld [vmem:[%s247 + $0x200] sm:$0xf]
      %v1125 = vld [vmem:[%s247 + $0x204] sm:$0xf]
      %v1126 = vld [vmem:[%s247 + $0x208] sm:$0xf]
      %v1127 = vld [vmem:[%s247 + $0x20c] sm:$0xf]
      %v1128 = vld [vmem:[%s247 + $0x210] sm:$0xf]
      %v1129 = vld [vmem:[%s247 + $0x214] sm:$0xf]
      %v1130 = vld [vmem:[%s247 + $0x218] sm:$0xf]
      %v1131 = vld [vmem:[%s247 + $0x21c] sm:$0xf]
      %v1132 = vld [vmem:[%s247 + $0x220] sm:$0xf]
      %v1133 = vld [vmem:[%s247 + $0x224] sm:$0xf]
      %v1134 = vld [vmem:[%s247 + $0x228] sm:$0xf]
      %v1135 = vld [vmem:[%s247 + $0x22c] sm:$0xf]
      %v1136 = vld [vmem:[%s247 + $0x230] sm:$0xf]
      %v1137 = vld [vmem:[%s247 + $0x234] sm:$0xf]
      %v1138 = vld [vmem:[%s247 + $0x238] sm:$0xf]
      %v1139 = vld [vmem:[%s247 + $0x23c] sm:$0xf]
      %v1284 = vunpack.c.l.b16 %v996
      %v1285 = vunpack.c.l.b16 %v997
      %v1286 = vunpack.c.l.b16 %v998
      %v1287 = vunpack.c.l.b16 %v999
      %v1288 = vunpack.c.l.b16 %v1000
      %v1289 = vunpack.c.l.b16 %v1001
      %v1290 = vunpack.c.l.b16 %v1002
      %v1291 = vunpack.c.l.b16 %v1003
      %v1292 = vunpack.c.l.b16 %v1004
      %v1293 = vunpack.c.l.b16 %v1005
      %v1294 = vunpack.c.l.b16 %v1006
      %v1295 = vunpack.c.l.b16 %v1007
      %v1296 = vunpack.c.l.b16 %v1008
      %v1297 = vunpack.c.l.b16 %v1009
      %v1298 = vunpack.c.l.b16 %v1010
      %v1299 = vunpack.c.l.b16 %v1011
      %v1300 = vunpack.c.l.b16 %v1012
      %v1301 = vunpack.c.l.b16 %v1013
      %v1302 = vunpack.c.l.b16 %v1014
      %v1303 = vunpack.c.l.b16 %v1015
      %v1304 = vunpack.c.l.b16 %v1016
      %v1305 = vunpack.c.l.b16 %v1017
      %v1306 = vunpack.c.l.b16 %v1018
      %v1307 = vunpack.c.l.b16 %v1019
      %v1308 = vunpack.c.l.b16 %v1020
      %v1309 = vunpack.c.l.b16 %v1021
      %v1310 = vunpack.c.l.b16 %v1022
      %v1311 = vunpack.c.l.b16 %v1023
      %v1312 = vunpack.c.l.b16 %v1024
      %v1313 = vunpack.c.l.b16 %v1025
      %v1314 = vunpack.c.l.b16 %v1026
      %v1315 = vunpack.c.l.b16 %v1027
      %v1316 = vunpack.c.l.b16 %v1028
      %v1317 = vunpack.c.l.b16 %v1029
      %v1318 = vunpack.c.l.b16 %v1030
      %v1319 = vunpack.c.l.b16 %v1031
      %v1320 = vunpack.c.l.b16 %v1032
      %v1321 = vunpack.c.l.b16 %v1033
      %v1322 = vunpack.c.l.b16 %v1034
      %v1323 = vunpack.c.l.b16 %v1035
      %v1324 = vunpack.c.l.b16 %v1036
      %v1325 = vunpack.c.l.b16 %v1037
      %v1326 = vunpack.c.l.b16 %v1038
      %v1327 = vunpack.c.l.b16 %v1039
      %v1328 = vunpack.c.l.b16 %v1040
      %v1329 = vunpack.c.l.b16 %v1041
      %v1330 = vunpack.c.l.b16 %v1042
      %v1331 = vunpack.c.l.b16 %v1043
      %v1332 = vunpack.c.l.b16 %v1044
      %v1333 = vunpack.c.l.b16 %v1045
      %v1334 = vunpack.c.l.b16 %v1046
      %v1335 = vunpack.c.l.b16 %v1047
      %v1336 = vunpack.c.l.b16 %v1048
      %v1337 = vunpack.c.l.b16 %v1049
      %v1338 = vunpack.c.l.b16 %v1050
      %v1339 = vunpack.c.l.b16 %v1051
      %v1340 = vunpack.c.l.b16 %v1052
      %v1341 = vunpack.c.l.b16 %v1053
      %v1342 = vunpack.c.l.b16 %v1054
      %v1343 = vunpack.c.l.b16 %v1055
      %v1344 = vunpack.c.l.b16 %v1056
      %v1345 = vunpack.c.l.b16 %v1057
      %v1346 = vunpack.c.l.b16 %v1058
      %v1347 = vunpack.c.l.b16 %v1059
      %v1348 = vunpack.c.l.b16 %v1060
      %v1349 = vunpack.c.l.b16 %v1061
      %v1350 = vunpack.c.l.b16 %v1062
      %v1351 = vunpack.c.l.b16 %v1063
      %v1352 = vunpack.c.l.b16 %v1064
      %v1353 = vunpack.c.l.b16 %v1065
      %v1354 = vunpack.c.l.b16 %v1066
      %v1355 = vunpack.c.l.b16 %v1067
      %v1356 = vunpack.c.l.b16 %v1068
      %v1357 = vunpack.c.l.b16 %v1069
      %v1358 = vunpack.c.l.b16 %v1070
      %v1359 = vunpack.c.l.b16 %v1071
      %v1360 = vunpack.c.l.b16 %v1072
      %v1361 = vunpack.c.l.b16 %v1073
      %v1362 = vunpack.c.l.b16 %v1074
      %v1363 = vunpack.c.l.b16 %v1075
      %v1364 = vunpack.c.l.b16 %v1076
      %v1365 = vunpack.c.l.b16 %v1077
      %v1366 = vunpack.c.l.b16 %v1078
      %v1367 = vunpack.c.l.b16 %v1079
      %v1368 = vunpack.c.l.b16 %v1080
      %v1369 = vunpack.c.l.b16 %v1081
      %v1370 = vunpack.c.l.b16 %v1082
      %v1371 = vunpack.c.l.b16 %v1083
      %v1372 = vunpack.c.l.b16 %v1084
      %v1373 = vunpack.c.l.b16 %v1085
      %v1374 = vunpack.c.l.b16 %v1086
      %v1375 = vunpack.c.l.b16 %v1087
      %v1376 = vunpack.c.l.b16 %v1088
      %v1377 = vunpack.c.l.b16 %v1089
      %v1378 = vunpack.c.l.b16 %v1090
      %v1379 = vunpack.c.l.b16 %v1091
      %v1380 = vunpack.c.l.b16 %v1092
      %v1381 = vunpack.c.l.b16 %v1093
      %v1382 = vunpack.c.l.b16 %v1094
      %v1383 = vunpack.c.l.b16 %v1095
      %v1384 = vunpack.c.l.b16 %v1096
      %v1385 = vunpack.c.l.b16 %v1097
      %v1386 = vunpack.c.l.b16 %v1098
      %v1387 = vunpack.c.l.b16 %v1099
      %v1388 = vunpack.c.l.b16 %v1100
      %v1389 = vunpack.c.l.b16 %v1101
      %v1390 = vunpack.c.l.b16 %v1102
      %v1391 = vunpack.c.l.b16 %v1103
      %v1392 = vunpack.c.l.b16 %v1104
      %v1393 = vunpack.c.l.b16 %v1105
      %v1394 = vunpack.c.l.b16 %v1106
      %v1395 = vunpack.c.l.b16 %v1107
      %v1396 = vunpack.c.l.b16 %v1108
      %v1397 = vunpack.c.l.b16 %v1109
      %v1398 = vunpack.c.l.b16 %v1110
      %v1399 = vunpack.c.l.b16 %v1111
      %v1400 = vunpack.c.l.b16 %v1112
      %v1401 = vunpack.c.l.b16 %v1113
      %v1402 = vunpack.c.l.b16 %v1114
      %v1403 = vunpack.c.l.b16 %v1115
      %v1404 = vunpack.c.l.b16 %v1116
      %v1405 = vunpack.c.l.b16 %v1117
      %v1406 = vunpack.c.l.b16 %v1118
      %v1407 = vunpack.c.l.b16 %v1119
      %v1408 = vunpack.c.l.b16 %v1120
      %v1409 = vunpack.c.l.b16 %v1121
      %v1410 = vunpack.c.l.b16 %v1122
      %v1411 = vunpack.c.l.b16 %v1123
      %v1412 = vunpack.c.l.b16 %v1124
      %v1413 = vunpack.c.l.b16 %v1125
      %v1414 = vunpack.c.l.b16 %v1126
      %v1415 = vunpack.c.l.b16 %v1127
      %v1416 = vunpack.c.l.b16 %v1128
      %v1417 = vunpack.c.l.b16 %v1129
      %v1418 = vunpack.c.l.b16 %v1130
      %v1419 = vunpack.c.l.b16 %v1131
      %v1420 = vunpack.c.l.b16 %v1132
      %v1421 = vunpack.c.l.b16 %v1133
      %v1422 = vunpack.c.l.b16 %v1134
      %v1423 = vunpack.c.l.b16 %v1135
      %v1424 = vunpack.c.l.b16 %v1136
      %v1425 = vunpack.c.l.b16 %v1137
      %v1426 = vunpack.c.l.b16 %v1138
      %v1427 = vunpack.c.l.b16 %v1139
      %v1428 = vpack.c.b16 %v1285, %v1284
      %v1429 = vpack.c.b16 %v1287, %v1286
      %v1430 = vpack.c.b16 %v1289, %v1288
      %v1431 = vpack.c.b16 %v1291, %v1290
      %v1432 = vpack.c.b16 %v1293, %v1292
      %v1433 = vpack.c.b16 %v1295, %v1294
      %v1434 = vpack.c.b16 %v1297, %v1296
      %v1435 = vpack.c.b16 %v1299, %v1298
      %v1436 = vpack.c.b16 %v1301, %v1300
      %v1437 = vpack.c.b16 %v1303, %v1302
      %v1438 = vpack.c.b16 %v1305, %v1304
      %v1439 = vpack.c.b16 %v1307, %v1306
      %v1440 = vpack.c.b16 %v1309, %v1308
      %v1441 = vpack.c.b16 %v1311, %v1310
      %v1442 = vpack.c.b16 %v1313, %v1312
      %v1443 = vpack.c.b16 %v1315, %v1314
      %v1444 = vpack.c.b16 %v1317, %v1316
      %v1445 = vpack.c.b16 %v1319, %v1318
      %v1446 = vpack.c.b16 %v1321, %v1320
      %v1447 = vpack.c.b16 %v1323, %v1322
      %v1448 = vpack.c.b16 %v1325, %v1324
      %v1449 = vpack.c.b16 %v1327, %v1326
      %v1450 = vpack.c.b16 %v1329, %v1328
      %v1451 = vpack.c.b16 %v1331, %v1330
      %v1452 = vpack.c.b16 %v1333, %v1332
      %v1453 = vpack.c.b16 %v1335, %v1334
      %v1454 = vpack.c.b16 %v1337, %v1336
      %v1455 = vpack.c.b16 %v1339, %v1338
      %v1456 = vpack.c.b16 %v1341, %v1340
      %v1457 = vpack.c.b16 %v1343, %v1342
      %v1458 = vpack.c.b16 %v1345, %v1344
      %v1459 = vpack.c.b16 %v1347, %v1346
      %v1460 = vpack.c.b16 %v1349, %v1348
      %v1461 = vpack.c.b16 %v1351, %v1350
      %v1462 = vpack.c.b16 %v1353, %v1352
      %v1463 = vpack.c.b16 %v1355, %v1354
      %v1464 = vpack.c.b16 %v1357, %v1356
      %v1465 = vpack.c.b16 %v1359, %v1358
      %v1466 = vpack.c.b16 %v1361, %v1360
      %v1467 = vpack.c.b16 %v1363, %v1362
      %v1468 = vpack.c.b16 %v1365, %v1364
      %v1469 = vpack.c.b16 %v1367, %v1366
      %v1470 = vpack.c.b16 %v1369, %v1368
      %v1471 = vpack.c.b16 %v1371, %v1370
      %v1472 = vpack.c.b16 %v1373, %v1372
      %v1473 = vpack.c.b16 %v1375, %v1374
      %v1474 = vpack.c.b16 %v1377, %v1376
      %v1475 = vpack.c.b16 %v1379, %v1378
      %v1476 = vpack.c.b16 %v1381, %v1380
      %v1477 = vpack.c.b16 %v1383, %v1382
      %v1478 = vpack.c.b16 %v1385, %v1384
      %v1479 = vpack.c.b16 %v1387, %v1386
      %v1480 = vpack.c.b16 %v1389, %v1388
      %v1481 = vpack.c.b16 %v1391, %v1390
      %v1482 = vpack.c.b16 %v1393, %v1392
      %v1483 = vpack.c.b16 %v1395, %v1394
      %v1484 = vpack.c.b16 %v1397, %v1396
      %v1485 = vpack.c.b16 %v1399, %v1398
      %v1486 = vpack.c.b16 %v1401, %v1400
      %v1487 = vpack.c.b16 %v1403, %v1402
      %v1488 = vpack.c.b16 %v1405, %v1404
      %v1489 = vpack.c.b16 %v1407, %v1406
      %v1490 = vpack.c.b16 %v1409, %v1408
      %v1491 = vpack.c.b16 %v1411, %v1410
      %v1492 = vpack.c.b16 %v1413, %v1412
      %v1493 = vpack.c.b16 %v1415, %v1414
      %v1494 = vpack.c.b16 %v1417, %v1416
      %v1495 = vpack.c.b16 %v1419, %v1418
      %v1496 = vpack.c.b16 %v1421, %v1420
      %v1497 = vpack.c.b16 %v1423, %v1422
      %v1498 = vpack.c.b16 %v1425, %v1424
      %v1499 = vpack.c.b16 %v1427, %v1426
      %1572 = vmatpush.bf16.msra.mxu0 %v1435
      %1573 = vmatpush.bf16.msra.mxu0 %v1434
      %1574 = vmatpush.bf16.msra.mxu0 %v1433
      %1575 = vmatpush.bf16.msra.mxu0 %v1432
      %1576 = vmatpush.bf16.msra.mxu0 %v1431
      %1577 = vmatpush.bf16.msra.mxu0 %v1430
      %1578 = vmatpush.bf16.msra.mxu0 %v1429
      %1579 = vmatpush.bf16.msra.mxu0 %v1428
      %1580 = vmatmul.bf16.gmra.mxu0 %v844
      %v1581 = vpop.f32.mrf.mxu0
      %v1582 = vadd.f32 0.0, %v1581
      %v1583 = vpop.f32.mrf.mxu0
      %v1584 = vadd.f32 0.0, %v1583
      %1585 = vmatmul.bf16.gmra.mxu0 %v845
      %v1586 = vpop.f32.mrf.mxu0
      %v1587 = vadd.f32 0.0, %v1586
      %v1588 = vpop.f32.mrf.mxu0
      %v1589 = vadd.f32 0.0, %v1588
      %1590 = vmatmul.bf16.gmra.mxu0 %v846
      %v1591 = vpop.f32.mrf.mxu0
      %v1592 = vadd.f32 0.0, %v1591
      %v1593 = vpop.f32.mrf.mxu0
      %v1594 = vadd.f32 0.0, %v1593
      %1595 = vmatmul.bf16.gmra.mxu0 %v847
      %v1596 = vpop.f32.mrf.mxu0
      %v1597 = vadd.f32 0.0, %v1596
      %v1598 = vpop.f32.mrf.mxu0
      %v1599 = vadd.f32 0.0, %v1598
      %1600 = vdwg.mxu0
      %1601 = vmatpush.bf16.msra.mxu0 %v1443
      %1602 = vmatpush.bf16.msra.mxu0 %v1442
      %1603 = vmatpush.bf16.msra.mxu0 %v1441
      %1604 = vmatpush.bf16.msra.mxu0 %v1440
      %1605 = vmatpush.bf16.msra.mxu0 %v1439
      %1606 = vmatpush.bf16.msra.mxu0 %v1438
      %1607 = vmatpush.bf16.msra.mxu0 %v1437
      %1608 = vmatpush.bf16.msra.mxu0 %v1436
      %1609 = vmatmul.bf16.gmra.mxu0 %v860
      %v1610 = vpop.f32.mrf.mxu0
      %v1611 = vadd.f32 %v1582, %v1610
      %v1612 = vpop.f32.mrf.mxu0
      %v1613 = vadd.f32 %v1584, %v1612
      %1614 = vmatmul.bf16.gmra.mxu0 %v861
      %v1615 = vpop.f32.mrf.mxu0
      %v1616 = vadd.f32 %v1587, %v1615
      %v1617 = vpop.f32.mrf.mxu0
      %v1618 = vadd.f32 %v1589, %v1617
      %1619 = vmatmul.bf16.gmra.mxu0 %v862
      %v1620 = vpop.f32.mrf.mxu0
      %v1621 = vadd.f32 %v1592, %v1620
      %v1622 = vpop.f32.mrf.mxu0
      %v1623 = vadd.f32 %v1594, %v1622
      %1624 = vmatmul.bf16.gmra.mxu0 %v863
      %v1625 = vpop.f32.mrf.mxu0
      %v1626 = vadd.f32 %v1597, %v1625
      %v1627 = vpop.f32.mrf.mxu0
      %v1628 = vadd.f32 %v1599, %v1627
      %1629 = vdwg.mxu0
      %1630 = vmatpush.bf16.msra.mxu0 %v1451
      %1631 = vmatpush.bf16.msra.mxu0 %v1450
      %1632 = vmatpush.bf16.msra.mxu0 %v1449
      %1633 = vmatpush.bf16.msra.mxu0 %v1448
      %1634 = vmatpush.bf16.msra.mxu0 %v1447
      %1635 = vmatpush.bf16.msra.mxu0 %v1446
      %1636 = vmatpush.bf16.msra.mxu0 %v1445
      %1637 = vmatpush.bf16.msra.mxu0 %v1444
      %1638 = vmatmul.bf16.gmra.mxu0 %v876
      %v1639 = vpop.f32.mrf.mxu0
      %v1640 = vadd.f32 %v1611, %v1639
      %v1641 = vpop.f32.mrf.mxu0
      %v1642 = vadd.f32 %v1613, %v1641
      %1643 = vmatmul.bf16.gmra.mxu0 %v877
      %v1644 = vpop.f32.mrf.mxu0
      %v1645 = vadd.f32 %v1616, %v1644
      %v1646 = vpop.f32.mrf.mxu0
      %v1647 = vadd.f32 %v1618, %v1646
      %1648 = vmatmul.bf16.gmra.mxu0 %v878
      %v1649 = vpop.f32.mrf.mxu0
      %v1650 = vadd.f32 %v1621, %v1649
      %v1651 = vpop.f32.mrf.mxu0
      %v1652 = vadd.f32 %v1623, %v1651
      %1653 = vmatmul.bf16.gmra.mxu0 %v879
      %v1654 = vpop.f32.mrf.mxu0
      %v1655 = vadd.f32 %v1626, %v1654
      %v1656 = vpop.f32.mrf.mxu0
      %v1657 = vadd.f32 %v1628, %v1656
      %1658 = vdwg.mxu0
      %1659 = vmatpush.bf16.msra.mxu0 %v1459
      %1660 = vmatpush.bf16.msra.mxu0 %v1458
      %1661 = vmatpush.bf16.msra.mxu0 %v1457
      %1662 = vmatpush.bf16.msra.mxu0 %v1456
      %1663 = vmatpush.bf16.msra.mxu0 %v1455
      %1664 = vmatpush.bf16.msra.mxu0 %v1454
      %1665 = vmatpush.bf16.msra.mxu0 %v1453
      %1666 = vmatpush.bf16.msra.mxu0 %v1452
      %1667 = vmatmul.bf16.gmra.mxu0 %v900
      %v1668 = vpop.f32.mrf.mxu0
      %v1669 = vadd.f32 %v1640, %v1668
      %v1670 = vpop.f32.mrf.mxu0
      %v1671 = vadd.f32 %v1642, %v1670
      %1672 = vmatmul.bf16.gmra.mxu0 %v901
      %v1673 = vpop.f32.mrf.mxu0
      %v1674 = vadd.f32 %v1645, %v1673
      %v1675 = vpop.f32.mrf.mxu0
      %v1676 = vadd.f32 %v1647, %v1675
      %1677 = vmatmul.bf16.gmra.mxu0 %v902
      %v1678 = vpop.f32.mrf.mxu0
      %v1679 = vadd.f32 %v1650, %v1678
      %v1680 = vpop.f32.mrf.mxu0
      %v1681 = vadd.f32 %v1652, %v1680
      %1682 = vmatmul.bf16.gmra.mxu0 %v903
      %v1683 = vpop.f32.mrf.mxu0
      %v1684 = vadd.f32 %v1655, %v1683
      %v1685 = vpop.f32.mrf.mxu0
      %v1686 = vadd.f32 %v1657, %v1685
      %1687 = vdwg.mxu0
      %1688 = vmatpush.bf16.msra.mxu0 %v1467
      %1689 = vmatpush.bf16.msra.mxu0 %v1466
      %1690 = vmatpush.bf16.msra.mxu0 %v1465
      %1691 = vmatpush.bf16.msra.mxu0 %v1464
      %1692 = vmatpush.bf16.msra.mxu0 %v1463
      %1693 = vmatpush.bf16.msra.mxu0 %v1462
      %1694 = vmatpush.bf16.msra.mxu0 %v1461
      %1695 = vmatpush.bf16.msra.mxu0 %v1460
      %1696 = vmatmul.bf16.gmra.mxu0 %v916
      %v1697 = vpop.f32.mrf.mxu0
      %v1698 = vadd.f32 %v1669, %v1697
      %v1699 = vpop.f32.mrf.mxu0
      %v1700 = vadd.f32 %v1671, %v1699
      %1701 = vmatmul.bf16.gmra.mxu0 %v917
      %v1702 = vpop.f32.mrf.mxu0
      %v1703 = vadd.f32 %v1674, %v1702
      %v1704 = vpop.f32.mrf.mxu0
      %v1705 = vadd.f32 %v1676, %v1704
      %1706 = vmatmul.bf16.gmra.mxu0 %v918
      %v1707 = vpop.f32.mrf.mxu0
      %v1708 = vadd.f32 %v1679, %v1707
      %v1709 = vpop.f32.mrf.mxu0
      %v1710 = vadd.f32 %v1681, %v1709
      %1711 = vmatmul.bf16.gmra.mxu0 %v919
      %v1712 = vpop.f32.mrf.mxu0
      %v1713 = vadd.f32 %v1684, %v1712
      %v1714 = vpop.f32.mrf.mxu0
      %v1715 = vadd.f32 %v1686, %v1714
      %1716 = vdwg.mxu0
      %1717 = vmatpush.bf16.msra.mxu0 %v1475
      %1718 = vmatpush.bf16.msra.mxu0 %v1474
      %1719 = vmatpush.bf16.msra.mxu0 %v1473
      %1720 = vmatpush.bf16.msra.mxu0 %v1472
      %1721 = vmatpush.bf16.msra.mxu0 %v1471
      %1722 = vmatpush.bf16.msra.mxu0 %v1470
      %1723 = vmatpush.bf16.msra.mxu0 %v1469
      %1724 = vmatpush.bf16.msra.mxu0 %v1468
      %1725 = vmatmul.bf16.gmra.mxu0 %v932
      %v1726 = vpop.f32.mrf.mxu0
      %v1727 = vadd.f32 %v1698, %v1726
      %v1728 = vpop.f32.mrf.mxu0
      %v1729 = vadd.f32 %v1700, %v1728
      %1730 = vmatmul.bf16.gmra.mxu0 %v933
      %v1731 = vpop.f32.mrf.mxu0
      %v1732 = vadd.f32 %v1703, %v1731
      %v1733 = vpop.f32.mrf.mxu0
      %v1734 = vadd.f32 %v1705, %v1733
      %1735 = vmatmul.bf16.gmra.mxu0 %v934
      %v1736 = vpop.f32.mrf.mxu0
      %v1737 = vadd.f32 %v1708, %v1736
      %v1738 = vpop.f32.mrf.mxu0
      %v1739 = vadd.f32 %v1710, %v1738
      %1740 = vmatmul.bf16.gmra.mxu0 %v935
      %v1741 = vpop.f32.mrf.mxu0
      %v1742 = vadd.f32 %v1713, %v1741
      %v1743 = vpop.f32.mrf.mxu0
      %v1744 = vadd.f32 %v1715, %v1743
      %1745 = vdwg.mxu0
      %1746 = vmatpush.bf16.msra.mxu0 %v1483
      %1747 = vmatpush.bf16.msra.mxu0 %v1482
      %1748 = vmatpush.bf16.msra.mxu0 %v1481
      %1749 = vmatpush.bf16.msra.mxu0 %v1480
      %1750 = vmatpush.bf16.msra.mxu0 %v1479
      %1751 = vmatpush.bf16.msra.mxu0 %v1478
      %1752 = vmatpush.bf16.msra.mxu0 %v1477
      %1753 = vmatpush.bf16.msra.mxu0 %v1476
      %1754 = vmatmul.bf16.gmra.mxu0 %v956
      %v1755 = vpop.f32.mrf.mxu0
      %v1756 = vadd.f32 %v1727, %v1755
      %v1757 = vpop.f32.mrf.mxu0
      %v1758 = vadd.f32 %v1729, %v1757
      %1759 = vmatmul.bf16.gmra.mxu0 %v957
      %v1760 = vpop.f32.mrf.mxu0
      %v1761 = vadd.f32 %v1732, %v1760
      %v1762 = vpop.f32.mrf.mxu0
      %v1763 = vadd.f32 %v1734, %v1762
      %1764 = vmatmul.bf16.gmra.mxu0 %v958
      %v1765 = vpop.f32.mrf.mxu0
      %v1766 = vadd.f32 %v1737, %v1765
      %v1767 = vpop.f32.mrf.mxu0
      %v1768 = vadd.f32 %v1739, %v1767
      %1769 = vmatmul.bf16.gmra.mxu0 %v959
      %v1770 = vpop.f32.mrf.mxu0
      %v1771 = vadd.f32 %v1742, %v1770
      %v1772 = vpop.f32.mrf.mxu0
      %v1773 = vadd.f32 %v1744, %v1772
      %1774 = vdwg.mxu0
      %1775 = vmatpush.bf16.msra.mxu0 %v1491
      %1776 = vmatpush.bf16.msra.mxu0 %v1490
      %1777 = vmatpush.bf16.msra.mxu0 %v1489
      %1778 = vmatpush.bf16.msra.mxu0 %v1488
      %1779 = vmatpush.bf16.msra.mxu0 %v1487
      %1780 = vmatpush.bf16.msra.mxu0 %v1486
      %1781 = vmatpush.bf16.msra.mxu0 %v1485
      %1782 = vmatpush.bf16.msra.mxu0 %v1484
      %1783 = vmatmul.bf16.gmra.mxu0 %v972
      %v1784 = vpop.f32.mrf.mxu0
      %v1785 = vadd.f32 %v1756, %v1784
      %v1786 = vpop.f32.mrf.mxu0
      %v1787 = vadd.f32 %v1758, %v1786
      %1788 = vmatmul.bf16.gmra.mxu0 %v973
      %v1789 = vpop.f32.mrf.mxu0
      %v1790 = vadd.f32 %v1761, %v1789
      %v1791 = vpop.f32.mrf.mxu0
      %v1792 = vadd.f32 %v1763, %v1791
      %1793 = vmatmul.bf16.gmra.mxu0 %v974
      %v1794 = vpop.f32.mrf.mxu0
      %v1795 = vadd.f32 %v1766, %v1794
      %v1796 = vpop.f32.mrf.mxu0
      %v1797 = vadd.f32 %v1768, %v1796
      %1798 = vmatmul.bf16.gmra.mxu0 %v975
      %v1799 = vpop.f32.mrf.mxu0
      %v1800 = vadd.f32 %v1771, %v1799
      %v1801 = vpop.f32.mrf.mxu0
      %v1802 = vadd.f32 %v1773, %v1801
      %1803 = vdwg.mxu0
      %1804 = vmatpush.bf16.msra.mxu0 %v1499
      %1805 = vmatpush.bf16.msra.mxu0 %v1498
      %1806 = vmatpush.bf16.msra.mxu0 %v1497
      %1807 = vmatpush.bf16.msra.mxu0 %v1496
      %1808 = vmatpush.bf16.msra.mxu0 %v1495
      %1809 = vmatpush.bf16.msra.mxu0 %v1494
      %1810 = vmatpush.bf16.msra.mxu0 %v1493
      %1811 = vmatpush.bf16.msra.mxu0 %v1492
      %1812 = vmatmul.bf16.gmra.mxu0 %v988
      %v1813 = vpop.f32.mrf.mxu0
      %v1814 = vadd.f32 %v1785, %v1813
      %v1815 = vpop.f32.mrf.mxu0
      %v1816 = vadd.f32 %v1787, %v1815
      %1817 = vmatmul.bf16.gmra.mxu0 %v989
      %v1818 = vpop.f32.mrf.mxu0
      %v1819 = vadd.f32 %v1790, %v1818
      %v1820 = vpop.f32.mrf.mxu0
      %v1821 = vadd.f32 %v1792, %v1820
      %1822 = vmatmul.bf16.gmra.mxu0 %v990
      %v1823 = vpop.f32.mrf.mxu0
      %v1824 = vadd.f32 %v1795, %v1823
      %v1825 = vpop.f32.mrf.mxu0
      %v1826 = vadd.f32 %v1797, %v1825
      %1827 = vmatmul.bf16.gmra.mxu0 %v991
      %v1828 = vpop.f32.mrf.mxu0
      %v1829 = vadd.f32 %v1800, %v1828
      %v1830 = vpop.f32.mrf.mxu0
      %v1831 = vadd.f32 %v1802, %v1830
      %1832 = vdwg.mxu0
      %v1833 = vpack.c.bf16 %v1814, %v1814
      %v1834 = vpack.c.bf16 %v1816, %v1816
      %v1835 = vpack.c.bf16 %v1819, %v1819
      %v1836 = vpack.c.bf16 %v1821, %v1821
      %v1837 = vpack.c.bf16 %v1824, %v1824
      %v1838 = vpack.c.bf16 %v1826, %v1826
      %v1839 = vpack.c.bf16 %v1829, %v1829
      %v1840 = vpack.c.bf16 %v1831, %v1831
      %1841 = vst [vmem:[%s255] sm:$0xf] %v1833
      %1842 = vst [vmem:[%s255 + $0x4] sm:$0xf] %v1834
      %1843 = vst [vmem:[%s255 + $0x8] sm:$0xf] %v1835
      %1844 = vst [vmem:[%s255 + $0xc] sm:$0xf] %v1836
      %1845 = vst [vmem:[%s255 + $0x10] sm:$0xf] %v1837
      %1846 = vst [vmem:[%s255 + $0x14] sm:$0xf] %v1838
      %1847 = vst [vmem:[%s255 + $0x18] sm:$0xf] %v1839
      %1848 = vst [vmem:[%s255 + $0x1c] sm:$0xf] %v1840
      %v1849 = vadd.f32 %v1814, %v1816
      %v1850 = vadd.f32 %v1849, %v1819
      %v1851 = vadd.f32 %v1850, %v1821
      %v1852 = vadd.f32 %v1851, %v1824
      %v1853 = vadd.f32 %v1852, %v1826
      %v1854 = vadd.f32 %v1853, %v1829
      %v1855 = vadd.f32 %v1854, %v1831
      %v1856 = vrot.slane %v1855, 4
      %v1857 = vadd.f32 %v1855, %v1856
      %v1858 = vrot.slane %v1857, 2
      %v1859 = vadd.f32 %v1857, %v1858
      %v1860 = vrot.slane %v1859, 1
      %v1861 = vadd.f32 %v1859, %v1860
      %1862 = vst [vmem:[%s261] sm:$0x1] %v1861
      %v1863 = vmul.f32 %v1814, %v1814
      %v1864 = vmul.f32 %v1816, %v1816
      %v1865 = vmul.f32 %v1819, %v1819
      %v1866 = vmul.f32 %v1821, %v1821
      %v1867 = vmul.f32 %v1824, %v1824
      %v1868 = vmul.f32 %v1826, %v1826
      %v1869 = vmul.f32 %v1829, %v1829
      %v1870 = vmul.f32 %v1831, %v1831
      %v1871 = vadd.f32 %v1863, %v1864
      %v1872 = vadd.f32 %v1871, %v1865
      %v1873 = vadd.f32 %v1872, %v1866
      %v1874 = vadd.f32 %v1873, %v1867
      %v1875 = vadd.f32 %v1874, %v1868
      %v1876 = vadd.f32 %v1875, %v1869
      %v1877 = vadd.f32 %v1876, %v1870
      %v1878 = vrot.slane %v1877, 4
      %v1879 = vadd.f32 %v1877, %v1878
      %v1880 = vrot.slane %v1879, 2
      %v1881 = vadd.f32 %v1879, %v1880
      %v1882 = vrot.slane %v1881, 1
      %v1883 = vadd.f32 %v1881, %v1882
      %1884 = vst [vmem:[%s267] sm:$0x1] %v1883
      %p1885 = scmp.lt.s32.totalorder %s21, 1
      %s1886 = scalar_select %p1885, %s21, 1
      %p1887 = scmp.lt.s32.totalorder %s20, 0
      %s1888 = scalar_select %p1887, %s20, 0
      %s1889 = smul.addr %s1886, 8
      %s1890 = sadd.s32 %s1888, %s1889
      %s1891 = smul.addr %s1890, 4
      %s1892 = scalar_lea.vmem %s2, %s1891
      %p1893 = scmp.lt.s32.totalorder %s21, 1
      %s1894 = scalar_select %p1893, %s21, 1
      %p1895 = scmp.lt.s32.totalorder %s20, 0
      %s1896 = scalar_select %p1895, %s20, 0
      %s1897 = sadd.s32 %s1896, %s1894
      %s1898 = scalar_lea.vmem %s3, %s1897
      %p1899 = scmp.lt.s32.totalorder %s21, 1
      %s1900 = scalar_select %p1899, %s21, 1
      %p1901 = scmp.lt.s32.totalorder %s20, 0
      %s1902 = scalar_select %p1901, %s20, 0
      %s1903 = sadd.s32 %s1902, %s1900
      %s1904 = scalar_lea.vmem %s4, %s1903
      // Predicated region
      $region29: #{basic_block_forward.6} parent=27 // pred_check
        %p1905 = pneg %p100
      $region30: #{basic_block_forward.6} parent=27 // pred_check_branch
        %1907 = sbr.rel (%p1905) target = $region32
      $region31: #{basic_block_forward.6} parent=27 // pred_region
        _
      $region32: #{basic_block_forward.6} parent=27 // pred_fallthru
        _
      // Predicated region
      $region33: #{basic_block_forward.6} parent=27 // pred_check
        %p1908 = pneg %p128
      $region34: #{basic_block_forward.6} parent=27 // pred_check_branch
        %1910 = sbr.rel (%p1908) target = $region36
      $region35: #{basic_block_forward.6} parent=27 // pred_region
        _
      $region36: #{basic_block_forward.6} parent=27 // pred_fallthru
        _
      // Predicated region
      $region37: #{basic_block_forward.6} parent=27 // pred_check
        %p1911 = pneg %p156
      $region38: #{basic_block_forward.6} parent=27 // pred_check_branch
        %1913 = sbr.rel (%p1911) target = $region40
      $region39: #{basic_block_forward.6} parent=27 // pred_region
        _
      $region40: #{basic_block_forward.6} parent=27 // pred_fallthru
        _
    $region28: #{basic_block_forward.6} parent=5 // pred_fallthru
      _
    %p1914 = scmp.le.s32.totalorder 2, %s11
    // Predicated region
    $region41: #{basic_block_forward.6} parent=5 // pred_check
      %p1915 = pneg %p1914
    $region42: #{basic_block_forward.6} parent=5 // pred_check_branch
      %1917 = sbr.rel (%p1915) target = $region44
    $region43: #{basic_block_forward.6} parent=5 // pred_region
      %s1918 = ssub.s32 %s11, 2
      // Predicated region
      $region45: #{basic_block_forward.6} parent=43 // pred_check
        %p1919 = pneg %p106
      $region46: #{basic_block_forward.6} parent=43 // pred_check_branch
        %1921 = sbr.rel (%p1919) target = $region48
      $region47: #{basic_block_forward.6} parent=43 // pred_region
        %p1922 = scmp.lt.s32.totalorder %s23, 1
        %s1923 = scalar_select %p1922, %s23, 1
        %p1924 = scmp.lt.s32.totalorder %s22, 0
        %s1925 = scalar_select %p1924, %s22, 0
        %s1926 = smul.addr %s1923, 8
        %s1927 = sadd.s32 %s1925, %s1926
        %s1928 = smul.addr %s1927, 4
        %s1929 = scalar_lea.vmem %s2, %s1928
      $region48: #{basic_block_forward.6} parent=43 // pred_fallthru
        _
      // Predicated region
      $region49: #{basic_block_forward.6} parent=43 // pred_check
        %p1930 = pneg %p134
      $region50: #{basic_block_forward.6} parent=43 // pred_check_branch
        %1932 = sbr.rel (%p1930) target = $region52
      $region51: #{basic_block_forward.6} parent=43 // pred_region
        %p1933 = scmp.lt.s32.totalorder %s23, 1
        %s1934 = scalar_select %p1933, %s23, 1
        %p1935 = scmp.lt.s32.totalorder %s22, 0
        %s1936 = scalar_select %p1935, %s22, 0
        %s1937 = sadd.s32 %s1936, %s1934
        %s1938 = scalar_lea.vmem %s3, %s1937
      $region52: #{basic_block_forward.6} parent=43 // pred_fallthru
        _
      // Predicated region
      $region53: #{basic_block_forward.6} parent=43 // pred_check
        %p1939 = pneg %p162
      $region54: #{basic_block_forward.6} parent=43 // pred_check_branch
        %1941 = sbr.rel (%p1939) target = $region56
      $region55: #{basic_block_forward.6} parent=43 // pred_region
        %p1942 = scmp.lt.s32.totalorder %s23, 1
        %s1943 = scalar_select %p1942, %s23, 1
        %p1944 = scmp.lt.s32.totalorder %s22, 0
        %s1945 = scalar_select %p1944, %s22, 0
        %s1946 = sadd.s32 %s1945, %s1943
        %s1947 = scalar_lea.vmem %s4, %s1946
      $region56: #{basic_block_forward.6} parent=43 // pred_fallthru
        _
    $region44: #{basic_block_forward.6} parent=5 // pred_fallthru
      _
  $region6: #{basic_block_forward.6} parent=0 // loop_footer
    %s15 = sadd.s32 1, %s11
  $region7: #{basic_block_forward.6} parent=0 // loop_footer_branch
    %10 = sbr.rel target = $region3
  $region8: #{basic_block_forward.6} parent=0 // loop_exit
    _

</llo_original>
